<compile_context>
chip_gen: v7x
topology: tpu7x:2x2x1
jax: 0.10.0
libtpu: 0.0.40
codegen_flags: <defaults>
</compile_context>

<pallas_src>
import jax
import jax.numpy as jnp
from jax import lax
from jax.experimental import pallas as pl
from jax.experimental.pallas import tpu as pltpu

# ----------------------------- synthetic config -----------------------------
B, S = 2, 8            # batch, sequence length
H = 32                 # hidden size
NH, DH = 4, 8          # attention heads, head dim (NH * DH == H)
F = 64                 # FFN intermediate size
V = 128                # vocab size (also the padded disc-head lane width)
L = 2                  # number of encoder layers (same for gen & disc)
BS = B * S
assert NH * DH == H

LAYER_PARAM_NAMES = ('wqkv', 'bqkv', 'wo', 'bo', 'ln1g', 'ln1b',
                     'w1', 'b1', 'w2', 'b2', 'ln2g', 'ln2b')
HEAD_PARAM_NAMES = ('head_wd', 'head_bd', 'head_lng', 'head_lnb',
                    'head_wp', 'head_bp')


# --------------------------------- helpers ----------------------------------
def _layernorm(x, g, b, eps=1e-12):
    mu = jnp.mean(x, axis=-1, keepdims=True)
    var = jnp.mean(jnp.square(x - mu), axis=-1, keepdims=True)
    return (x - mu) * lax.rsqrt(var + eps) * g + b


# --------------------------------- kernel -----------------------------------
def electra_kernel(x_ref,
                   wqkv_ref, bqkv_ref, wo_ref, bo_ref,
                   ln1g_ref, ln1b_ref, w1_ref, b1_ref, w2_ref, b2_ref,
                   ln2g_ref, ln2b_ref,
                   hwd_ref, hbd_ref, hlng_ref, hlnb_ref, hwp_ref, hbp_ref,
                   out_ref, h_ref):
    """grid = (branch, layer); branch 0 = generator, branch 1 = discriminator."""
    branch = pl.program_id(0)
    layer = pl.program_id(1)

    @pl.when(layer == 0)
    def _():
        # embeddings are already layernormed in the wrapper
        h_ref[...] = x_ref[...]

    x = h_ref[...]                                                  # (BS, H)

    # ---- fused QKV projection: one (BS,H) x (H,3H) matmul ----
    qkv = jnp.dot(x, wqkv_ref[...],
                  preferred_element_type=jnp.float32) + bqkv_ref[...]

    def split_heads(off):
        # (BS, H) slab -> (NH*B, S, DH) with head-major batch order
        parts = [qkv[:, off + h * DH: off + (h + 1) * DH].reshape(B, S, DH)
                 for h in range(NH)]
        return jnp.concatenate(parts, axis=0)

    q = split_heads(0)          # 1/sqrt(DH) scale folded into the Q weights
    k = split_heads(H)
    v = split_heads(2 * H)

    # ---- attention batched over all (head, batch) pairs ----
    s = jnp.einsum('bqd,bkd->bqk', q, k, preferred_element_type=jnp.float32)
    s = s - jnp.max(s, axis=-1, keepdims=True)
    p = jnp.exp(s)
    p = p * pl.reciprocal(jnp.sum(p, axis=-1, keepdims=True), approx=True)
    ctx = jnp.einsum('bqk,bkd->bqd', p, v, preferred_element_type=jnp.float32)

    # merge heads back to a lane-dense (BS, H) slab (register concat, no VMEM RMW)
    ctx = ctx.reshape(NH, BS, DH)
    ctx = jnp.concatenate([ctx[h] for h in range(NH)], axis=-1)     # (BS, H)

    # single output projection over the concatenated heads
    attn = jnp.dot(ctx, wo_ref[...],
                   preferred_element_type=jnp.float32) + bo_ref[...]

    # ---- residual + LN, FFN, residual + LN ----
    h1 = _layernorm(x + attn, ln1g_ref[...], ln1b_ref[...])
    ff = jnp.dot(h1, w1_ref[...], preferred_element_type=jnp.float32) + b1_ref[...]
    ff = jax.nn.gelu(ff, approximate=True)
    ff = jnp.dot(ff, w2_ref[...], preferred_element_type=jnp.float32) + b2_ref[...]
    h2 = _layernorm(h1 + ff, ln2g_ref[...], ln2b_ref[...])
    h_ref[...] = h2

    # ---- fused output heads on the final layer (no extra pallas_call) ----
    @pl.when(layer == pl.num_programs(1) - 1)
    def _():
        t = jnp.dot(h2, hwd_ref[...],
                    preferred_element_type=jnp.float32) + hbd_ref[...]
        t = jax.nn.gelu(t, approximate=True)
        t_ln = _layernorm(t, hlng_ref[...], hlnb_ref[...])
        # generator head applies LayerNorm before the vocab projection,
        # discriminator head does not -- blend with a 0/1 scalar weight.
        use_ln = (branch == 0).astype(jnp.float32)
        t = use_ln * t_ln + (1.0 - use_ln) * t
        out_ref[...] = jnp.dot(t, hwp_ref[...],
                               preferred_element_type=jnp.float32) + hbp_ref[...]


# ------------------------------ pallas wrapper -------------------------------
def _layer_spec(arr):
    """arr: (2, L, ...) -> per-(branch, layer) block, leading dims squeezed."""
    nd = arr.ndim
    blk = (None, None) + tuple(arr.shape[2:])
    return pl.BlockSpec(blk, lambda br, l, nd=nd: (br, l) + (0,) * (nd - 2))


def _branch_spec(arr):
    """arr: (2, ...) -> per-branch block, leading dim squeezed."""
    nd = arr.ndim
    blk = (None,) + tuple(arr.shape[1:])
    return pl.BlockSpec(blk, lambda br, l, nd=nd: (br,) + (0,) * (nd - 1))


def embed(input_ids, p):
    # token-id gather stays as plain-JAX glue
    tok = jnp.take(p['tok_emb'], input_ids, axis=0)                 # (B, S, H)
    x = (tok + p['pos_emb'][None, :, :]).reshape(BS, H).astype(jnp.float32)
    return _layernorm(x, p['emb_ln_g'], p['emb_ln_b'])              # emb LN in wrapper


@jax.jit
def electra_forward(input_ids, gen_params, disc_params, kernel_params):
    x = jnp.stack([embed(input_ids, gen_params),
                   embed(input_ids, disc_params)], axis=0)          # (2, BS, H)

    layer_args = [kernel_params[n] for n in LAYER_PARAM_NAMES]      # (2, L, ...)
    head_args = [kernel_params[n] for n in HEAD_PARAM_NAMES]        # (2, ...)

    in_specs = ([_branch_spec(x)]
                + [_layer_spec(a) for a in layer_args]
                + [_branch_spec(a) for a in head_args])

    out = pl.pallas_call(
        electra_kernel,
        out_shape=jax.ShapeDtypeStruct((2, BS, V), jnp.float32),
        grid_spec=pltpu.PrefetchScalarGridSpec(
            num_scalar_prefetch=0,
            grid=(2, L),                               # (branch, layer)
            in_specs=in_specs,
            out_specs=pl.BlockSpec((None, BS, V), lambda br, l: (br, 0, 0)),
            scratch_shapes=[pltpu.VMEM((BS, H), jnp.float32)]),     # carried hidden
        compiler_params=pltpu.CompilerParams(
            dimension_semantics=("parallel", "arbitrary")),         # 2 TCs on v7x
    )(x, *layer_args, *head_args)

    gen_logits = out[0].reshape(B, S, V)
    disc_logits = out[1, :, 0:1].reshape(B, S, 1)   # lane-dense slab -> real logit
    return gen_logits, disc_logits


# ------------------------------- parameters ---------------------------------
def _normal(key, shape, scale=0.02):
    return (scale * jax.random.normal(key, shape)).astype(jnp.float32)


def init_branch_params(key, with_gen_head):
    ks = iter(jax.random.split(key, 24))
    p = {}
    p['tok_emb'] = _normal(next(ks), (V, H))
    p['pos_emb'] = _normal(next(ks), (S, H))
    p['emb_ln_g'] = jnp.ones((1, H), jnp.float32)
    p['emb_ln_b'] = jnp.zeros((1, H), jnp.float32)

    scale = 1.0 / (float(DH) ** 0.5)
    wq = _normal(next(ks), (L, H, H)) * scale        # fold 1/sqrt(DH) into Q
    wk = _normal(next(ks), (L, H, H))
    wv = _normal(next(ks), (L, H, H))
    p['wqkv'] = jnp.concatenate([wq, wk, wv], axis=-1)              # (L, H, 3H)
    p['bqkv'] = jnp.zeros((L, 1, 3 * H), jnp.float32)
    p['wo'] = _normal(next(ks), (L, H, H))
    p['bo'] = jnp.zeros((L, 1, H), jnp.float32)
    p['ln1g'] = jnp.ones((L, 1, H), jnp.float32)
    p['ln1b'] = jnp.zeros((L, 1, H), jnp.float32)
    p['w1'] = _normal(next(ks), (L, H, F))
    p['b1'] = jnp.zeros((L, 1, F), jnp.float32)
    p['w2'] = _normal(next(ks), (L, F, H))
    p['b2'] = jnp.zeros((L, 1, H), jnp.float32)
    p['ln2g'] = jnp.ones((L, 1, H), jnp.float32)
    p['ln2b'] = jnp.zeros((L, 1, H), jnp.float32)

    p['head_wd'] = _normal(next(ks), (H, H))
    p['head_bd'] = jnp.zeros((1, H), jnp.float32)
    p['head_lng'] = jnp.ones((1, H), jnp.float32)    # disc: unused (blended away)
    p['head_lnb'] = jnp.zeros((1, H), jnp.float32)
    if with_gen_head:
        p['head_wp'] = _normal(next(ks), (H, V))
        p['head_bp'] = jnp.zeros((1, V), jnp.float32)
    else:
        # (H,1) RTD projection, zero-padded to a lane-dense (H,V) slab (col 0 real)
        wp = _normal(next(ks), (H, 1))
        p['head_wp'] = jnp.concatenate(
            [wp, jnp.zeros((H, V - 1), jnp.float32)], axis=-1)
        p['head_bp'] = jnp.zeros((1, V), jnp.float32)
    return p


# --------------------------------- model ------------------------------------
class ElectraModelPallas:
    """forward(input_ids) -> (generator_logits (B,S,V), discriminator_logits (B,S,1))"""

    def __init__(self, key):
        kg, kd = jax.random.split(key)
        self.gen_params = init_branch_params(kg, with_gen_head=True)
        self.disc_params = init_branch_params(kd, with_gen_head=False)
        names = LAYER_PARAM_NAMES + HEAD_PARAM_NAMES
        # stack both branches along a leading axis of size 2 (branch grid axis)
        self.kernel_params = {
            n: jnp.stack([self.gen_params[n], self.disc_params[n]], axis=0)
            for n in names}

    def __call__(self, input_ids):
        return electra_forward(input_ids, self.gen_params, self.disc_params,
                               self.kernel_params)


# ---------------------------------- main -------------------------------------
if __name__ == "__main__":
    key = jax.random.PRNGKey(0)
    kmodel, kdata = jax.random.split(key)
    model = ElectraModelPallas(kmodel)
    input_ids = jax.random.randint(kdata, (B, S), 0, V, dtype=jnp.int32)

    gen_out, disc_out = model(input_ids)
    jax.block_until_ready((gen_out, disc_out))

    assert gen_out.shape == (B, S, V), gen_out.shape
    assert disc_out.shape == (B, S, 1), disc_out.shape
    assert bool(jnp.all(jnp.isfinite(gen_out))) and bool(jnp.all(jnp.isfinite(disc_out)))
    print("KERNEL_OK")
</pallas_src>

<mosaic_0001>
module attributes {stable_mosaic.version = 11 : i64} {
  func.func @electra_kernel(%arg0: i32, %arg1: i32, %arg2: memref<1x16x32xf32, #tpu.memory_space<vmem>>, %arg3: memref<1x1x32x96xf32, #tpu.memory_space<vmem>>, %arg4: memref<1x1x1x96xf32, #tpu.memory_space<vmem>>, %arg5: memref<1x1x32x32xf32, #tpu.memory_space<vmem>>, %arg6: memref<1x1x1x32xf32, #tpu.memory_space<vmem>>, %arg7: memref<1x1x1x32xf32, #tpu.memory_space<vmem>>, %arg8: memref<1x1x1x32xf32, #tpu.memory_space<vmem>>, %arg9: memref<1x1x32x64xf32, #tpu.memory_space<vmem>>, %arg10: memref<1x1x1x64xf32, #tpu.memory_space<vmem>>, %arg11: memref<1x1x64x32xf32, #tpu.memory_space<vmem>>, %arg12: memref<1x1x1x32xf32, #tpu.memory_space<vmem>>, %arg13: memref<1x1x1x32xf32, #tpu.memory_space<vmem>>, %arg14: memref<1x1x1x32xf32, #tpu.memory_space<vmem>>, %arg15: memref<1x32x32xf32, #tpu.memory_space<vmem>>, %arg16: memref<1x1x32xf32, #tpu.memory_space<vmem>>, %arg17: memref<1x1x32xf32, #tpu.memory_space<vmem>>, %arg18: memref<1x1x32xf32, #tpu.memory_space<vmem>>, %arg19: memref<1x32x128xf32, #tpu.memory_space<vmem>>, %arg20: memref<1x1x128xf32, #tpu.memory_space<vmem>>, %arg21: memref<1x16x128xf32, #tpu.memory_space<vmem>>, %arg22: memref<16x32xf32, #tpu.memory_space<vmem>>) attributes {dimension_semantics = [#tpu.dimension_semantics<parallel>, #tpu.dimension_semantics<arbitrary>], iteration_bounds = array<i64: 2, 2>, scalar_prefetch = 0 : i64, scratch_operands = 1 : i64, tpu.core_type = #tpu.core_type<tc>, window_params = [{transform_indices = @transform_0, window_bounds = array<i64: 1, 16, 32>}, {transform_indices = @transform_1, window_bounds = array<i64: 1, 1, 32, 96>}, {transform_indices = @transform_2, window_bounds = array<i64: 1, 1, 1, 96>}, {transform_indices = @transform_3, window_bounds = array<i64: 1, 1, 32, 32>}, {transform_indices = @transform_4, window_bounds = array<i64: 1, 1, 1, 32>}, {transform_indices = @transform_5, window_bounds = array<i64: 1, 1, 1, 32>}, {transform_indices = @transform_6, window_bounds = array<i64: 1, 1, 1, 32>}, {transform_indices = @transform_7, window_bounds = array<i64: 1, 1, 32, 64>}, {transform_indices = @transform_8, window_bounds = array<i64: 1, 1, 1, 64>}, {transform_indices = @transform_9, window_bounds = array<i64: 1, 1, 64, 32>}, {transform_indices = @transform_10, window_bounds = array<i64: 1, 1, 1, 32>}, {transform_indices = @transform_11, window_bounds = array<i64: 1, 1, 1, 32>}, {transform_indices = @transform_12, window_bounds = array<i64: 1, 1, 1, 32>}, {transform_indices = @transform_13, window_bounds = array<i64: 1, 32, 32>}, {transform_indices = @transform_14, window_bounds = array<i64: 1, 1, 32>}, {transform_indices = @transform_15, window_bounds = array<i64: 1, 1, 32>}, {transform_indices = @transform_16, window_bounds = array<i64: 1, 1, 32>}, {transform_indices = @transform_17, window_bounds = array<i64: 1, 32, 128>}, {transform_indices = @transform_18, window_bounds = array<i64: 1, 1, 128>}, {transform_indices = @transform_19, window_bounds = array<i64: 1, 16, 128>}]} {
    %c0_i32 = arith.constant 0 : i32
    %0 = arith.cmpi eq, %arg1, %c0_i32 : i32
    %1 = arith.extui %0 : i1 to i32
    %c0_i32_0 = arith.constant 0 : i32
    %2 = arith.cmpi ne, %1, %c0_i32_0 : i32
    scf.if %2 {
      %c0_74 = arith.constant 0 : index
      %c0_75 = arith.constant 0 : index
      %c0_76 = arith.constant 0 : index
      %152 = vector.load %arg2[%c0_74, %c0_75, %c0_76] : memref<1x16x32xf32, #tpu.memory_space<vmem>>, vector<1x16x32xf32>
      %153 = vector.shape_cast %152 : vector<1x16x32xf32> to vector<16x32xf32>
      %c0_77 = arith.constant 0 : index
      %c0_78 = arith.constant 0 : index
      %154 = vector.load %arg22[%c0_77, %c0_78] : memref<16x32xf32, #tpu.memory_space<vmem>>, vector<16x32xf32>
      tpu.vector_store %arg22[%c0_77, %c0_78], %153 {strides = array<i32>} : memref<16x32xf32, #tpu.memory_space<vmem>>, vector<16x32xf32>,
    } else {
    }
    %c0 = arith.constant 0 : index
    %c0_1 = arith.constant 0 : index
    %3 = vector.load %arg22[%c0, %c0_1] : memref<16x32xf32, #tpu.memory_space<vmem>>, vector<16x32xf32>
    %c0_2 = arith.constant 0 : index
    %c0_3 = arith.constant 0 : index
    %c0_4 = arith.constant 0 : index
    %c0_5 = arith.constant 0 : index
    %4 = vector.load %arg3[%c0_2, %c0_3, %c0_4, %c0_5] : memref<1x1x32x96xf32, #tpu.memory_space<vmem>>, vector<1x1x32x96xf32>
    %5 = vector.shape_cast %4 : vector<1x1x32x96xf32> to vector<32x96xf32>
    %cst = arith.constant dense<0.000000e+00> : vector<16x96xf32>
    %6 = tpu.matmul %3, %5, %cst {dimension_numbers = #tpu.dot_dimension_numbers<[1], [0], [0], [1], [0, 0, 1, 1], [], []>} : vector<16x32xf32>, vector<32x96xf32>, vector<16x96xf32> -> vector<16x96xf32>
    %c0_6 = arith.constant 0 : index
    %c0_7 = arith.constant 0 : index
    %c0_8 = arith.constant 0 : index
    %c0_9 = arith.constant 0 : index
    %7 = vector.load %arg4[%c0_6, %c0_7, %c0_8, %c0_9] : memref<1x1x1x96xf32, #tpu.memory_space<vmem>>, vector<1x1x1x96xf32>
    %8 = vector.shape_cast %7 : vector<1x1x1x96xf32> to vector<1x96xf32>
    %9 = vector.broadcast %8 : vector<1x96xf32> to vector<16x96xf32>
    %10 = arith.addf %6, %9 : vector<16x96xf32>
    %11 = vector.extract_strided_slice %10 {offsets = [0, 0], sizes = [16, 8], strides = [1, 1]} : vector<16x96xf32> to vector<16x8xf32>
    %12 = vector.shape_cast %11 : vector<16x8xf32> to vector<2x8x8xf32>
    %13 = vector.extract_strided_slice %10 {offsets = [0, 8], sizes = [16, 8], strides = [1, 1]} : vector<16x96xf32> to vector<16x8xf32>
    %14 = vector.shape_cast %13 : vector<16x8xf32> to vector<2x8x8xf32>
    %15 = vector.extract_strided_slice %10 {offsets = [0, 16], sizes = [16, 8], strides = [1, 1]} : vector<16x96xf32> to vector<16x8xf32>
    %16 = vector.shape_cast %15 : vector<16x8xf32> to vector<2x8x8xf32>
    %17 = vector.extract_strided_slice %10 {offsets = [0, 24], sizes = [16, 8], strides = [1, 1]} : vector<16x96xf32> to vector<16x8xf32>
    %18 = vector.shape_cast %17 : vector<16x8xf32> to vector<2x8x8xf32>
    %19 = tpu.concatenate %12, %14, %16, %18 in 0 : vector<2x8x8xf32>, vector<2x8x8xf32>, vector<2x8x8xf32>, vector<2x8x8xf32> -> vector<8x8x8xf32>
    %20 = vector.extract_strided_slice %10 {offsets = [0, 32], sizes = [16, 8], strides = [1, 1]} : vector<16x96xf32> to vector<16x8xf32>
    %21 = vector.shape_cast %20 : vector<16x8xf32> to vector<2x8x8xf32>
    %22 = vector.extract_strided_slice %10 {offsets = [0, 40], sizes = [16, 8], strides = [1, 1]} : vector<16x96xf32> to vector<16x8xf32>
    %23 = vector.shape_cast %22 : vector<16x8xf32> to vector<2x8x8xf32>
    %24 = vector.extract_strided_slice %10 {offsets = [0, 48], sizes = [16, 8], strides = [1, 1]} : vector<16x96xf32> to vector<16x8xf32>
    %25 = vector.shape_cast %24 : vector<16x8xf32> to vector<2x8x8xf32>
    %26 = vector.extract_strided_slice %10 {offsets = [0, 56], sizes = [16, 8], strides = [1, 1]} : vector<16x96xf32> to vector<16x8xf32>
    %27 = vector.shape_cast %26 : vector<16x8xf32> to vector<2x8x8xf32>
    %28 = tpu.concatenate %21, %23, %25, %27 in 0 : vector<2x8x8xf32>, vector<2x8x8xf32>, vector<2x8x8xf32>, vector<2x8x8xf32> -> vector<8x8x8xf32>
    %29 = vector.extract_strided_slice %10 {offsets = [0, 64], sizes = [16, 8], strides = [1, 1]} : vector<16x96xf32> to vector<16x8xf32>
    %30 = vector.shape_cast %29 : vector<16x8xf32> to vector<2x8x8xf32>
    %31 = vector.extract_strided_slice %10 {offsets = [0, 72], sizes = [16, 8], strides = [1, 1]} : vector<16x96xf32> to vector<16x8xf32>
    %32 = vector.shape_cast %31 : vector<16x8xf32> to vector<2x8x8xf32>
    %33 = vector.extract_strided_slice %10 {offsets = [0, 80], sizes = [16, 8], strides = [1, 1]} : vector<16x96xf32> to vector<16x8xf32>
    %34 = vector.shape_cast %33 : vector<16x8xf32> to vector<2x8x8xf32>
    %35 = vector.extract_strided_slice %10 {offsets = [0, 88], sizes = [16, 8], strides = [1, 1]} : vector<16x96xf32> to vector<16x8xf32>
    %36 = vector.shape_cast %35 : vector<16x8xf32> to vector<2x8x8xf32>
    %37 = tpu.concatenate %30, %32, %34, %36 in 0 : vector<2x8x8xf32>, vector<2x8x8xf32>, vector<2x8x8xf32>, vector<2x8x8xf32> -> vector<8x8x8xf32>
    "tpu.trace_start"() <{level = 10 : i32, message = "bqd,bkd->bqk"}> : () -> ()
    %cst_10 = arith.constant dense<0.000000e+00> : vector<8x8x8xf32>
    %38 = tpu.matmul %19, %28, %cst_10 {dimension_numbers = #tpu.dot_dimension_numbers<[2], [2], [1], [1], [0, 0, 0, 1, 1, 1], [0], [0]>} : vector<8x8x8xf32>, vector<8x8x8xf32>, vector<8x8x8xf32> -> vector<8x8x8xf32>
    "tpu.trace_stop"() : () -> ()
    %cst_11 = arith.constant dense<0xFF800000> : vector<8x8xf32>
    %39 = vector.multi_reduction <maximumf>, %38, %cst_11 [2] : vector<8x8x8xf32> to vector<8x8xf32>
    %40 = vector.shape_cast %39 : vector<8x8xf32> to vector<8x8x1xf32>
    %41 = vector.broadcast %40 : vector<8x8x1xf32> to vector<8x8x8xf32>
    %42 = arith.subf %38, %41 : vector<8x8x8xf32>
    %43 = math.exp %42 : vector<8x8x8xf32>
    %cst_12 = arith.constant dense<0.000000e+00> : vector<8x8xf32>
    %44 = vector.multi_reduction <add>, %43, %cst_12 [2] : vector<8x8x8xf32> to vector<8x8xf32>
    %45 = vector.shape_cast %44 : vector<8x8xf32> to vector<8x8x1xf32>
    %46 = tpu.reciprocal %45 {approx = true} : vector<8x8x1xf32> -> vector<8x8x1xf32>
    %47 = vector.broadcast %46 : vector<8x8x1xf32> to vector<8x8x8xf32>
    %48 = arith.mulf %43, %47 : vector<8x8x8xf32>
    "tpu.trace_start"() <{level = 10 : i32, message = "bqk,bkd->bqd"}> : () -> ()
    %cst_13 = arith.constant dense<0.000000e+00> : vector<8x8x8xf32>
    %49 = tpu.matmul %48, %37, %cst_13 {dimension_numbers = #tpu.dot_dimension_numbers<[2], [1], [1], [2], [0, 0, 0, 1, 1, 2], [0], [0]>} : vector<8x8x8xf32>, vector<8x8x8xf32>, vector<8x8x8xf32> -> vector<8x8x8xf32>
    "tpu.trace_stop"() : () -> ()
    %50 = vector.shape_cast %49 : vector<8x8x8xf32> to vector<4x16x8xf32>
    %51 = vector.extract_strided_slice %50 {offsets = [0, 0, 0], sizes = [1, 16, 8], strides = [1, 1, 1]} : vector<4x16x8xf32> to vector<1x16x8xf32>
    %52 = vector.shape_cast %51 : vector<1x16x8xf32> to vector<16x8xf32>
    %53 = vector.extract_strided_slice %50 {offsets = [1, 0, 0], sizes = [1, 16, 8], strides = [1, 1, 1]} : vector<4x16x8xf32> to vector<1x16x8xf32>
    %54 = vector.shape_cast %53 : vector<1x16x8xf32> to vector<16x8xf32>
    %55 = vector.extract_strided_slice %50 {offsets = [2, 0, 0], sizes = [1, 16, 8], strides = [1, 1, 1]} : vector<4x16x8xf32> to vector<1x16x8xf32>
    %56 = vector.shape_cast %55 : vector<1x16x8xf32> to vector<16x8xf32>
    %57 = vector.extract_strided_slice %50 {offsets = [3, 0, 0], sizes = [1, 16, 8], strides = [1, 1, 1]} : vector<4x16x8xf32> to vector<1x16x8xf32>
    %58 = vector.shape_cast %57 : vector<1x16x8xf32> to vector<16x8xf32>
    %59 = tpu.concatenate %52, %54, %56, %58 in 1 : vector<16x8xf32>, vector<16x8xf32>, vector<16x8xf32>, vector<16x8xf32> -> vector<16x32xf32>
    %c0_14 = arith.constant 0 : index
    %c0_15 = arith.constant 0 : index
    %c0_16 = arith.constant 0 : index
    %c0_17 = arith.constant 0 : index
    %60 = vector.load %arg5[%c0_14, %c0_15, %c0_16, %c0_17] : memref<1x1x32x32xf32, #tpu.memory_space<vmem>>, vector<1x1x32x32xf32>
    %61 = vector.shape_cast %60 : vector<1x1x32x32xf32> to vector<32x32xf32>
    %cst_18 = arith.constant dense<0.000000e+00> : vector<16x32xf32>
    %62 = tpu.matmul %59, %61, %cst_18 {dimension_numbers = #tpu.dot_dimension_numbers<[1], [0], [0], [1], [0, 0, 1, 1], [], []>} : vector<16x32xf32>, vector<32x32xf32>, vector<16x32xf32> -> vector<16x32xf32>
    %c0_19 = arith.constant 0 : index
    %c0_20 = arith.constant 0 : index
    %c0_21 = arith.constant 0 : index
    %c0_22 = arith.constant 0 : index
    %63 = vector.load %arg6[%c0_19, %c0_20, %c0_21, %c0_22] : memref<1x1x1x32xf32, #tpu.memory_space<vmem>>, vector<1x1x1x32xf32>
    %64 = vector.shape_cast %63 : vector<1x1x1x32xf32> to vector<1x32xf32>
    %65 = vector.broadcast %64 : vector<1x32xf32> to vector<16x32xf32>
    %66 = arith.addf %62, %65 : vector<16x32xf32>
    %67 = arith.addf %3, %66 : vector<16x32xf32>
    %c0_23 = arith.constant 0 : index
    %c0_24 = arith.constant 0 : index
    %c0_25 = arith.constant 0 : index
    %c0_26 = arith.constant 0 : index
    %68 = vector.load %arg7[%c0_23, %c0_24, %c0_25, %c0_26] : memref<1x1x1x32xf32, #tpu.memory_space<vmem>>, vector<1x1x1x32xf32>
    %69 = vector.shape_cast %68 : vector<1x1x1x32xf32> to vector<1x32xf32>
    %c0_27 = arith.constant 0 : index
    %c0_28 = arith.constant 0 : index
    %c0_29 = arith.constant 0 : index
    %c0_30 = arith.constant 0 : index
    %70 = vector.load %arg8[%c0_27, %c0_28, %c0_29, %c0_30] : memref<1x1x1x32xf32, #tpu.memory_space<vmem>>, vector<1x1x1x32xf32>
    %71 = vector.shape_cast %70 : vector<1x1x1x32xf32> to vector<1x32xf32>
    %cst_31 = arith.constant dense<0.000000e+00> : vector<16xf32>
    %72 = vector.multi_reduction <add>, %67, %cst_31 [1] : vector<16x32xf32> to vector<16xf32>
    %73 = vector.shape_cast %72 : vector<16xf32> to vector<16x1xf32>
    %cst_32 = arith.constant 3.200000e+01 : f32
    %74 = vector.broadcast %cst_32 : f32 to vector<16x1xf32>
    %75 = arith.divf %73, %74 : vector<16x1xf32>
    %76 = vector.broadcast %75 : vector<16x1xf32> to vector<16x32xf32>
    %77 = arith.subf %67, %76 : vector<16x32xf32>
    %78 = arith.mulf %77, %77 : vector<16x32xf32>
    %cst_33 = arith.constant dense<0.000000e+00> : vector<16xf32>
    %79 = vector.multi_reduction <add>, %78, %cst_33 [1] : vector<16x32xf32> to vector<16xf32>
    %80 = vector.shape_cast %79 : vector<16xf32> to vector<16x1xf32>
    %cst_34 = arith.constant 3.200000e+01 : f32
    %81 = vector.broadcast %cst_34 : f32 to vector<16x1xf32>
    %82 = arith.divf %80, %81 : vector<16x1xf32>
    %83 = vector.broadcast %75 : vector<16x1xf32> to vector<16x32xf32>
    %84 = arith.subf %67, %83 : vector<16x32xf32>
    %cst_35 = arith.constant 9.99999996E-13 : f32
    %85 = vector.broadcast %cst_35 : f32 to vector<16x1xf32>
    %86 = arith.addf %82, %85 : vector<16x1xf32>
    %87 = math.rsqrt %86 : vector<16x1xf32>
    %88 = vector.broadcast %87 : vector<16x1xf32> to vector<16x32xf32>
    %89 = arith.mulf %84, %88 : vector<16x32xf32>
    %90 = vector.broadcast %69 : vector<1x32xf32> to vector<16x32xf32>
    %91 = arith.mulf %89, %90 : vector<16x32xf32>
    %92 = vector.broadcast %71 : vector<1x32xf32> to vector<16x32xf32>
    %93 = arith.addf %91, %92 : vector<16x32xf32>
    %c0_36 = arith.constant 0 : index
    %c0_37 = arith.constant 0 : index
    %c0_38 = arith.constant 0 : index
    %c0_39 = arith.constant 0 : index
    %94 = vector.load %arg9[%c0_36, %c0_37, %c0_38, %c0_39] : memref<1x1x32x64xf32, #tpu.memory_space<vmem>>, vector<1x1x32x64xf32>
    %95 = vector.shape_cast %94 : vector<1x1x32x64xf32> to vector<32x64xf32>
    %cst_40 = arith.constant dense<0.000000e+00> : vector<16x64xf32>
    %96 = tpu.matmul %93, %95, %cst_40 {dimension_numbers = #tpu.dot_dimension_numbers<[1], [0], [0], [1], [0, 0, 1, 1], [], []>} : vector<16x32xf32>, vector<32x64xf32>, vector<16x64xf32> -> vector<16x64xf32>
    %c0_41 = arith.constant 0 : index
    %c0_42 = arith.constant 0 : index
    %c0_43 = arith.constant 0 : index
    %c0_44 = arith.constant 0 : index
    %97 = vector.load %arg10[%c0_41, %c0_42, %c0_43, %c0_44] : memref<1x1x1x64xf32, #tpu.memory_space<vmem>>, vector<1x1x1x64xf32>
    %98 = vector.shape_cast %97 : vector<1x1x1x64xf32> to vector<1x64xf32>
    %99 = vector.broadcast %98 : vector<1x64xf32> to vector<16x64xf32>
    %100 = arith.addf %96, %99 : vector<16x64xf32>
    %101 = arith.mulf %100, %100 : vector<16x64xf32>
    %102 = arith.mulf %100, %101 : vector<16x64xf32>
    %cst_45 = arith.constant 4.471500e-02 : f32
    %103 = vector.broadcast %cst_45 : f32 to vector<16x64xf32>
    %104 = arith.mulf %103, %102 : vector<16x64xf32>
    %105 = arith.addf %100, %104 : vector<16x64xf32>
    %cst_46 = arith.constant 0.797884583 : f32
    %106 = vector.broadcast %cst_46 : f32 to vector<16x64xf32>
    %107 = arith.mulf %106, %105 : vector<16x64xf32>
    %108 = math.tanh %107 : vector<16x64xf32>
    %cst_47 = arith.constant 1.000000e+00 : f32
    %109 = vector.broadcast %cst_47 : f32 to vector<16x64xf32>
    %110 = arith.addf %109, %108 : vector<16x64xf32>
    %cst_48 = arith.constant 5.000000e-01 : f32
    %111 = vector.broadcast %cst_48 : f32 to vector<16x64xf32>
    %112 = arith.mulf %111, %110 : vector<16x64xf32>
    %113 = arith.mulf %100, %112 : vector<16x64xf32>
    %c0_49 = arith.constant 0 : index
    %c0_50 = arith.constant 0 : index
    %c0_51 = arith.constant 0 : index
    %c0_52 = arith.constant 0 : index
    %114 = vector.load %arg11[%c0_49, %c0_50, %c0_51, %c0_52] : memref<1x1x64x32xf32, #tpu.memory_space<vmem>>, vector<1x1x64x32xf32>
    %115 = vector.shape_cast %114 : vector<1x1x64x32xf32> to vector<64x32xf32>
    %cst_53 = arith.constant dense<0.000000e+00> : vector<16x32xf32>
    %116 = tpu.matmul %113, %115, %cst_53 {dimension_numbers = #tpu.dot_dimension_numbers<[1], [0], [0], [1], [0, 0, 1, 1], [], []>} : vector<16x64xf32>, vector<64x32xf32>, vector<16x32xf32> -> vector<16x32xf32>
    %c0_54 = arith.constant 0 : index
    %c0_55 = arith.constant 0 : index
    %c0_56 = arith.constant 0 : index
    %c0_57 = arith.constant 0 : index
    %117 = vector.load %arg12[%c0_54, %c0_55, %c0_56, %c0_57] : memref<1x1x1x32xf32, #tpu.memory_space<vmem>>, vector<1x1x1x32xf32>
    %118 = vector.shape_cast %117 : vector<1x1x1x32xf32> to vector<1x32xf32>
    %119 = vector.broadcast %118 : vector<1x32xf32> to vector<16x32xf32>
    %120 = arith.addf %116, %119 : vector<16x32xf32>
    %121 = arith.addf %93, %120 : vector<16x32xf32>
    %c0_58 = arith.constant 0 : index
    %c0_59 = arith.constant 0 : index
    %c0_60 = arith.constant 0 : index
    %c0_61 = arith.constant 0 : index
    %122 = vector.load %arg13[%c0_58, %c0_59, %c0_60, %c0_61] : memref<1x1x1x32xf32, #tpu.memory_space<vmem>>, vector<1x1x1x32xf32>
    %123 = vector.shape_cast %122 : vector<1x1x1x32xf32> to vector<1x32xf32>
    %c0_62 = arith.constant 0 : index
    %c0_63 = arith.constant 0 : index
    %c0_64 = arith.constant 0 : index
    %c0_65 = arith.constant 0 : index
    %124 = vector.load %arg14[%c0_62, %c0_63, %c0_64, %c0_65] : memref<1x1x1x32xf32, #tpu.memory_space<vmem>>, vector<1x1x1x32xf32>
    %125 = vector.shape_cast %124 : vector<1x1x1x32xf32> to vector<1x32xf32>
    %cst_66 = arith.constant dense<0.000000e+00> : vector<16xf32>
    %126 = vector.multi_reduction <add>, %121, %cst_66 [1] : vector<16x32xf32> to vector<16xf32>
    %127 = vector.shape_cast %126 : vector<16xf32> to vector<16x1xf32>
    %cst_67 = arith.constant 3.200000e+01 : f32
    %128 = vector.broadcast %cst_67 : f32 to vector<16x1xf32>
    %129 = arith.divf %127, %128 : vector<16x1xf32>
    %130 = vector.broadcast %129 : vector<16x1xf32> to vector<16x32xf32>
    %131 = arith.subf %121, %130 : vector<16x32xf32>
    %132 = arith.mulf %131, %131 : vector<16x32xf32>
    %cst_68 = arith.constant dense<0.000000e+00> : vector<16xf32>
    %133 = vector.multi_reduction <add>, %132, %cst_68 [1] : vector<16x32xf32> to vector<16xf32>
    %134 = vector.shape_cast %133 : vector<16xf32> to vector<16x1xf32>
    %cst_69 = arith.constant 3.200000e+01 : f32
    %135 = vector.broadcast %cst_69 : f32 to vector<16x1xf32>
    %136 = arith.divf %134, %135 : vector<16x1xf32>
    %137 = vector.broadcast %129 : vector<16x1xf32> to vector<16x32xf32>
    %138 = arith.subf %121, %137 : vector<16x32xf32>
    %cst_70 = arith.constant 9.99999996E-13 : f32
    %139 = vector.broadcast %cst_70 : f32 to vector<16x1xf32>
    %140 = arith.addf %136, %139 : vector<16x1xf32>
    %141 = math.rsqrt %140 : vector<16x1xf32>
    %142 = vector.broadcast %141 : vector<16x1xf32> to vector<16x32xf32>
    %143 = arith.mulf %138, %142 : vector<16x32xf32>
    %144 = vector.broadcast %123 : vector<1x32xf32> to vector<16x32xf32>
    %145 = arith.mulf %143, %144 : vector<16x32xf32>
    %146 = vector.broadcast %125 : vector<1x32xf32> to vector<16x32xf32>
    %147 = arith.addf %145, %146 : vector<16x32xf32>
    %c0_71 = arith.constant 0 : index
    %c0_72 = arith.constant 0 : index
    %148 = vector.load %arg22[%c0_71, %c0_72] : memref<16x32xf32, #tpu.memory_space<vmem>>, vector<16x32xf32>
    tpu.vector_store %arg22[%c0_71, %c0_72], %147 {strides = array<i32>} : memref<16x32xf32, #tpu.memory_space<vmem>>, vector<16x32xf32>,
    %c1_i32 = arith.constant 1 : i32
    %149 = arith.cmpi eq, %arg1, %c1_i32 : i32
    %150 = arith.extui %149 : i1 to i32
    %c0_i32_73 = arith.constant 0 : i32
    %151 = arith.cmpi ne, %150, %c0_i32_73 : i32
    scf.if %151 {
      %c0_74 = arith.constant 0 : index
      %c0_75 = arith.constant 0 : index
      %c0_76 = arith.constant 0 : index
      %152 = vector.load %arg15[%c0_74, %c0_75, %c0_76] : memref<1x32x32xf32, #tpu.memory_space<vmem>>, vector<1x32x32xf32>
      %153 = vector.shape_cast %152 : vector<1x32x32xf32> to vector<32x32xf32>
      %cst_77 = arith.constant dense<0.000000e+00> : vector<16x32xf32>
      %154 = tpu.matmul %147, %153, %cst_77 {dimension_numbers = #tpu.dot_dimension_numbers<[1], [0], [0], [1], [0, 0, 1, 1], [], []>} : vector<16x32xf32>, vector<32x32xf32>, vector<16x32xf32> -> vector<16x32xf32>
      %c0_78 = arith.constant 0 : index
      %c0_79 = arith.constant 0 : index
      %c0_80 = arith.constant 0 : index
      %155 = vector.load %arg16[%c0_78, %c0_79, %c0_80] : memref<1x1x32xf32, #tpu.memory_space<vmem>>, vector<1x1x32xf32>
      %156 = vector.shape_cast %155 : vector<1x1x32xf32> to vector<1x32xf32>
      %157 = vector.broadcast %156 : vector<1x32xf32> to vector<16x32xf32>
      %158 = arith.addf %154, %157 : vector<16x32xf32>
      %159 = arith.mulf %158, %158 : vector<16x32xf32>
      %160 = arith.mulf %158, %159 : vector<16x32xf32>
      %cst_81 = arith.constant 4.471500e-02 : f32
      %161 = vector.broadcast %cst_81 : f32 to vector<16x32xf32>
      %162 = arith.mulf %161, %160 : vector<16x32xf32>
      %163 = arith.addf %158, %162 : vector<16x32xf32>
      %cst_82 = arith.constant 0.797884583 : f32
      %164 = vector.broadcast %cst_82 : f32 to vector<16x32xf32>
      %165 = arith.mulf %164, %163 : vector<16x32xf32>
      %166 = math.tanh %165 : vector<16x32xf32>
      %cst_83 = arith.constant 1.000000e+00 : f32
      %167 = vector.broadcast %cst_83 : f32 to vector<16x32xf32>
      %168 = arith.addf %167, %166 : vector<16x32xf32>
      %cst_84 = arith.constant 5.000000e-01 : f32
      %169 = vector.broadcast %cst_84 : f32 to vector<16x32xf32>
      %170 = arith.mulf %169, %168 : vector<16x32xf32>
      %171 = arith.mulf %158, %170 : vector<16x32xf32>
      %c0_85 = arith.constant 0 : index
      %c0_86 = arith.constant 0 : index
      %c0_87 = arith.constant 0 : index
      %172 = vector.load %arg17[%c0_85, %c0_86, %c0_87] : memref<1x1x32xf32, #tpu.memory_space<vmem>>, vector<1x1x32xf32>
      %173 = vector.shape_cast %172 : vector<1x1x32xf32> to vector<1x32xf32>
      %c0_88 = arith.constant 0 : index
      %c0_89 = arith.constant 0 : index
      %c0_90 = arith.constant 0 : index
      %174 = vector.load %arg18[%c0_88, %c0_89, %c0_90] : memref<1x1x32xf32, #tpu.memory_space<vmem>>, vector<1x1x32xf32>
      %175 = vector.shape_cast %174 : vector<1x1x32xf32> to vector<1x32xf32>
      %cst_91 = arith.constant dense<0.000000e+00> : vector<16xf32>
      %176 = vector.multi_reduction <add>, %171, %cst_91 [1] : vector<16x32xf32> to vector<16xf32>
      %177 = vector.shape_cast %176 : vector<16xf32> to vector<16x1xf32>
      %cst_92 = arith.constant 3.200000e+01 : f32
      %178 = vector.broadcast %cst_92 : f32 to vector<16x1xf32>
      %179 = arith.divf %177, %178 : vector<16x1xf32>
      %180 = vector.broadcast %179 : vector<16x1xf32> to vector<16x32xf32>
      %181 = arith.subf %171, %180 : vector<16x32xf32>
      %182 = arith.mulf %181, %181 : vector<16x32xf32>
      %cst_93 = arith.constant dense<0.000000e+00> : vector<16xf32>
      %183 = vector.multi_reduction <add>, %182, %cst_93 [1] : vector<16x32xf32> to vector<16xf32>
      %184 = vector.shape_cast %183 : vector<16xf32> to vector<16x1xf32>
      %cst_94 = arith.constant 3.200000e+01 : f32
      %185 = vector.broadcast %cst_94 : f32 to vector<16x1xf32>
      %186 = arith.divf %184, %185 : vector<16x1xf32>
      %187 = vector.broadcast %179 : vector<16x1xf32> to vector<16x32xf32>
      %188 = arith.subf %171, %187 : vector<16x32xf32>
      %cst_95 = arith.constant 9.99999996E-13 : f32
      %189 = vector.broadcast %cst_95 : f32 to vector<16x1xf32>
      %190 = arith.addf %186, %189 : vector<16x1xf32>
      %191 = math.rsqrt %190 : vector<16x1xf32>
      %192 = vector.broadcast %191 : vector<16x1xf32> to vector<16x32xf32>
      %193 = arith.mulf %188, %192 : vector<16x32xf32>
      %194 = vector.broadcast %173 : vector<1x32xf32> to vector<16x32xf32>
      %195 = arith.mulf %193, %194 : vector<16x32xf32>
      %196 = vector.broadcast %175 : vector<1x32xf32> to vector<16x32xf32>
      %197 = arith.addf %195, %196 : vector<16x32xf32>
      %c0_i32_96 = arith.constant 0 : i32
      %198 = arith.cmpi eq, %arg0, %c0_i32_96 : i32
      %199 = arith.extui %198 : i1 to i32
      %200 = arith.sitofp %199 : i32 to f32
      %201 = vector.broadcast %200 : f32 to vector<16x32xf32>
      %202 = arith.mulf %201, %197 : vector<16x32xf32>
      %cst_97 = arith.constant 1.000000e+00 : f32
      %203 = arith.subf %cst_97, %200 : f32
      %204 = vector.broadcast %203 : f32 to vector<16x32xf32>
      %205 = arith.mulf %204, %171 : vector<16x32xf32>
      %206 = arith.addf %202, %205 : vector<16x32xf32>
      %c0_98 = arith.constant 0 : index
      %c0_99 = arith.constant 0 : index
      %c0_100 = arith.constant 0 : index
      %207 = vector.load %arg19[%c0_98, %c0_99, %c0_100] : memref<1x32x128xf32, #tpu.memory_space<vmem>>, vector<1x32x128xf32>
      %208 = vector.shape_cast %207 : vector<1x32x128xf32> to vector<32x128xf32>
      %cst_101 = arith.constant dense<0.000000e+00> : vector<16x128xf32>
      %209 = tpu.matmul %206, %208, %cst_101 {dimension_numbers = #tpu.dot_dimension_numbers<[1], [0], [0], [1], [0, 0, 1, 1], [], []>} : vector<16x32xf32>, vector<32x128xf32>, vector<16x128xf32> -> vector<16x128xf32>
      %c0_102 = arith.constant 0 : index
      %c0_103 = arith.constant 0 : index
      %c0_104 = arith.constant 0 : index
      %210 = vector.load %arg20[%c0_102, %c0_103, %c0_104] : memref<1x1x128xf32, #tpu.memory_space<vmem>>, vector<1x1x128xf32>
      %211 = vector.shape_cast %210 : vector<1x1x128xf32> to vector<1x128xf32>
      %212 = vector.broadcast %211 : vector<1x128xf32> to vector<16x128xf32>
      %213 = arith.addf %209, %212 : vector<16x128xf32>
      %c0_105 = arith.constant 0 : index
      %c0_106 = arith.constant 0 : index
      %c0_107 = arith.constant 0 : index
      %214 = vector.load %arg21[%c0_105, %c0_106, %c0_107] : memref<1x16x128xf32, #tpu.memory_space<vmem>>, vector<1x16x128xf32>
      %215 = vector.shape_cast %214 : vector<1x16x128xf32> to vector<16x128xf32>
      %216 = vector.shape_cast %213 : vector<16x128xf32> to vector<1x16x128xf32>
      tpu.vector_store %arg21[%c0_105, %c0_106, %c0_107], %216 {strides = array<i32>} : memref<1x16x128xf32, #tpu.memory_space<vmem>>, vector<1x16x128xf32>,
    } else {
    }
    return
  }
  func.func @transform_0(%arg0: i32, %arg1: i32) -> (i32, i32, i32) {
    %c0_i32 = arith.constant 0 : i32
    %c0_i32_0 = arith.constant 0 : i32
    %c0_i32_1 = arith.constant 0 : i32
    return %arg0, %c0_i32, %c0_i32_0 : i32, i32, i32
  }
  func.func @transform_1(%arg0: i32, %arg1: i32) -> (i32, i32, i32, i32) {
    %c0_i32 = arith.constant 0 : i32
    %c0_i32_0 = arith.constant 0 : i32
    %c0_i32_1 = arith.constant 0 : i32
    return %arg0, %arg1, %c0_i32, %c0_i32_0 : i32, i32, i32, i32
  }
  func.func @transform_2(%arg0: i32, %arg1: i32) -> (i32, i32, i32, i32) {
    %c0_i32 = arith.constant 0 : i32
    %c0_i32_0 = arith.constant 0 : i32
    %c0_i32_1 = arith.constant 0 : i32
    return %arg0, %arg1, %c0_i32, %c0_i32_0 : i32, i32, i32, i32
  }
  func.func @transform_3(%arg0: i32, %arg1: i32) -> (i32, i32, i32, i32) {
    %c0_i32 = arith.constant 0 : i32
    %c0_i32_0 = arith.constant 0 : i32
    %c0_i32_1 = arith.constant 0 : i32
    return %arg0, %arg1, %c0_i32, %c0_i32_0 : i32, i32, i32, i32
  }
  func.func @transform_4(%arg0: i32, %arg1: i32) -> (i32, i32, i32, i32) {
    %c0_i32 = arith.constant 0 : i32
    %c0_i32_0 = arith.constant 0 : i32
    %c0_i32_1 = arith.constant 0 : i32
    return %arg0, %arg1, %c0_i32, %c0_i32_0 : i32, i32, i32, i32
  }
  func.func @transform_5(%arg0: i32, %arg1: i32) -> (i32, i32, i32, i32) {
    %c0_i32 = arith.constant 0 : i32
    %c0_i32_0 = arith.constant 0 : i32
    %c0_i32_1 = arith.constant 0 : i32
    return %arg0, %arg1, %c0_i32, %c0_i32_0 : i32, i32, i32, i32
  }
  func.func @transform_6(%arg0: i32, %arg1: i32) -> (i32, i32, i32, i32) {
    %c0_i32 = arith.constant 0 : i32
    %c0_i32_0 = arith.constant 0 : i32
    %c0_i32_1 = arith.constant 0 : i32
    return %arg0, %arg1, %c0_i32, %c0_i32_0 : i32, i32, i32, i32
  }
  func.func @transform_7(%arg0: i32, %arg1: i32) -> (i32, i32, i32, i32) {
    %c0_i32 = arith.constant 0 : i32
    %c0_i32_0 = arith.constant 0 : i32
    %c0_i32_1 = arith.constant 0 : i32
    return %arg0, %arg1, %c0_i32, %c0_i32_0 : i32, i32, i32, i32
  }
  func.func @transform_8(%arg0: i32, %arg1: i32) -> (i32, i32, i32, i32) {
    %c0_i32 = arith.constant 0 : i32
    %c0_i32_0 = arith.constant 0 : i32
    %c0_i32_1 = arith.constant 0 : i32
    return %arg0, %arg1, %c0_i32, %c0_i32_0 : i32, i32, i32, i32
  }
  func.func @transform_9(%arg0: i32, %arg1: i32) -> (i32, i32, i32, i32) {
    %c0_i32 = arith.constant 0 : i32
    %c0_i32_0 = arith.constant 0 : i32
    %c0_i32_1 = arith.constant 0 : i32
    return %arg0, %arg1, %c0_i32, %c0_i32_0 : i32, i32, i32, i32
  }
  func.func @transform_10(%arg0: i32, %arg1: i32) -> (i32, i32, i32, i32) {
    %c0_i32 = arith.constant 0 : i32
    %c0_i32_0 = arith.constant 0 : i32
    %c0_i32_1 = arith.constant 0 : i32
    return %arg0, %arg1, %c0_i32, %c0_i32_0 : i32, i32, i32, i32
  }
  func.func @transform_11(%arg0: i32, %arg1: i32) -> (i32, i32, i32, i32) {
    %c0_i32 = arith.constant 0 : i32
    %c0_i32_0 = arith.constant 0 : i32
    %c0_i32_1 = arith.constant 0 : i32
    return %arg0, %arg1, %c0_i32, %c0_i32_0 : i32, i32, i32, i32
  }
  func.func @transform_12(%arg0: i32, %arg1: i32) -> (i32, i32, i32, i32) {
    %c0_i32 = arith.constant 0 : i32
    %c0_i32_0 = arith.constant 0 : i32
    %c0_i32_1 = arith.constant 0 : i32
    return %arg0, %arg1, %c0_i32, %c0_i32_0 : i32, i32, i32, i32
  }
  func.func @transform_13(%arg0: i32, %arg1: i32) -> (i32, i32, i32) {
    %c0_i32 = arith.constant 0 : i32
    %c0_i32_0 = arith.constant 0 : i32
    %c0_i32_1 = arith.constant 0 : i32
    return %arg0, %c0_i32, %c0_i32_0 : i32, i32, i32
  }
  func.func @transform_14(%arg0: i32, %arg1: i32) -> (i32, i32, i32) {
    %c0_i32 = arith.constant 0 : i32
    %c0_i32_0 = arith.constant 0 : i32
    %c0_i32_1 = arith.constant 0 : i32
    return %arg0, %c0_i32, %c0_i32_0 : i32, i32, i32
  }
  func.func @transform_15(%arg0: i32, %arg1: i32) -> (i32, i32, i32) {
    %c0_i32 = arith.constant 0 : i32
    %c0_i32_0 = arith.constant 0 : i32
    %c0_i32_1 = arith.constant 0 : i32
    return %arg0, %c0_i32, %c0_i32_0 : i32, i32, i32
  }
  func.func @transform_16(%arg0: i32, %arg1: i32) -> (i32, i32, i32) {
    %c0_i32 = arith.constant 0 : i32
    %c0_i32_0 = arith.constant 0 : i32
    %c0_i32_1 = arith.constant 0 : i32
    return %arg0, %c0_i32, %c0_i32_0 : i32, i32, i32
  }
  func.func @transform_17(%arg0: i32, %arg1: i32) -> (i32, i32, i32) {
    %c0_i32 = arith.constant 0 : i32
    %c0_i32_0 = arith.constant 0 : i32
    %c0_i32_1 = arith.constant 0 : i32
    return %arg0, %c0_i32, %c0_i32_0 : i32, i32, i32
  }
  func.func @transform_18(%arg0: i32, %arg1: i32) -> (i32, i32, i32) {
    %c0_i32 = arith.constant 0 : i32
    %c0_i32_0 = arith.constant 0 : i32
    %c0_i32_1 = arith.constant 0 : i32
    return %arg0, %c0_i32, %c0_i32_0 : i32, i32, i32
  }
  func.func @transform_19(%arg0: i32, %arg1: i32) -> (i32, i32, i32) {
    %c0_i32 = arith.constant 0 : i32
    %c0_i32_0 = arith.constant 0 : i32
    %c0_i32_1 = arith.constant 0 : i32
    return %arg0, %c0_i32, %c0_i32_0 : i32, i32, i32
  }
}

</mosaic_0001>

<llo_original>
// kernel: squeeze.3
$region0: #{squeeze.3}
  %s0 = inlined_call_operand.vmem [shape: f32[16], index: 0, kind: input, shape index: {}]
  %s1 = inlined_call_operand.hbm [shape: f32[2,8,1], index: 1, kind: output, shape index: {}]
  $region1: #{squeeze.3} parent=0
    #allocation0 [shape = 'u8[1024]{0}', space=vmem, size = 0x400, scoped, tag = 'operand span for operand 1']
    #allocation1 [shape = 's32[1]{0}', space=sflag, size = 0x4, scoped, tag = 'scoped memory for squeeze.3']
    #allocation2 [shape = 'u8[4096]{0}', space=vmem, size = 0x1000, scoped, tag = 'scoped mem for output reshape']
    #allocation3 [shape = 'u8[4096]{0}', space=vmem, size = 0x1000, scoped, tag = 'scoped mem for input reshape']
    %2 = vsyncpa [#allocation1], 0
    %s4 = sshllo.u32 0, 1
    %v5 = vld [vmem:[%s0] sm:%s4]
    %6 = vst [vmem:[#allocation3] sm:%s4] %v5
    %v7 = vld [vmem:[#allocation3] sm:$0x1]
    %vm8 = vcmask 64512
    %9 = vst.msk [vmem:[#allocation2] sm:$0x1] %vm8, %v7
    %v10 = vld [vmem:[#allocation3] sm:$0x1]
    %11 = vrot.lane.b32.xlu0 %v10, 120
    %v12 = vpop.permute.xlu0 %11
    %vm13 = vcmask 64512
    %s14 = scalar_lea.vmem [#allocation2], 1
    %15 = vst.msk [vmem:[%s14] sm:$0x1] %vm13, %v12
    %s17 = sshllo.u32 0, 2
    %v19 = vld [vmem:[#allocation2] sm:%s17]
    %s20 = sshllo.u32 0, 2
    %21 = vst [vmem:[#allocation0] sm:%s20] %v19
    %s23 = ssub.s32 32, 32
    %24 = vsyncadd [#allocation1], %s23
    %s26 = sshll.u32 [#allocation0], 4
    %s27 = int_to_ptr.vmem [resolvable:$true] %s26
    %29 = dma.vmem_to_hbm [thread:$0]  %s27, 32, %s1, [#allocation1]
    %30 = dma.done [#allocation1], 32
    %31 = vsyncpa [#allocation1], 1

// kernel: electra_forward.1
$region0: #{electra_forward.1}
  #allocation0 [shape = 'u32[]', space=smem, size = 0x4, offset = 0x4, fixed_abs, tag = 'smem constant byte address 0x4 - core index']
  #allocation1 [shape = 'u32[144,128]{1,0:T(1,128)}', space=vmem, size = 0x12000, scoped, tag = 'internal scratch']
  #allocation2 [shape = 'f32[16,32]{1,0:T(8,128)}', space=vmem, size = 0x2000, scoped, tag = 'scratch operand']
  %s0 = inlined_call_operand.vmem [shape: f32[2,16,32], index: 0, kind: input, shape index: {}]
  %s1 = inlined_call_operand.vmem [shape: f32[2,2,32,96], index: 1, kind: input, shape index: {}]
  %s2 = inlined_call_operand.vmem [shape: f32[2,2,1,96], index: 2, kind: input, shape index: {}]
  %s3 = inlined_call_operand.vmem [shape: f32[2,2,32,32], index: 3, kind: input, shape index: {}]
  %s4 = inlined_call_operand.vmem [shape: f32[2,2,1,32], index: 4, kind: input, shape index: {}]
  %s5 = inlined_call_operand.vmem [shape: f32[2,2,1,32], index: 5, kind: input, shape index: {}]
  %s6 = inlined_call_operand.vmem [shape: f32[2,2,1,32], index: 6, kind: input, shape index: {}]
  %s7 = inlined_call_operand.vmem [shape: f32[2,2,32,64], index: 7, kind: input, shape index: {}]
  %s8 = inlined_call_operand.vmem [shape: f32[2,2,1,64], index: 8, kind: input, shape index: {}]
  %s9 = inlined_call_operand.vmem [shape: f32[2,2,64,32], index: 9, kind: input, shape index: {}]
  %s10 = inlined_call_operand.vmem [shape: f32[2,2,1,32], index: 10, kind: input, shape index: {}]
  %s11 = inlined_call_operand.vmem [shape: f32[2,2,1,32], index: 11, kind: input, shape index: {}]
  %s12 = inlined_call_operand.vmem [shape: f32[2,2,1,32], index: 12, kind: input, shape index: {}]
  %s13 = inlined_call_operand.vmem [shape: f32[2,32,32], index: 13, kind: input, shape index: {}]
  %s14 = inlined_call_operand.vmem [shape: f32[2,1,32], index: 14, kind: input, shape index: {}]
  %s15 = inlined_call_operand.vmem [shape: f32[2,1,32], index: 15, kind: input, shape index: {}]
  %s16 = inlined_call_operand.vmem [shape: f32[2,1,32], index: 16, kind: input, shape index: {}]
  %s17 = inlined_call_operand.vmem [shape: f32[2,32,128], index: 17, kind: input, shape index: {}]
  %s18 = inlined_call_operand.vmem [shape: f32[2,1,128], index: 18, kind: input, shape index: {}]
  %s19 = inlined_call_operand.vmem [shape: f32[2,16,128], index: 19, kind: output, shape index: {}]
  %s20 = sld [smem:[#allocation0]]
  $region117: #{electra_forward.1} parent=0
    _
  %s22 = ssub.s32 1, %s20
  %s23 = scalar_select 0, %s22, %s20
  loop: start=0, step=1, limit=6
  $region2: #{electra_forward.1} parent=0 // loop_pre_header
    _
  $region3: #{electra_forward.1} parent=0 // loop_header
    %s25 = sphi 0, %s29
    %p26 = scmp.ge.s32.totalorder %s25, 6
    %s32 = sphi 0, %s44
    %s33 = sphi 0, %s40
    %s34 = sphi 0, %s32
    %s35 = sphi 0, %s33
    %s36 = sphi 0, %s34
    %s37 = sphi 0, %s35
    %s47 = sphi 0, %s49
    %s50 = sphi 0, %s47
    %s51 = sphi 0, %s50
    %s67 = sphi 0, %s51
    %s75 = sphi 0, %s77
    %s78 = sphi 0, %s75
    %s79 = sphi 0, %s78
    %s95 = sphi 0, %s79
    %s103 = sphi 0, %s105
    %s106 = sphi 0, %s103
    %s107 = sphi 0, %s106
    %s123 = sphi 0, %s107
    %s131 = sphi 0, %s133
    %s134 = sphi 0, %s131
    %s135 = sphi 0, %s134
    %s151 = sphi 0, %s135
    %s159 = sphi 0, %s161
    %s162 = sphi 0, %s159
    %s163 = sphi 0, %s162
    %s179 = sphi 0, %s163
    %s187 = sphi 0, %s189
    %s190 = sphi 0, %s187
    %s191 = sphi 0, %s190
    %s207 = sphi 0, %s191
    %s215 = sphi 0, %s217
    %s218 = sphi 0, %s215
    %s219 = sphi 0, %s218
    %s235 = sphi 0, %s219
    %s243 = sphi 0, %s245
    %s246 = sphi 0, %s243
    %s247 = sphi 0, %s246
    %s263 = sphi 0, %s247
    %s271 = sphi 0, %s273
    %s274 = sphi 0, %s271
    %s275 = sphi 0, %s274
    %s291 = sphi 0, %s275
    %s299 = sphi 0, %s301
    %s302 = sphi 0, %s299
    %s303 = sphi 0, %s302
    %s319 = sphi 0, %s303
    %s327 = sphi 0, %s329
    %s330 = sphi 0, %s327
    %s331 = sphi 0, %s330
    %s347 = sphi 0, %s331
    %s355 = sphi 0, %s357
    %s358 = sphi 0, %s355
    %s359 = sphi 0, %s358
    %s375 = sphi 0, %s359
    %s383 = sphi 0, %s385
    %s386 = sphi 0, %s383
    %s387 = sphi 0, %s386
    %s403 = sphi 0, %s387
    %s409 = sphi 0, %s411
    %s412 = sphi 0, %s409
    %s413 = sphi 0, %s412
    %s429 = sphi 0, %s413
    %s435 = sphi 0, %s437
    %s438 = sphi 0, %s435
    %s439 = sphi 0, %s438
    %s455 = sphi 0, %s439
    %s461 = sphi 0, %s463
    %s464 = sphi 0, %s461
    %s465 = sphi 0, %s464
    %s481 = sphi 0, %s465
    %s487 = sphi 0, %s489
    %s490 = sphi 0, %s487
    %s491 = sphi 0, %s490
    %s507 = sphi 0, %s491
    %s513 = sphi 0, %s515
    %s516 = sphi 0, %s513
    %s517 = sphi 0, %s516
    %s533 = sphi 0, %s517
    %s539 = sphi 0, %s541
    %s542 = sphi 0, %s539
    %s543 = sphi 0, %s542
    %s559 = sphi 0, %s543
    %s565 = sphi 0, %s567
    %s568 = sphi 0, %s565
    %s569 = sphi 0, %s568
    %s585 = sphi 0, %s569
  $region4: #{electra_forward.1} parent=0 // loop_header_branch
    %28 = sbr.rel (%p26) target = $region8
  $region5: #{electra_forward.1} parent=0 // loop_body
    %s30 = ssub.s32 %s25, 1
    %s31 = ssub.s32 %s25, 2
    %s38 = sadd.s32 1, %s33
    %p39 = scmp.ge.s32.totalorder %s38, 2
    %s40 = scalar_select %p39, 0, %s38
    %s41 = sadd.s32 1, %s32
    %s42 = scalar_select %p39, %s41, %s32
    %p43 = scmp.ge.s32.totalorder %s42, 2
    %s44 = scalar_select %p43, 0, %s42
    %s45 = ssub.s32 %s32, %s44
    %p46 = scmp.eq.s32.totalorder %s45, 0
    %s48 = sadd.s32 %s47, 1
    %s49 = scalar_select %p46, %s47, %s48
    %p52 = pneg %p46
    %p53 = scmp.eq.s32.totalorder %s25, 3
    %p54 = por %p52, %p53
    %p55 = scmp.ne.s32.totalorder %s47, %s50
    %p56 = scmp.eq.s32.totalorder %s25, 0
    %p57 = por %p55, %p56
    %p58 = scmp.ne.s32.totalorder %s47, %s50
    %p59 = scmp.eq.s32.totalorder %s30, 3
    %p60 = por %p58, %p59
    %p61 = scmp.ne.s32.totalorder %s50, %s51
    %p62 = scmp.eq.s32.totalorder %s30, 0
    %p63 = por %p61, %p62
    %p64 = scmp.ne.s32.totalorder %s50, %s51
    %p65 = scmp.eq.s32.totalorder %s31, 3
    %p66 = por %p64, %p65
    %p68 = scmp.ne.s32.totalorder %s51, %s67
    %p69 = scmp.eq.s32.totalorder %s31, 0
    %p70 = por %p68, %p69
    %s71 = ssub.s32 %s32, %s44
    %s72 = ssub.s32 %s33, %s40
    %s73 = sor.u32 %s71, %s72
    %p74 = scmp.eq.s32.totalorder %s73, 0
    %s76 = sadd.s32 %s75, 1
    %s77 = scalar_select %p74, %s75, %s76
    %p80 = pneg %p74
    %p81 = scmp.eq.s32.totalorder %s25, 3
    %p82 = por %p80, %p81
    %p83 = scmp.ne.s32.totalorder %s75, %s78
    %p84 = scmp.eq.s32.totalorder %s25, 0
    %p85 = por %p83, %p84
    %p86 = scmp.ne.s32.totalorder %s75, %s78
    %p87 = scmp.eq.s32.totalorder %s30, 3
    %p88 = por %p86, %p87
    %p89 = scmp.ne.s32.totalorder %s78, %s79
    %p90 = scmp.eq.s32.totalorder %s30, 0
    %p91 = por %p89, %p90
    %p92 = scmp.ne.s32.totalorder %s78, %s79
    %p93 = scmp.eq.s32.totalorder %s31, 3
    %p94 = por %p92, %p93
    %p96 = scmp.ne.s32.totalorder %s79, %s95
    %p97 = scmp.eq.s32.totalorder %s31, 0
    %p98 = por %p96, %p97
    %s99 = ssub.s32 %s32, %s44
    %s100 = ssub.s32 %s33, %s40
    %s101 = sor.u32 %s99, %s100
    %p102 = scmp.eq.s32.totalorder %s101, 0
    %s104 = sadd.s32 %s103, 1
    %s105 = scalar_select %p102, %s103, %s104
    %p108 = pneg %p102
    %p109 = scmp.eq.s32.totalorder %s25, 3
    %p110 = por %p108, %p109
    %p111 = scmp.ne.s32.totalorder %s103, %s106
    %p112 = scmp.eq.s32.totalorder %s25, 0
    %p113 = por %p111, %p112
    %p114 = scmp.ne.s32.totalorder %s103, %s106
    %p115 = scmp.eq.s32.totalorder %s30, 3
    %p116 = por %p114, %p115
    %p117 = scmp.ne.s32.totalorder %s106, %s107
    %p118 = scmp.eq.s32.totalorder %s30, 0
    %p119 = por %p117, %p118
    %p120 = scmp.ne.s32.totalorder %s106, %s107
    %p121 = scmp.eq.s32.totalorder %s31, 3
    %p122 = por %p120, %p121
    %p124 = scmp.ne.s32.totalorder %s107, %s123
    %p125 = scmp.eq.s32.totalorder %s31, 0
    %p126 = por %p124, %p125
    %s127 = ssub.s32 %s32, %s44
    %s128 = ssub.s32 %s33, %s40
    %s129 = sor.u32 %s127, %s128
    %p130 = scmp.eq.s32.totalorder %s129, 0
    %s132 = sadd.s32 %s131, 1
    %s133 = scalar_select %p130, %s131, %s132
    %p136 = pneg %p130
    %p137 = scmp.eq.s32.totalorder %s25, 3
    %p138 = por %p136, %p137
    %p139 = scmp.ne.s32.totalorder %s131, %s134
    %p140 = scmp.eq.s32.totalorder %s25, 0
    %p141 = por %p139, %p140
    %p142 = scmp.ne.s32.totalorder %s131, %s134
    %p143 = scmp.eq.s32.totalorder %s30, 3
    %p144 = por %p142, %p143
    %p145 = scmp.ne.s32.totalorder %s134, %s135
    %p146 = scmp.eq.s32.totalorder %s30, 0
    %p147 = por %p145, %p146
    %p148 = scmp.ne.s32.totalorder %s134, %s135
    %p149 = scmp.eq.s32.totalorder %s31, 3
    %p150 = por %p148, %p149
    %p152 = scmp.ne.s32.totalorder %s135, %s151
    %p153 = scmp.eq.s32.totalorder %s31, 0
    %p154 = por %p152, %p153
    %s155 = ssub.s32 %s32, %s44
    %s156 = ssub.s32 %s33, %s40
    %s157 = sor.u32 %s155, %s156
    %p158 = scmp.eq.s32.totalorder %s157, 0
    %s160 = sadd.s32 %s159, 1
    %s161 = scalar_select %p158, %s159, %s160
    %p164 = pneg %p158
    %p165 = scmp.eq.s32.totalorder %s25, 3
    %p166 = por %p164, %p165
    %p167 = scmp.ne.s32.totalorder %s159, %s162
    %p168 = scmp.eq.s32.totalorder %s25, 0
    %p169 = por %p167, %p168
    %p170 = scmp.ne.s32.totalorder %s159, %s162
    %p171 = scmp.eq.s32.totalorder %s30, 3
    %p172 = por %p170, %p171
    %p173 = scmp.ne.s32.totalorder %s162, %s163
    %p174 = scmp.eq.s32.totalorder %s30, 0
    %p175 = por %p173, %p174
    %p176 = scmp.ne.s32.totalorder %s162, %s163
    %p177 = scmp.eq.s32.totalorder %s31, 3
    %p178 = por %p176, %p177
    %p180 = scmp.ne.s32.totalorder %s163, %s179
    %p181 = scmp.eq.s32.totalorder %s31, 0
    %p182 = por %p180, %p181
    %s183 = ssub.s32 %s32, %s44
    %s184 = ssub.s32 %s33, %s40
    %s185 = sor.u32 %s183, %s184
    %p186 = scmp.eq.s32.totalorder %s185, 0
    %s188 = sadd.s32 %s187, 1
    %s189 = scalar_select %p186, %s187, %s188
    %p192 = pneg %p186
    %p193 = scmp.eq.s32.totalorder %s25, 3
    %p194 = por %p192, %p193
    %p195 = scmp.ne.s32.totalorder %s187, %s190
    %p196 = scmp.eq.s32.totalorder %s25, 0
    %p197 = por %p195, %p196
    %p198 = scmp.ne.s32.totalorder %s187, %s190
    %p199 = scmp.eq.s32.totalorder %s30, 3
    %p200 = por %p198, %p199
    %p201 = scmp.ne.s32.totalorder %s190, %s191
    %p202 = scmp.eq.s32.totalorder %s30, 0
    %p203 = por %p201, %p202
    %p204 = scmp.ne.s32.totalorder %s190, %s191
    %p205 = scmp.eq.s32.totalorder %s31, 3
    %p206 = por %p204, %p205
    %p208 = scmp.ne.s32.totalorder %s191, %s207
    %p209 = scmp.eq.s32.totalorder %s31, 0
    %p210 = por %p208, %p209
    %s211 = ssub.s32 %s32, %s44
    %s212 = ssub.s32 %s33, %s40
    %s213 = sor.u32 %s211, %s212
    %p214 = scmp.eq.s32.totalorder %s213, 0
    %s216 = sadd.s32 %s215, 1
    %s217 = scalar_select %p214, %s215, %s216
    %p220 = pneg %p214
    %p221 = scmp.eq.s32.totalorder %s25, 3
    %p222 = por %p220, %p221
    %p223 = scmp.ne.s32.totalorder %s215, %s218
    %p224 = scmp.eq.s32.totalorder %s25, 0
    %p225 = por %p223, %p224
    %p226 = scmp.ne.s32.totalorder %s215, %s218
    %p227 = scmp.eq.s32.totalorder %s30, 3
    %p228 = por %p226, %p227
    %p229 = scmp.ne.s32.totalorder %s218, %s219
    %p230 = scmp.eq.s32.totalorder %s30, 0
    %p231 = por %p229, %p230
    %p232 = scmp.ne.s32.totalorder %s218, %s219
    %p233 = scmp.eq.s32.totalorder %s31, 3
    %p234 = por %p232, %p233
    %p236 = scmp.ne.s32.totalorder %s219, %s235
    %p237 = scmp.eq.s32.totalorder %s31, 0
    %p238 = por %p236, %p237
    %s239 = ssub.s32 %s32, %s44
    %s240 = ssub.s32 %s33, %s40
    %s241 = sor.u32 %s239, %s240
    %p242 = scmp.eq.s32.totalorder %s241, 0
    %s244 = sadd.s32 %s243, 1
    %s245 = scalar_select %p242, %s243, %s244
    %p248 = pneg %p242
    %p249 = scmp.eq.s32.totalorder %s25, 3
    %p250 = por %p248, %p249
    %p251 = scmp.ne.s32.totalorder %s243, %s246
    %p252 = scmp.eq.s32.totalorder %s25, 0
    %p253 = por %p251, %p252
    %p254 = scmp.ne.s32.totalorder %s243, %s246
    %p255 = scmp.eq.s32.totalorder %s30, 3
    %p256 = por %p254, %p255
    %p257 = scmp.ne.s32.totalorder %s246, %s247
    %p258 = scmp.eq.s32.totalorder %s30, 0
    %p259 = por %p257, %p258
    %p260 = scmp.ne.s32.totalorder %s246, %s247
    %p261 = scmp.eq.s32.totalorder %s31, 3
    %p262 = por %p260, %p261
    %p264 = scmp.ne.s32.totalorder %s247, %s263
    %p265 = scmp.eq.s32.totalorder %s31, 0
    %p266 = por %p264, %p265
    %s267 = ssub.s32 %s32, %s44
    %s268 = ssub.s32 %s33, %s40
    %s269 = sor.u32 %s267, %s268
    %p270 = scmp.eq.s32.totalorder %s269, 0
    %s272 = sadd.s32 %s271, 1
    %s273 = scalar_select %p270, %s271, %s272
    %p276 = pneg %p270
    %p277 = scmp.eq.s32.totalorder %s25, 3
    %p278 = por %p276, %p277
    %p279 = scmp.ne.s32.totalorder %s271, %s274
    %p280 = scmp.eq.s32.totalorder %s25, 0
    %p281 = por %p279, %p280
    %p282 = scmp.ne.s32.totalorder %s271, %s274
    %p283 = scmp.eq.s32.totalorder %s30, 3
    %p284 = por %p282, %p283
    %p285 = scmp.ne.s32.totalorder %s274, %s275
    %p286 = scmp.eq.s32.totalorder %s30, 0
    %p287 = por %p285, %p286
    %p288 = scmp.ne.s32.totalorder %s274, %s275
    %p289 = scmp.eq.s32.totalorder %s31, 3
    %p290 = por %p288, %p289
    %p292 = scmp.ne.s32.totalorder %s275, %s291
    %p293 = scmp.eq.s32.totalorder %s31, 0
    %p294 = por %p292, %p293
    %s295 = ssub.s32 %s32, %s44
    %s296 = ssub.s32 %s33, %s40
    %s297 = sor.u32 %s295, %s296
    %p298 = scmp.eq.s32.totalorder %s297, 0
    %s300 = sadd.s32 %s299, 1
    %s301 = scalar_select %p298, %s299, %s300
    %p304 = pneg %p298
    %p305 = scmp.eq.s32.totalorder %s25, 3
    %p306 = por %p304, %p305
    %p307 = scmp.ne.s32.totalorder %s299, %s302
    %p308 = scmp.eq.s32.totalorder %s25, 0
    %p309 = por %p307, %p308
    %p310 = scmp.ne.s32.totalorder %s299, %s302
    %p311 = scmp.eq.s32.totalorder %s30, 3
    %p312 = por %p310, %p311
    %p313 = scmp.ne.s32.totalorder %s302, %s303
    %p314 = scmp.eq.s32.totalorder %s30, 0
    %p315 = por %p313, %p314
    %p316 = scmp.ne.s32.totalorder %s302, %s303
    %p317 = scmp.eq.s32.totalorder %s31, 3
    %p318 = por %p316, %p317
    %p320 = scmp.ne.s32.totalorder %s303, %s319
    %p321 = scmp.eq.s32.totalorder %s31, 0
    %p322 = por %p320, %p321
    %s323 = ssub.s32 %s32, %s44
    %s324 = ssub.s32 %s33, %s40
    %s325 = sor.u32 %s323, %s324
    %p326 = scmp.eq.s32.totalorder %s325, 0
    %s328 = sadd.s32 %s327, 1
    %s329 = scalar_select %p326, %s327, %s328
    %p332 = pneg %p326
    %p333 = scmp.eq.s32.totalorder %s25, 3
    %p334 = por %p332, %p333
    %p335 = scmp.ne.s32.totalorder %s327, %s330
    %p336 = scmp.eq.s32.totalorder %s25, 0
    %p337 = por %p335, %p336
    %p338 = scmp.ne.s32.totalorder %s327, %s330
    %p339 = scmp.eq.s32.totalorder %s30, 3
    %p340 = por %p338, %p339
    %p341 = scmp.ne.s32.totalorder %s330, %s331
    %p342 = scmp.eq.s32.totalorder %s30, 0
    %p343 = por %p341, %p342
    %p344 = scmp.ne.s32.totalorder %s330, %s331
    %p345 = scmp.eq.s32.totalorder %s31, 3
    %p346 = por %p344, %p345
    %p348 = scmp.ne.s32.totalorder %s331, %s347
    %p349 = scmp.eq.s32.totalorder %s31, 0
    %p350 = por %p348, %p349
    %s351 = ssub.s32 %s32, %s44
    %s352 = ssub.s32 %s33, %s40
    %s353 = sor.u32 %s351, %s352
    %p354 = scmp.eq.s32.totalorder %s353, 0
    %s356 = sadd.s32 %s355, 1
    %s357 = scalar_select %p354, %s355, %s356
    %p360 = pneg %p354
    %p361 = scmp.eq.s32.totalorder %s25, 3
    %p362 = por %p360, %p361
    %p363 = scmp.ne.s32.totalorder %s355, %s358
    %p364 = scmp.eq.s32.totalorder %s25, 0
    %p365 = por %p363, %p364
    %p366 = scmp.ne.s32.totalorder %s355, %s358
    %p367 = scmp.eq.s32.totalorder %s30, 3
    %p368 = por %p366, %p367
    %p369 = scmp.ne.s32.totalorder %s358, %s359
    %p370 = scmp.eq.s32.totalorder %s30, 0
    %p371 = por %p369, %p370
    %p372 = scmp.ne.s32.totalorder %s358, %s359
    %p373 = scmp.eq.s32.totalorder %s31, 3
    %p374 = por %p372, %p373
    %p376 = scmp.ne.s32.totalorder %s359, %s375
    %p377 = scmp.eq.s32.totalorder %s31, 0
    %p378 = por %p376, %p377
    %s379 = ssub.s32 %s32, %s44
    %s380 = ssub.s32 %s33, %s40
    %s381 = sor.u32 %s379, %s380
    %p382 = scmp.eq.s32.totalorder %s381, 0
    %s384 = sadd.s32 %s383, 1
    %s385 = scalar_select %p382, %s383, %s384
    %p388 = pneg %p382
    %p389 = scmp.eq.s32.totalorder %s25, 3
    %p390 = por %p388, %p389
    %p391 = scmp.ne.s32.totalorder %s383, %s386
    %p392 = scmp.eq.s32.totalorder %s25, 0
    %p393 = por %p391, %p392
    %p394 = scmp.ne.s32.totalorder %s383, %s386
    %p395 = scmp.eq.s32.totalorder %s30, 3
    %p396 = por %p394, %p395
    %p397 = scmp.ne.s32.totalorder %s386, %s387
    %p398 = scmp.eq.s32.totalorder %s30, 0
    %p399 = por %p397, %p398
    %p400 = scmp.ne.s32.totalorder %s386, %s387
    %p401 = scmp.eq.s32.totalorder %s31, 3
    %p402 = por %p400, %p401
    %p404 = scmp.ne.s32.totalorder %s387, %s403
    %p405 = scmp.eq.s32.totalorder %s31, 0
    %p406 = por %p404, %p405
    %s407 = ssub.s32 %s32, %s44
    %p408 = scmp.eq.s32.totalorder %s407, 0
    %s410 = sadd.s32 %s409, 1
    %s411 = scalar_select %p408, %s409, %s410
    %p414 = pneg %p408
    %p415 = scmp.eq.s32.totalorder %s25, 3
    %p416 = por %p414, %p415
    %p417 = scmp.ne.s32.totalorder %s409, %s412
    %p418 = scmp.eq.s32.totalorder %s25, 0
    %p419 = por %p417, %p418
    %p420 = scmp.ne.s32.totalorder %s409, %s412
    %p421 = scmp.eq.s32.totalorder %s30, 3
    %p422 = por %p420, %p421
    %p423 = scmp.ne.s32.totalorder %s412, %s413
    %p424 = scmp.eq.s32.totalorder %s30, 0
    %p425 = por %p423, %p424
    %p426 = scmp.ne.s32.totalorder %s412, %s413
    %p427 = scmp.eq.s32.totalorder %s31, 3
    %p428 = por %p426, %p427
    %p430 = scmp.ne.s32.totalorder %s413, %s429
    %p431 = scmp.eq.s32.totalorder %s31, 0
    %p432 = por %p430, %p431
    %s433 = ssub.s32 %s32, %s44
    %p434 = scmp.eq.s32.totalorder %s433, 0
    %s436 = sadd.s32 %s435, 1
    %s437 = scalar_select %p434, %s435, %s436
    %p440 = pneg %p434
    %p441 = scmp.eq.s32.totalorder %s25, 3
    %p442 = por %p440, %p441
    %p443 = scmp.ne.s32.totalorder %s435, %s438
    %p444 = scmp.eq.s32.totalorder %s25, 0
    %p445 = por %p443, %p444
    %p446 = scmp.ne.s32.totalorder %s435, %s438
    %p447 = scmp.eq.s32.totalorder %s30, 3
    %p448 = por %p446, %p447
    %p449 = scmp.ne.s32.totalorder %s438, %s439
    %p450 = scmp.eq.s32.totalorder %s30, 0
    %p451 = por %p449, %p450
    %p452 = scmp.ne.s32.totalorder %s438, %s439
    %p453 = scmp.eq.s32.totalorder %s31, 3
    %p454 = por %p452, %p453
    %p456 = scmp.ne.s32.totalorder %s439, %s455
    %p457 = scmp.eq.s32.totalorder %s31, 0
    %p458 = por %p456, %p457
    %s459 = ssub.s32 %s32, %s44
    %p460 = scmp.eq.s32.totalorder %s459, 0
    %s462 = sadd.s32 %s461, 1
    %s463 = scalar_select %p460, %s461, %s462
    %p466 = pneg %p460
    %p467 = scmp.eq.s32.totalorder %s25, 3
    %p468 = por %p466, %p467
    %p469 = scmp.ne.s32.totalorder %s461, %s464
    %p470 = scmp.eq.s32.totalorder %s25, 0
    %p471 = por %p469, %p470
    %p472 = scmp.ne.s32.totalorder %s461, %s464
    %p473 = scmp.eq.s32.totalorder %s30, 3
    %p474 = por %p472, %p473
    %p475 = scmp.ne.s32.totalorder %s464, %s465
    %p476 = scmp.eq.s32.totalorder %s30, 0
    %p477 = por %p475, %p476
    %p478 = scmp.ne.s32.totalorder %s464, %s465
    %p479 = scmp.eq.s32.totalorder %s31, 3
    %p480 = por %p478, %p479
    %p482 = scmp.ne.s32.totalorder %s465, %s481
    %p483 = scmp.eq.s32.totalorder %s31, 0
    %p484 = por %p482, %p483
    %s485 = ssub.s32 %s32, %s44
    %p486 = scmp.eq.s32.totalorder %s485, 0
    %s488 = sadd.s32 %s487, 1
    %s489 = scalar_select %p486, %s487, %s488
    %p492 = pneg %p486
    %p493 = scmp.eq.s32.totalorder %s25, 3
    %p494 = por %p492, %p493
    %p495 = scmp.ne.s32.totalorder %s487, %s490
    %p496 = scmp.eq.s32.totalorder %s25, 0
    %p497 = por %p495, %p496
    %p498 = scmp.ne.s32.totalorder %s487, %s490
    %p499 = scmp.eq.s32.totalorder %s30, 3
    %p500 = por %p498, %p499
    %p501 = scmp.ne.s32.totalorder %s490, %s491
    %p502 = scmp.eq.s32.totalorder %s30, 0
    %p503 = por %p501, %p502
    %p504 = scmp.ne.s32.totalorder %s490, %s491
    %p505 = scmp.eq.s32.totalorder %s31, 3
    %p506 = por %p504, %p505
    %p508 = scmp.ne.s32.totalorder %s491, %s507
    %p509 = scmp.eq.s32.totalorder %s31, 0
    %p510 = por %p508, %p509
    %s511 = ssub.s32 %s32, %s44
    %p512 = scmp.eq.s32.totalorder %s511, 0
    %s514 = sadd.s32 %s513, 1
    %s515 = scalar_select %p512, %s513, %s514
    %p518 = pneg %p512
    %p519 = scmp.eq.s32.totalorder %s25, 3
    %p520 = por %p518, %p519
    %p521 = scmp.ne.s32.totalorder %s513, %s516
    %p522 = scmp.eq.s32.totalorder %s25, 0
    %p523 = por %p521, %p522
    %p524 = scmp.ne.s32.totalorder %s513, %s516
    %p525 = scmp.eq.s32.totalorder %s30, 3
    %p526 = por %p524, %p525
    %p527 = scmp.ne.s32.totalorder %s516, %s517
    %p528 = scmp.eq.s32.totalorder %s30, 0
    %p529 = por %p527, %p528
    %p530 = scmp.ne.s32.totalorder %s516, %s517
    %p531 = scmp.eq.s32.totalorder %s31, 3
    %p532 = por %p530, %p531
    %p534 = scmp.ne.s32.totalorder %s517, %s533
    %p535 = scmp.eq.s32.totalorder %s31, 0
    %p536 = por %p534, %p535
    %s537 = ssub.s32 %s32, %s44
    %p538 = scmp.eq.s32.totalorder %s537, 0
    %s540 = sadd.s32 %s539, 1
    %s541 = scalar_select %p538, %s539, %s540
    %p544 = pneg %p538
    %p545 = scmp.eq.s32.totalorder %s25, 3
    %p546 = por %p544, %p545
    %p547 = scmp.ne.s32.totalorder %s539, %s542
    %p548 = scmp.eq.s32.totalorder %s25, 0
    %p549 = por %p547, %p548
    %p550 = scmp.ne.s32.totalorder %s539, %s542
    %p551 = scmp.eq.s32.totalorder %s30, 3
    %p552 = por %p550, %p551
    %p553 = scmp.ne.s32.totalorder %s542, %s543
    %p554 = scmp.eq.s32.totalorder %s30, 0
    %p555 = por %p553, %p554
    %p556 = scmp.ne.s32.totalorder %s542, %s543
    %p557 = scmp.eq.s32.totalorder %s31, 3
    %p558 = por %p556, %p557
    %p560 = scmp.ne.s32.totalorder %s543, %s559
    %p561 = scmp.eq.s32.totalorder %s31, 0
    %p562 = por %p560, %p561
    %s563 = ssub.s32 %s32, %s44
    %p564 = scmp.eq.s32.totalorder %s563, 0
    %s566 = sadd.s32 %s565, 1
    %s567 = scalar_select %p564, %s565, %s566
    %p570 = pneg %p564
    %p571 = scmp.eq.s32.totalorder %s25, 3
    %p572 = por %p570, %p571
    %p573 = scmp.ne.s32.totalorder %s565, %s568
    %p574 = scmp.eq.s32.totalorder %s25, 0
    %p575 = por %p573, %p574
    %p576 = scmp.ne.s32.totalorder %s565, %s568
    %p577 = scmp.eq.s32.totalorder %s30, 3
    %p578 = por %p576, %p577
    %p579 = scmp.ne.s32.totalorder %s568, %s569
    %p580 = scmp.eq.s32.totalorder %s30, 0
    %p581 = por %p579, %p580
    %p582 = scmp.ne.s32.totalorder %s568, %s569
    %p583 = scmp.eq.s32.totalorder %s31, 3
    %p584 = por %p582, %p583
    %p586 = scmp.ne.s32.totalorder %s569, %s585
    %p587 = scmp.eq.s32.totalorder %s31, 0
    %p588 = por %p586, %p587
    %p589 = scmp.le.s32.totalorder 1, %s25
    %p590 = scmp.lt.s32.totalorder %s25, 5
    %p591 = pnand %p589, %p590
    %p592 = pneg %p591
    // Predicated region
    $region9: #{electra_forward.1} parent=5 // pred_check
      _
    $region10: #{electra_forward.1} parent=5 // pred_check_branch
      %594 = sbr.rel (%p591) target = $region12
    $region11: #{electra_forward.1} parent=5 // pred_region
      %s595 = ssub.s32 %s25, 1
    $region12: #{electra_forward.1} parent=5 // pred_fallthru
      _
    %p596 = scmp.lt.s32.totalorder %s25, 4
    // Predicated region
    $region13: #{electra_forward.1} parent=5 // pred_check
      %p597 = pneg %p596
    $region14: #{electra_forward.1} parent=5 // pred_check_branch
      %599 = sbr.rel (%p597) target = $region16
    $region15: #{electra_forward.1} parent=5 // pred_region
      // Predicated region
      $region17: #{electra_forward.1} parent=15 // pred_check
        %p600 = pneg %p57
      $region18: #{electra_forward.1} parent=15 // pred_check_branch
        %602 = sbr.rel (%p600) target = $region20
      $region19: #{electra_forward.1} parent=15 // pred_region
        %p603 = scmp.lt.s32.totalorder %s32, 1
        %s604 = scalar_select %p603, %s32, 1
        %s605 = smul.addr %s604, 2
        %s606 = smul.addr %s605, 8
        %s607 = scalar_lea.vmem %s0, %s606
      $region20: #{electra_forward.1} parent=15 // pred_fallthru
        _
      // Predicated region
      $region21: #{electra_forward.1} parent=15 // pred_check
        %p608 = pneg %p85
      $region22: #{electra_forward.1} parent=15 // pred_check_branch
        %610 = sbr.rel (%p608) target = $region24
      $region23: #{electra_forward.1} parent=15 // pred_region
        %p611 = scmp.lt.s32.totalorder %s32, 1
        %s612 = scalar_select %p611, %s32, 1
        %p613 = scmp.lt.s32.totalorder %s33, 1
        %s614 = scalar_select %p613, %s33, 1
        %s615 = smul.addr %s614, 4
        %s616 = smul.addr %s612, 8
        %s617 = sadd.s32 %s615, %s616
        %s618 = smul.addr %s617, 8
        %s619 = scalar_lea.vmem %s1, %s618
      $region24: #{electra_forward.1} parent=15 // pred_fallthru
        _
      // Predicated region
      $region25: #{electra_forward.1} parent=15 // pred_check
        %p620 = pneg %p113
      $region26: #{electra_forward.1} parent=15 // pred_check_branch
        %622 = sbr.rel (%p620) target = $region28
      $region27: #{electra_forward.1} parent=15 // pred_region
        %p623 = scmp.lt.s32.totalorder %s32, 1
        %s624 = scalar_select %p623, %s32, 1
        %p625 = scmp.lt.s32.totalorder %s33, 1
        %s626 = scalar_select %p625, %s33, 1
        %s627 = smul.addr %s624, 2
        %s628 = sadd.s32 %s626, %s627
        %s629 = scalar_lea.vmem %s2, %s628
      $region28: #{electra_forward.1} parent=15 // pred_fallthru
        _
      // Predicated region
      $region29: #{electra_forward.1} parent=15 // pred_check
        %p630 = pneg %p141
      $region30: #{electra_forward.1} parent=15 // pred_check_branch
        %632 = sbr.rel (%p630) target = $region32
      $region31: #{electra_forward.1} parent=15 // pred_region
        %p633 = scmp.lt.s32.totalorder %s32, 1
        %s634 = scalar_select %p633, %s32, 1
        %p635 = scmp.lt.s32.totalorder %s33, 1
        %s636 = scalar_select %p635, %s33, 1
        %s637 = smul.addr %s636, 4
        %s638 = smul.addr %s634, 8
        %s639 = sadd.s32 %s637, %s638
        %s640 = smul.addr %s639, 8
        %s641 = scalar_lea.vmem %s3, %s640
      $region32: #{electra_forward.1} parent=15 // pred_fallthru
        _
      // Predicated region
      $region33: #{electra_forward.1} parent=15 // pred_check
        %p642 = pneg %p169
      $region34: #{electra_forward.1} parent=15 // pred_check_branch
        %644 = sbr.rel (%p642) target = $region36
      $region35: #{electra_forward.1} parent=15 // pred_region
        %p645 = scmp.lt.s32.totalorder %s32, 1
        %s646 = scalar_select %p645, %s32, 1
        %p647 = scmp.lt.s32.totalorder %s33, 1
        %s648 = scalar_select %p647, %s33, 1
        %s649 = smul.addr %s646, 2
        %s650 = sadd.s32 %s648, %s649
        %s651 = scalar_lea.vmem %s4, %s650
      $region36: #{electra_forward.1} parent=15 // pred_fallthru
        _
      // Predicated region
      $region37: #{electra_forward.1} parent=15 // pred_check
        %p652 = pneg %p197
      $region38: #{electra_forward.1} parent=15 // pred_check_branch
        %654 = sbr.rel (%p652) target = $region40
      $region39: #{electra_forward.1} parent=15 // pred_region
        %p655 = scmp.lt.s32.totalorder %s32, 1
        %s656 = scalar_select %p655, %s32, 1
        %p657 = scmp.lt.s32.totalorder %s33, 1
        %s658 = scalar_select %p657, %s33, 1
        %s659 = smul.addr %s656, 2
        %s660 = sadd.s32 %s658, %s659
        %s661 = scalar_lea.vmem %s5, %s660
      $region40: #{electra_forward.1} parent=15 // pred_fallthru
        _
      // Predicated region
      $region41: #{electra_forward.1} parent=15 // pred_check
        %p662 = pneg %p225
      $region42: #{electra_forward.1} parent=15 // pred_check_branch
        %664 = sbr.rel (%p662) target = $region44
      $region43: #{electra_forward.1} parent=15 // pred_region
        %p665 = scmp.lt.s32.totalorder %s32, 1
        %s666 = scalar_select %p665, %s32, 1
        %p667 = scmp.lt.s32.totalorder %s33, 1
        %s668 = scalar_select %p667, %s33, 1
        %s669 = smul.addr %s666, 2
        %s670 = sadd.s32 %s668, %s669
        %s671 = scalar_lea.vmem %s6, %s670
      $region44: #{electra_forward.1} parent=15 // pred_fallthru
        _
      // Predicated region
      $region45: #{electra_forward.1} parent=15 // pred_check
        %p672 = pneg %p253
      $region46: #{electra_forward.1} parent=15 // pred_check_branch
        %674 = sbr.rel (%p672) target = $region48
      $region47: #{electra_forward.1} parent=15 // pred_region
        %p675 = scmp.lt.s32.totalorder %s32, 1
        %s676 = scalar_select %p675, %s32, 1
        %p677 = scmp.lt.s32.totalorder %s33, 1
        %s678 = scalar_select %p677, %s33, 1
        %s679 = smul.addr %s678, 4
        %s680 = smul.addr %s676, 8
        %s681 = sadd.s32 %s679, %s680
        %s682 = smul.addr %s681, 8
        %s683 = scalar_lea.vmem %s7, %s682
      $region48: #{electra_forward.1} parent=15 // pred_fallthru
        _
      // Predicated region
      $region49: #{electra_forward.1} parent=15 // pred_check
        %p684 = pneg %p281
      $region50: #{electra_forward.1} parent=15 // pred_check_branch
        %686 = sbr.rel (%p684) target = $region52
      $region51: #{electra_forward.1} parent=15 // pred_region
        %p687 = scmp.lt.s32.totalorder %s32, 1
        %s688 = scalar_select %p687, %s32, 1
        %p689 = scmp.lt.s32.totalorder %s33, 1
        %s690 = scalar_select %p689, %s33, 1
        %s691 = smul.addr %s688, 2
        %s692 = sadd.s32 %s690, %s691
        %s693 = scalar_lea.vmem %s8, %s692
      $region52: #{electra_forward.1} parent=15 // pred_fallthru
        _
      // Predicated region
      $region53: #{electra_forward.1} parent=15 // pred_check
        %p694 = pneg %p309
      $region54: #{electra_forward.1} parent=15 // pred_check_branch
        %696 = sbr.rel (%p694) target = $region56
      $region55: #{electra_forward.1} parent=15 // pred_region
        %p697 = scmp.lt.s32.totalorder %s32, 1
        %s698 = scalar_select %p697, %s32, 1
        %p699 = scmp.lt.s32.totalorder %s33, 1
        %s700 = scalar_select %p699, %s33, 1
        %s701 = smul.addr %s700, 8
        %s702 = smul.addr %s698, 16
        %s703 = sadd.s32 %s701, %s702
        %s704 = smul.addr %s703, 8
        %s705 = scalar_lea.vmem %s9, %s704
      $region56: #{electra_forward.1} parent=15 // pred_fallthru
        _
      // Predicated region
      $region57: #{electra_forward.1} parent=15 // pred_check
        %p706 = pneg %p337
      $region58: #{electra_forward.1} parent=15 // pred_check_branch
        %708 = sbr.rel (%p706) target = $region60
      $region59: #{electra_forward.1} parent=15 // pred_region
        %p709 = scmp.lt.s32.totalorder %s32, 1
        %s710 = scalar_select %p709, %s32, 1
        %p711 = scmp.lt.s32.totalorder %s33, 1
        %s712 = scalar_select %p711, %s33, 1
        %s713 = smul.addr %s710, 2
        %s714 = sadd.s32 %s712, %s713
        %s715 = scalar_lea.vmem %s10, %s714
      $region60: #{electra_forward.1} parent=15 // pred_fallthru
        _
      // Predicated region
      $region61: #{electra_forward.1} parent=15 // pred_check
        %p716 = pneg %p365
      $region62: #{electra_forward.1} parent=15 // pred_check_branch
        %718 = sbr.rel (%p716) target = $region64
      $region63: #{electra_forward.1} parent=15 // pred_region
        %p719 = scmp.lt.s32.totalorder %s32, 1
        %s720 = scalar_select %p719, %s32, 1
        %p721 = scmp.lt.s32.totalorder %s33, 1
        %s722 = scalar_select %p721, %s33, 1
        %s723 = smul.addr %s720, 2
        %s724 = sadd.s32 %s722, %s723
        %s725 = scalar_lea.vmem %s11, %s724
      $region64: #{electra_forward.1} parent=15 // pred_fallthru
        _
      // Predicated region
      $region65: #{electra_forward.1} parent=15 // pred_check
        %p726 = pneg %p393
      $region66: #{electra_forward.1} parent=15 // pred_check_branch
        %728 = sbr.rel (%p726) target = $region68
      $region67: #{electra_forward.1} parent=15 // pred_region
        %p729 = scmp.lt.s32.totalorder %s32, 1
        %s730 = scalar_select %p729, %s32, 1
        %p731 = scmp.lt.s32.totalorder %s33, 1
        %s732 = scalar_select %p731, %s33, 1
        %s733 = smul.addr %s730, 2
        %s734 = sadd.s32 %s732, %s733
        %s735 = scalar_lea.vmem %s12, %s734
      $region68: #{electra_forward.1} parent=15 // pred_fallthru
        _
      // Predicated region
      $region69: #{electra_forward.1} parent=15 // pred_check
        %p736 = pneg %p419
      $region70: #{electra_forward.1} parent=15 // pred_check_branch
        %738 = sbr.rel (%p736) target = $region72
      $region71: #{electra_forward.1} parent=15 // pred_region
        %p739 = scmp.lt.s32.totalorder %s32, 1
        %s740 = scalar_select %p739, %s32, 1
        %s741 = smul.addr %s740, 4
        %s742 = smul.addr %s741, 8
        %s743 = scalar_lea.vmem %s13, %s742
      $region72: #{electra_forward.1} parent=15 // pred_fallthru
        _
      // Predicated region
      $region73: #{electra_forward.1} parent=15 // pred_check
        %p744 = pneg %p445
      $region74: #{electra_forward.1} parent=15 // pred_check_branch
        %746 = sbr.rel (%p744) target = $region76
      $region75: #{electra_forward.1} parent=15 // pred_region
        %p747 = scmp.lt.s32.totalorder %s32, 1
        %s748 = scalar_select %p747, %s32, 1
        %s749 = scalar_lea.vmem %s14, %s748
      $region76: #{electra_forward.1} parent=15 // pred_fallthru
        _
      // Predicated region
      $region77: #{electra_forward.1} parent=15 // pred_check
        %p750 = pneg %p471
      $region78: #{electra_forward.1} parent=15 // pred_check_branch
        %752 = sbr.rel (%p750) target = $region80
      $region79: #{electra_forward.1} parent=15 // pred_region
        %p753 = scmp.lt.s32.totalorder %s32, 1
        %s754 = scalar_select %p753, %s32, 1
        %s755 = scalar_lea.vmem %s15, %s754
      $region80: #{electra_forward.1} parent=15 // pred_fallthru
        _
      // Predicated region
      $region81: #{electra_forward.1} parent=15 // pred_check
        %p756 = pneg %p497
      $region82: #{electra_forward.1} parent=15 // pred_check_branch
        %758 = sbr.rel (%p756) target = $region84
      $region83: #{electra_forward.1} parent=15 // pred_region
        %p759 = scmp.lt.s32.totalorder %s32, 1
        %s760 = scalar_select %p759, %s32, 1
        %s761 = scalar_lea.vmem %s16, %s760
      $region84: #{electra_forward.1} parent=15 // pred_fallthru
        _
      // Predicated region
      $region85: #{electra_forward.1} parent=15 // pred_check
        %p762 = pneg %p523
      $region86: #{electra_forward.1} parent=15 // pred_check_branch
        %764 = sbr.rel (%p762) target = $region88
      $region87: #{electra_forward.1} parent=15 // pred_region
        %p765 = scmp.lt.s32.totalorder %s32, 1
        %s766 = scalar_select %p765, %s32, 1
        %s767 = smul.addr %s766, 4
        %s768 = smul.addr %s767, 8
        %s769 = scalar_lea.vmem %s17, %s768
      $region88: #{electra_forward.1} parent=15 // pred_fallthru
        _
      // Predicated region
      $region89: #{electra_forward.1} parent=15 // pred_check
        %p770 = pneg %p549
      $region90: #{electra_forward.1} parent=15 // pred_check_branch
        %772 = sbr.rel (%p770) target = $region92
      $region91: #{electra_forward.1} parent=15 // pred_region
        %p773 = scmp.lt.s32.totalorder %s32, 1
        %s774 = scalar_select %p773, %s32, 1
        %s775 = scalar_lea.vmem %s18, %s774
      $region92: #{electra_forward.1} parent=15 // pred_fallthru
        _
    $region16: #{electra_forward.1} parent=5 // pred_fallthru
      _
    %p776 = scmp.le.s32.totalorder 1, %s25
    %p777 = scmp.lt.s32.totalorder %s25, 5
    %p778 = pnand %p776, %p777
    %p779 = pneg %p778
    // Predicated region
    $region93: #{electra_forward.1} parent=5 // pred_check
      _
    $region94: #{electra_forward.1} parent=5 // pred_check_branch
      %781 = sbr.rel (%p778) target = $region96
    $region95: #{electra_forward.1} parent=5 // pred_region
      %s782 = ssub.s32 %s25, 1
      %p783 = scmp.lt.s32.totalorder %s34, 1
      %s784 = scalar_select %p783, %s34, 1
      %s785 = smul.addr %s784, 2
      %s786 = smul.addr %s785, 8
      %s787 = scalar_lea.vmem %s0, %s786
      %p788 = pneg %p63
      %p789 = pneg %p60
      %p790 = scmp.lt.s32.totalorder %s34, 1
      %s791 = scalar_select %p790, %s34, 1
      %p792 = scmp.lt.s32.totalorder %s35, 1
      %s793 = scalar_select %p792, %s35, 1
      %s794 = smul.addr %s793, 4
      %s795 = smul.addr %s791, 8
      %s796 = sadd.s32 %s794, %s795
      %s797 = smul.addr %s796, 8
      %s798 = scalar_lea.vmem %s1, %s797
      %p799 = pneg %p91
      %p800 = pneg %p88
      %p801 = scmp.lt.s32.totalorder %s34, 1
      %s802 = scalar_select %p801, %s34, 1
      %p803 = scmp.lt.s32.totalorder %s35, 1
      %s804 = scalar_select %p803, %s35, 1
      %s805 = smul.addr %s802, 2
      %s806 = sadd.s32 %s804, %s805
      %s807 = scalar_lea.vmem %s2, %s806
      %p808 = pneg %p119
      %p809 = pneg %p116
      %p810 = scmp.lt.s32.totalorder %s34, 1
      %s811 = scalar_select %p810, %s34, 1
      %p812 = scmp.lt.s32.totalorder %s35, 1
      %s813 = scalar_select %p812, %s35, 1
      %s814 = smul.addr %s813, 4
      %s815 = smul.addr %s811, 8
      %s816 = sadd.s32 %s814, %s815
      %s817 = smul.addr %s816, 8
      %s818 = scalar_lea.vmem %s3, %s817
      %p819 = pneg %p147
      %p820 = pneg %p144
      %p821 = scmp.lt.s32.totalorder %s34, 1
      %s822 = scalar_select %p821, %s34, 1
      %p823 = scmp.lt.s32.totalorder %s35, 1
      %s824 = scalar_select %p823, %s35, 1
      %s825 = smul.addr %s822, 2
      %s826 = sadd.s32 %s824, %s825
      %s827 = scalar_lea.vmem %s4, %s826
      %p828 = pneg %p175
      %p829 = pneg %p172
      %p830 = scmp.lt.s32.totalorder %s34, 1
      %s831 = scalar_select %p830, %s34, 1
      %p832 = scmp.lt.s32.totalorder %s35, 1
      %s833 = scalar_select %p832, %s35, 1
      %s834 = smul.addr %s831, 2
      %s835 = sadd.s32 %s833, %s834
      %s836 = scalar_lea.vmem %s5, %s835
      %p837 = pneg %p203
      %p838 = pneg %p200
      %p839 = scmp.lt.s32.totalorder %s34, 1
      %s840 = scalar_select %p839, %s34, 1
      %p841 = scmp.lt.s32.totalorder %s35, 1
      %s842 = scalar_select %p841, %s35, 1
      %s843 = smul.addr %s840, 2
      %s844 = sadd.s32 %s842, %s843
      %s845 = scalar_lea.vmem %s6, %s844
      %p846 = pneg %p231
      %p847 = pneg %p228
      %p848 = scmp.lt.s32.totalorder %s34, 1
      %s849 = scalar_select %p848, %s34, 1
      %p850 = scmp.lt.s32.totalorder %s35, 1
      %s851 = scalar_select %p850, %s35, 1
      %s852 = smul.addr %s851, 4
      %s853 = smul.addr %s849, 8
      %s854 = sadd.s32 %s852, %s853
      %s855 = smul.addr %s854, 8
      %s856 = scalar_lea.vmem %s7, %s855
      %p857 = pneg %p259
      %p858 = pneg %p256
      %p859 = scmp.lt.s32.totalorder %s34, 1
      %s860 = scalar_select %p859, %s34, 1
      %p861 = scmp.lt.s32.totalorder %s35, 1
      %s862 = scalar_select %p861, %s35, 1
      %s863 = smul.addr %s860, 2
      %s864 = sadd.s32 %s862, %s863
      %s865 = scalar_lea.vmem %s8, %s864
      %p866 = pneg %p287
      %p867 = pneg %p284
      %p868 = scmp.lt.s32.totalorder %s34, 1
      %s869 = scalar_select %p868, %s34, 1
      %p870 = scmp.lt.s32.totalorder %s35, 1
      %s871 = scalar_select %p870, %s35, 1
      %s872 = smul.addr %s871, 8
      %s873 = smul.addr %s869, 16
      %s874 = sadd.s32 %s872, %s873
      %s875 = smul.addr %s874, 8
      %s876 = scalar_lea.vmem %s9, %s875
      %p877 = pneg %p315
      %p878 = pneg %p312
      %p879 = scmp.lt.s32.totalorder %s34, 1
      %s880 = scalar_select %p879, %s34, 1
      %p881 = scmp.lt.s32.totalorder %s35, 1
      %s882 = scalar_select %p881, %s35, 1
      %s883 = smul.addr %s880, 2
      %s884 = sadd.s32 %s882, %s883
      %s885 = scalar_lea.vmem %s10, %s884
      %p886 = pneg %p343
      %p887 = pneg %p340
      %p888 = scmp.lt.s32.totalorder %s34, 1
      %s889 = scalar_select %p888, %s34, 1
      %p890 = scmp.lt.s32.totalorder %s35, 1
      %s891 = scalar_select %p890, %s35, 1
      %s892 = smul.addr %s889, 2
      %s893 = sadd.s32 %s891, %s892
      %s894 = scalar_lea.vmem %s11, %s893
      %p895 = pneg %p371
      %p896 = pneg %p368
      %p897 = scmp.lt.s32.totalorder %s34, 1
      %s898 = scalar_select %p897, %s34, 1
      %p899 = scmp.lt.s32.totalorder %s35, 1
      %s900 = scalar_select %p899, %s35, 1
      %s901 = smul.addr %s898, 2
      %s902 = sadd.s32 %s900, %s901
      %s903 = scalar_lea.vmem %s12, %s902
      %p904 = pneg %p399
      %p905 = pneg %p396
      %p906 = scmp.lt.s32.totalorder %s34, 1
      %s907 = scalar_select %p906, %s34, 1
      %s908 = smul.addr %s907, 4
      %s909 = smul.addr %s908, 8
      %s910 = scalar_lea.vmem %s13, %s909
      %p911 = pneg %p425
      %p912 = pneg %p422
      %p913 = scmp.lt.s32.totalorder %s34, 1
      %s914 = scalar_select %p913, %s34, 1
      %s915 = scalar_lea.vmem %s14, %s914
      %p916 = pneg %p451
      %p917 = pneg %p448
      %p918 = scmp.lt.s32.totalorder %s34, 1
      %s919 = scalar_select %p918, %s34, 1
      %s920 = scalar_lea.vmem %s15, %s919
      %p921 = pneg %p477
      %p922 = pneg %p474
      %p923 = scmp.lt.s32.totalorder %s34, 1
      %s924 = scalar_select %p923, %s34, 1
      %s925 = scalar_lea.vmem %s16, %s924
      %p926 = pneg %p503
      %p927 = pneg %p500
      %p928 = scmp.lt.s32.totalorder %s34, 1
      %s929 = scalar_select %p928, %s34, 1
      %s930 = smul.addr %s929, 4
      %s931 = smul.addr %s930, 8
      %s932 = scalar_lea.vmem %s17, %s931
      %p933 = pneg %p529
      %p934 = pneg %p526
      %p935 = scmp.lt.s32.totalorder %s34, 1
      %s936 = scalar_select %p935, %s34, 1
      %s937 = scalar_lea.vmem %s18, %s936
      %p938 = pneg %p555
      %p939 = pneg %p552
      %p940 = pneg %p581
      %p941 = pneg %p578
      %p942 = scmp.lt.s32.totalorder %s34, 1
      %s943 = scalar_select %p942, %s34, 1
      %s944 = smul.addr %s943, 2
      %s945 = smul.addr %s944, 8
      %s946 = scalar_lea.vmem %s19, %s945
      %p947 = scmp.lt.s32.totalorder %s34, 1
      %s948 = scalar_select %p947, %s34, 1
      %s949 = smul.addr %s948, 2
      %s950 = smul.addr %s949, 8
      %s951 = scalar_lea.vmem %s0, %s950
      %p952 = scmp.lt.s32.totalorder %s34, 1
      %s953 = scalar_select %p952, %s34, 1
      %p954 = scmp.lt.s32.totalorder %s35, 1
      %s955 = scalar_select %p954, %s35, 1
      %s956 = smul.addr %s955, 4
      %s957 = smul.addr %s953, 8
      %s958 = sadd.s32 %s956, %s957
      %s959 = smul.addr %s958, 8
      %s960 = scalar_lea.vmem %s1, %s959
      %p961 = scmp.lt.s32.totalorder %s34, 1
      %s962 = scalar_select %p961, %s34, 1
      %p963 = scmp.lt.s32.totalorder %s35, 1
      %s964 = scalar_select %p963, %s35, 1
      %s965 = smul.addr %s962, 2
      %s966 = sadd.s32 %s964, %s965
      %s967 = scalar_lea.vmem %s2, %s966
      %p968 = scmp.lt.s32.totalorder %s34, 1
      %s969 = scalar_select %p968, %s34, 1
      %p970 = scmp.lt.s32.totalorder %s35, 1
      %s971 = scalar_select %p970, %s35, 1
      %s972 = smul.addr %s971, 4
      %s973 = smul.addr %s969, 8
      %s974 = sadd.s32 %s972, %s973
      %s975 = smul.addr %s974, 8
      %s976 = scalar_lea.vmem %s3, %s975
      %p977 = scmp.lt.s32.totalorder %s34, 1
      %s978 = scalar_select %p977, %s34, 1
      %p979 = scmp.lt.s32.totalorder %s35, 1
      %s980 = scalar_select %p979, %s35, 1
      %s981 = smul.addr %s978, 2
      %s982 = sadd.s32 %s980, %s981
      %s983 = scalar_lea.vmem %s4, %s982
      %p984 = scmp.lt.s32.totalorder %s34, 1
      %s985 = scalar_select %p984, %s34, 1
      %p986 = scmp.lt.s32.totalorder %s35, 1
      %s987 = scalar_select %p986, %s35, 1
      %s988 = smul.addr %s985, 2
      %s989 = sadd.s32 %s987, %s988
      %s990 = scalar_lea.vmem %s5, %s989
      %p991 = scmp.lt.s32.totalorder %s34, 1
      %s992 = scalar_select %p991, %s34, 1
      %p993 = scmp.lt.s32.totalorder %s35, 1
      %s994 = scalar_select %p993, %s35, 1
      %s995 = smul.addr %s992, 2
      %s996 = sadd.s32 %s994, %s995
      %s997 = scalar_lea.vmem %s6, %s996
      %p998 = scmp.lt.s32.totalorder %s34, 1
      %s999 = scalar_select %p998, %s34, 1
      %p1000 = scmp.lt.s32.totalorder %s35, 1
      %s1001 = scalar_select %p1000, %s35, 1
      %s1002 = smul.addr %s1001, 4
      %s1003 = smul.addr %s999, 8
      %s1004 = sadd.s32 %s1002, %s1003
      %s1005 = smul.addr %s1004, 8
      %s1006 = scalar_lea.vmem %s7, %s1005
      %p1007 = scmp.lt.s32.totalorder %s34, 1
      %s1008 = scalar_select %p1007, %s34, 1
      %p1009 = scmp.lt.s32.totalorder %s35, 1
      %s1010 = scalar_select %p1009, %s35, 1
      %s1011 = smul.addr %s1008, 2
      %s1012 = sadd.s32 %s1010, %s1011
      %s1013 = scalar_lea.vmem %s8, %s1012
      %p1014 = scmp.lt.s32.totalorder %s34, 1
      %s1015 = scalar_select %p1014, %s34, 1
      %p1016 = scmp.lt.s32.totalorder %s35, 1
      %s1017 = scalar_select %p1016, %s35, 1
      %s1018 = smul.addr %s1017, 8
      %s1019 = smul.addr %s1015, 16
      %s1020 = sadd.s32 %s1018, %s1019
      %s1021 = smul.addr %s1020, 8
      %s1022 = scalar_lea.vmem %s9, %s1021
      %p1023 = scmp.lt.s32.totalorder %s34, 1
      %s1024 = scalar_select %p1023, %s34, 1
      %p1025 = scmp.lt.s32.totalorder %s35, 1
      %s1026 = scalar_select %p1025, %s35, 1
      %s1027 = smul.addr %s1024, 2
      %s1028 = sadd.s32 %s1026, %s1027
      %s1029 = scalar_lea.vmem %s10, %s1028
      %p1030 = scmp.lt.s32.totalorder %s34, 1
      %s1031 = scalar_select %p1030, %s34, 1
      %p1032 = scmp.lt.s32.totalorder %s35, 1
      %s1033 = scalar_select %p1032, %s35, 1
      %s1034 = smul.addr %s1031, 2
      %s1035 = sadd.s32 %s1033, %s1034
      %s1036 = scalar_lea.vmem %s11, %s1035
      %p1037 = scmp.lt.s32.totalorder %s34, 1
      %s1038 = scalar_select %p1037, %s34, 1
      %p1039 = scmp.lt.s32.totalorder %s35, 1
      %s1040 = scalar_select %p1039, %s35, 1
      %s1041 = smul.addr %s1038, 2
      %s1042 = sadd.s32 %s1040, %s1041
      %s1043 = scalar_lea.vmem %s12, %s1042
      %p1044 = scmp.lt.s32.totalorder %s34, 1
      %s1045 = scalar_select %p1044, %s34, 1
      %s1046 = smul.addr %s1045, 4
      %s1047 = smul.addr %s1046, 8
      %s1048 = scalar_lea.vmem %s13, %s1047
      %p1049 = scmp.lt.s32.totalorder %s34, 1
      %s1050 = scalar_select %p1049, %s34, 1
      %s1051 = scalar_lea.vmem %s14, %s1050
      %p1052 = scmp.lt.s32.totalorder %s34, 1
      %s1053 = scalar_select %p1052, %s34, 1
      %s1054 = scalar_lea.vmem %s15, %s1053
      %p1055 = scmp.lt.s32.totalorder %s34, 1
      %s1056 = scalar_select %p1055, %s34, 1
      %s1057 = scalar_lea.vmem %s16, %s1056
      %p1058 = scmp.lt.s32.totalorder %s34, 1
      %s1059 = scalar_select %p1058, %s34, 1
      %s1060 = smul.addr %s1059, 4
      %s1061 = smul.addr %s1060, 8
      %s1062 = scalar_lea.vmem %s17, %s1061
      %p1063 = scmp.lt.s32.totalorder %s34, 1
      %s1064 = scalar_select %p1063, %s34, 1
      %s1065 = scalar_lea.vmem %s18, %s1064
      %p1066 = scmp.lt.s32.totalorder %s34, 1
      %s1067 = scalar_select %p1066, %s34, 1
      %s1068 = smul.addr %s1067, 2
      %s1069 = smul.addr %s1068, 8
      %s1070 = scalar_lea.vmem %s19, %s1069
      %p1071 = scmp.eq.s32.totalorder %s35, 0
      // Predicated region
      $region97: #{electra_forward.1} parent=95 // pred_check
        %p1072 = pneg %p1071
      $region98: #{electra_forward.1} parent=95 // pred_check_branch
        %1074 = sbr.rel (%p1072) target = $region100
      $region99: #{electra_forward.1} parent=95 // pred_region
        %v1075 = vld [vmem:[%s951] sm:$0xff]
        %v1076 = vld [vmem:[%s951 + $0x8] sm:$0xff]
        %vm1077 = vcmask 261120
        %1078 = vst.msk [vmem:[#allocation2] sm:$0xff] %vm1077, %v1075
        %1079 = vst.msk [vmem:[#allocation2 + $0x8] sm:$0xff] %vm1077, %v1076
      $region100: #{electra_forward.1} parent=95 // pred_fallthru
        _
      %v1080 = vld [vmem:[#allocation2] sm:$0xff]
      %v1081 = vld [vmem:[#allocation2 + $0x8] sm:$0xff]
      %v1082 = vld [vmem:[%s960] sm:$0xff]
      %v1083 = vld [vmem:[%s960 + $0x8] sm:$0xff]
      %v1084 = vld [vmem:[%s960 + $0x10] sm:$0xff]
      %v1085 = vld [vmem:[%s960 + $0x18] sm:$0xff]
      %v1086 = vld [vmem:[%s967] sm:$0x1]
      %v1088 = vlaneseq
      %v1089 = vshrl.u32 %v1088, 7
      %v1090 = vsub.s32 0, %v1089
      %v1091 = vrot.slane %v1086, %v1090
      %vm1093 = vcmask 261120
      %v1095 = vsel %vm1093, %v1080, 0
      %v1098 = vsel %vm1093, %v1081, 0
      %1100 = vmatprep.subr.mxu0 0.0
      %1101 = vmatpush1.msra.mxu0 %v1082
      %1102 = vmatprep.subr.mxu0 0.0
      %1103 = vmatpush1.msra.mxu0 %v1083
      %1104 = vmatprep.subr.mxu0 0.0
      %1105 = vmatpush1.msra.mxu0 %v1084
      %1106 = vmatprep.subr.mxu0 0.0
      %1107 = vmatpush1.msra.mxu0 %v1085
      %1108 = vmatprep.subr.mxu0 0.0
      %1109 = vmatpush1.msra.mxu0 0.0
      %1110 = vmatprep.subr.mxu0 0.0
      %1111 = vmatpush1.msra.mxu0 0.0
      %1112 = vmatprep.subr.mxu0 0.0
      %1113 = vmatpush1.msra.mxu0 0.0
      %1114 = vmatprep.subr.mxu0 0.0
      %1115 = vmatpush1.msra.mxu0 0.0
      %1116 = vmatprep.subr.mxu0 0.0
      %1117 = vmatpush1.msra.mxu0 0.0
      %1118 = vmatprep.subr.mxu0 0.0
      %1119 = vmatpush1.msra.mxu0 0.0
      %1120 = vmatprep.subr.mxu0 0.0
      %1121 = vmatpush1.msra.mxu0 0.0
      %1122 = vmatprep.subr.mxu0 0.0
      %1123 = vmatpush1.msra.mxu0 0.0
      %1124 = vmatprep.subr.mxu0 0.0
      %1125 = vmatpush1.msra.mxu0 0.0
      %1126 = vmatprep.subr.mxu0 0.0
      %1127 = vmatpush1.msra.mxu0 0.0
      %1128 = vmatprep.subr.mxu0 0.0
      %1129 = vmatpush1.msra.mxu0 0.0
      %1130 = vmatprep.subr.mxu0 0.0
      %1131 = vmatpush1.msra.mxu0 0.0
      %1132 = vmatprep.subr.mxu0 0.0
      %1133 = vmatpush1.msra.mxu0 0.0
      %1134 = vmatprep.subr.mxu0 0.0
      %1135 = vmatpush1.msra.mxu0 0.0
      %1136 = vmatprep.subr.mxu0 0.0
      %1137 = vmatpush1.msra.mxu0 0.0
      %1138 = vmatprep.subr.mxu0 0.0
      %1139 = vmatpush1.msra.mxu0 0.0
      %1140 = vmatprep.subr.mxu0 0.0
      %1141 = vmatpush1.msra.mxu0 0.0
      %1142 = vmatprep.subr.mxu0 0.0
      %1143 = vmatpush1.msra.mxu0 0.0
      %1144 = vmatprep.subr.mxu0 0.0
      %1145 = vmatpush1.msra.mxu0 0.0
      %1146 = vmatprep.subr.mxu0 0.0
      %1147 = vmatpush1.msra.mxu0 0.0
      %1148 = vmatprep.subr.mxu0 0.0
      %1149 = vmatpush1.msra.mxu0 0.0
      %1150 = vmatprep.subr.mxu0 0.0
      %1151 = vmatpush1.msra.mxu0 0.0
      %1152 = vmatprep.subr.mxu0 0.0
      %1153 = vmatpush1.msra.mxu0 0.0
      %1154 = vmatprep.subr.mxu0 0.0
      %1155 = vmatpush1.msra.mxu0 0.0
      %1156 = vmatprep.subr.mxu0 0.0
      %1157 = vmatpush1.msra.mxu0 0.0
      %1158 = vmatprep.subr.mxu0 0.0
      %1159 = vmatpush1.msra.mxu0 0.0
      %1160 = vmatprep.subr.mxu0 0.0
      %1161 = vmatpush1.msra.mxu0 0.0
      %1162 = vmatprep.subr.mxu0 0.0
      %1163 = vmatpush1.msra.mxu0 0.0
      %1164 = vmatprep.mubr.f32.mxu0 0.0
      %1165 = vmatmul.mubr.f32.gmra.mrb[0].mxu0 %v1095
      %v1166 = vpop.f32.mrb[0].mxu0
      %v1167 = vadd.f32 %v1091, %v1166
      %v1168 = vpop.f32.mrb[0].mxu0
      %1169 = vmatprep.mubr.f32.mxu0 0.0
      %1170 = vmatmul.mubr.f32.gmra.mrb[0].mxu0 %v1098
      %v1171 = vpop.f32.mrb[0].mxu0
      %v1172 = vadd.f32 %v1091, %v1171
      %v1173 = vpop.f32.mrb[0].mxu0
      %1174 = vdwg.mxu0
      %1177 = vrot.lane.b32.xlu0 %v1167, 120
      %v1178 = vpop.permute.xlu0 %1177
      %1179 = vrot.lane.b32.xlu0 %v1172, 120
      %v1180 = vpop.permute.xlu0 %1179
      %1181 = vrot.lane.b32.xlu0 %v1167, 112
      %v1182 = vpop.permute.xlu0 %1181
      %1183 = vrot.lane.b32.xlu0 %v1172, 112
      %v1184 = vpop.permute.xlu0 %1183
      %1185 = vrot.lane.b32.xlu0 %v1167, 104
      %v1186 = vpop.permute.xlu0 %1185
      %1187 = vrot.lane.b32.xlu0 %v1172, 104
      %v1188 = vpop.permute.xlu0 %1187
      %1189 = vrot.lane.b32.xlu0 %v1167, 96
      %v1190 = vpop.permute.xlu0 %1189
      %vm1191 = vcmask 64512
      %v1192 = vsel %vm1191, %v1167, 0
      %v1194 = vsel %vm1191, %v1190, 0
      %1196 = vmatprep.subr.mxu0 0.0
      %1197 = vmatpush1.xpose.msra.mxu0 %v1194
      %1198 = vmatprep.subr.mxu0 0.0
      %1199 = vmatpush1.xpose.msra.mxu0 0.0
      %1200 = vmatprep.subr.mxu0 0.0
      %1201 = vmatpush1.xpose.msra.mxu0 0.0
      %1202 = vmatprep.subr.mxu0 0.0
      %1203 = vmatpush1.xpose.msra.mxu0 0.0
      %1204 = vmatprep.subr.mxu0 0.0
      %1205 = vmatpush1.xpose.msra.mxu0 0.0
      %1206 = vmatprep.subr.mxu0 0.0
      %1207 = vmatpush1.xpose.msra.mxu0 0.0
      %1208 = vmatprep.subr.mxu0 0.0
      %1209 = vmatpush1.xpose.msra.mxu0 0.0
      %1210 = vmatprep.subr.mxu0 0.0
      %1211 = vmatpush1.xpose.msra.mxu0 0.0
      %1212 = vmatprep.subr.mxu0 0.0
      %1213 = vmatpush1.xpose.msra.mxu0 0.0
      %1214 = vmatprep.subr.mxu0 0.0
      %1215 = vmatpush1.xpose.msra.mxu0 0.0
      %1216 = vmatprep.subr.mxu0 0.0
      %1217 = vmatpush1.xpose.msra.mxu0 0.0
      %1218 = vmatprep.subr.mxu0 0.0
      %1219 = vmatpush1.xpose.msra.mxu0 0.0
      %1220 = vmatprep.subr.mxu0 0.0
      %1221 = vmatpush1.xpose.msra.mxu0 0.0
      %1222 = vmatprep.subr.mxu0 0.0
      %1223 = vmatpush1.xpose.msra.mxu0 0.0
      %1224 = vmatprep.subr.mxu0 0.0
      %1225 = vmatpush1.xpose.msra.mxu0 0.0
      %1226 = vmatprep.subr.mxu0 0.0
      %1227 = vmatpush1.xpose.msra.mxu0 0.0
      %1228 = vmatprep.subr.mxu0 0.0
      %1229 = vmatpush1.xpose.msra.mxu0 0.0
      %1230 = vmatprep.subr.mxu0 0.0
      %1231 = vmatpush1.xpose.msra.mxu0 0.0
      %1232 = vmatprep.subr.mxu0 0.0
      %1233 = vmatpush1.xpose.msra.mxu0 0.0
      %1234 = vmatprep.subr.mxu0 0.0
      %1235 = vmatpush1.xpose.msra.mxu0 0.0
      %1236 = vmatprep.subr.mxu0 0.0
      %1237 = vmatpush1.xpose.msra.mxu0 0.0
      %1238 = vmatprep.subr.mxu0 0.0
      %1239 = vmatpush1.xpose.msra.mxu0 0.0
      %1240 = vmatprep.subr.mxu0 0.0
      %1241 = vmatpush1.xpose.msra.mxu0 0.0
      %1242 = vmatprep.subr.mxu0 0.0
      %1243 = vmatpush1.xpose.msra.mxu0 0.0
      %1244 = vmatprep.subr.mxu0 0.0
      %1245 = vmatpush1.xpose.msra.mxu0 0.0
      %1246 = vmatprep.subr.mxu0 0.0
      %1247 = vmatpush1.xpose.msra.mxu0 0.0
      %1248 = vmatprep.subr.mxu0 0.0
      %1249 = vmatpush1.xpose.msra.mxu0 0.0
      %1250 = vmatprep.subr.mxu0 0.0
      %1251 = vmatpush1.xpose.msra.mxu0 0.0
      %1252 = vmatprep.subr.mxu0 0.0
      %1253 = vmatpush1.xpose.msra.mxu0 0.0
      %1254 = vmatprep.subr.mxu0 0.0
      %1255 = vmatpush1.xpose.msra.mxu0 0.0
      %1256 = vmatprep.subr.mxu0 0.0
      %1257 = vmatpush1.xpose.msra.mxu0 0.0
      %1258 = vmatprep.subr.mxu0 0.0
      %1259 = vmatpush1.xpose.msra.mxu0 0.0
      %1260 = vmatprep.mubr.f32.mxu0 0.0
      %1261 = vmatmul.mubr.f32.gmra.mrb[0].mxu0 %v1192
      %v1262 = vpop.f32.mrb[0].mxu0
      %v1263 = vadd.f32 0.0, %v1262
      %v1264 = vpop.f32.mrb[0].mxu0
      %1265 = vdwg.mxu0
      %1266 = vrot.lane.b32.xlu0 %v1172, 96
      %v1267 = vpop.permute.xlu0 %1266
      %v1268 = vsel %vm1191, %v1172, 0
      %v1270 = vsel %vm1191, %v1267, 0
      %1272 = vmatprep.subr.mxu0 0.0
      %1273 = vmatpush1.xpose.msra.mxu0 %v1270
      %1274 = vmatprep.subr.mxu0 0.0
      %1275 = vmatpush1.xpose.msra.mxu0 0.0
      %1276 = vmatprep.subr.mxu0 0.0
      %1277 = vmatpush1.xpose.msra.mxu0 0.0
      %1278 = vmatprep.subr.mxu0 0.0
      %1279 = vmatpush1.xpose.msra.mxu0 0.0
      %1280 = vmatprep.subr.mxu0 0.0
      %1281 = vmatpush1.xpose.msra.mxu0 0.0
      %1282 = vmatprep.subr.mxu0 0.0
      %1283 = vmatpush1.xpose.msra.mxu0 0.0
      %1284 = vmatprep.subr.mxu0 0.0
      %1285 = vmatpush1.xpose.msra.mxu0 0.0
      %1286 = vmatprep.subr.mxu0 0.0
      %1287 = vmatpush1.xpose.msra.mxu0 0.0
      %1288 = vmatprep.subr.mxu0 0.0
      %1289 = vmatpush1.xpose.msra.mxu0 0.0
      %1290 = vmatprep.subr.mxu0 0.0
      %1291 = vmatpush1.xpose.msra.mxu0 0.0
      %1292 = vmatprep.subr.mxu0 0.0
      %1293 = vmatpush1.xpose.msra.mxu0 0.0
      %1294 = vmatprep.subr.mxu0 0.0
      %1295 = vmatpush1.xpose.msra.mxu0 0.0
      %1296 = vmatprep.subr.mxu0 0.0
      %1297 = vmatpush1.xpose.msra.mxu0 0.0
      %1298 = vmatprep.subr.mxu0 0.0
      %1299 = vmatpush1.xpose.msra.mxu0 0.0
      %1300 = vmatprep.subr.mxu0 0.0
      %1301 = vmatpush1.xpose.msra.mxu0 0.0
      %1302 = vmatprep.subr.mxu0 0.0
      %1303 = vmatpush1.xpose.msra.mxu0 0.0
      %1304 = vmatprep.subr.mxu0 0.0
      %1305 = vmatpush1.xpose.msra.mxu0 0.0
      %1306 = vmatprep.subr.mxu0 0.0
      %1307 = vmatpush1.xpose.msra.mxu0 0.0
      %1308 = vmatprep.subr.mxu0 0.0
      %1309 = vmatpush1.xpose.msra.mxu0 0.0
      %1310 = vmatprep.subr.mxu0 0.0
      %1311 = vmatpush1.xpose.msra.mxu0 0.0
      %1312 = vmatprep.subr.mxu0 0.0
      %1313 = vmatpush1.xpose.msra.mxu0 0.0
      %1314 = vmatprep.subr.mxu0 0.0
      %1315 = vmatpush1.xpose.msra.mxu0 0.0
      %1316 = vmatprep.subr.mxu0 0.0
      %1317 = vmatpush1.xpose.msra.mxu0 0.0
      %1318 = vmatprep.subr.mxu0 0.0
      %1319 = vmatpush1.xpose.msra.mxu0 0.0
      %1320 = vmatprep.subr.mxu0 0.0
      %1321 = vmatpush1.xpose.msra.mxu0 0.0
      %1322 = vmatprep.subr.mxu0 0.0
      %1323 = vmatpush1.xpose.msra.mxu0 0.0
      %1324 = vmatprep.subr.mxu0 0.0
      %1325 = vmatpush1.xpose.msra.mxu0 0.0
      %1326 = vmatprep.subr.mxu0 0.0
      %1327 = vmatpush1.xpose.msra.mxu0 0.0
      %1328 = vmatprep.subr.mxu0 0.0
      %1329 = vmatpush1.xpose.msra.mxu0 0.0
      %1330 = vmatprep.subr.mxu0 0.0
      %1331 = vmatpush1.xpose.msra.mxu0 0.0
      %1332 = vmatprep.subr.mxu0 0.0
      %1333 = vmatpush1.xpose.msra.mxu0 0.0
      %1334 = vmatprep.subr.mxu0 0.0
      %1335 = vmatpush1.xpose.msra.mxu0 0.0
      %1336 = vmatprep.mubr.f32.mxu0 0.0
      %1337 = vmatmul.mubr.f32.gmra.mrb[0].mxu0 %v1268
      %v1338 = vpop.f32.mrb[0].mxu0
      %v1339 = vadd.f32 0.0, %v1338
      %v1340 = vpop.f32.mrb[0].mxu0
      %1341 = vdwg.mxu0
      %1342 = vrot.lane.b32.xlu0 %v1178, 96
      %v1343 = vpop.permute.xlu0 %1342
      %v1344 = vsel %vm1191, %v1178, 0
      %v1346 = vsel %vm1191, %v1343, 0
      %1348 = vmatprep.subr.mxu0 0.0
      %1349 = vmatpush1.xpose.msra.mxu0 %v1346
      %1350 = vmatprep.subr.mxu0 0.0
      %1351 = vmatpush1.xpose.msra.mxu0 0.0
      %1352 = vmatprep.subr.mxu0 0.0
      %1353 = vmatpush1.xpose.msra.mxu0 0.0
      %1354 = vmatprep.subr.mxu0 0.0
      %1355 = vmatpush1.xpose.msra.mxu0 0.0
      %1356 = vmatprep.subr.mxu0 0.0
      %1357 = vmatpush1.xpose.msra.mxu0 0.0
      %1358 = vmatprep.subr.mxu0 0.0
      %1359 = vmatpush1.xpose.msra.mxu0 0.0
      %1360 = vmatprep.subr.mxu0 0.0
      %1361 = vmatpush1.xpose.msra.mxu0 0.0
      %1362 = vmatprep.subr.mxu0 0.0
      %1363 = vmatpush1.xpose.msra.mxu0 0.0
      %1364 = vmatprep.subr.mxu0 0.0
      %1365 = vmatpush1.xpose.msra.mxu0 0.0
      %1366 = vmatprep.subr.mxu0 0.0
      %1367 = vmatpush1.xpose.msra.mxu0 0.0
      %1368 = vmatprep.subr.mxu0 0.0
      %1369 = vmatpush1.xpose.msra.mxu0 0.0
      %1370 = vmatprep.subr.mxu0 0.0
      %1371 = vmatpush1.xpose.msra.mxu0 0.0
      %1372 = vmatprep.subr.mxu0 0.0
      %1373 = vmatpush1.xpose.msra.mxu0 0.0
      %1374 = vmatprep.subr.mxu0 0.0
      %1375 = vmatpush1.xpose.msra.mxu0 0.0
      %1376 = vmatprep.subr.mxu0 0.0
      %1377 = vmatpush1.xpose.msra.mxu0 0.0
      %1378 = vmatprep.subr.mxu0 0.0
      %1379 = vmatpush1.xpose.msra.mxu0 0.0
      %1380 = vmatprep.subr.mxu0 0.0
      %1381 = vmatpush1.xpose.msra.mxu0 0.0
      %1382 = vmatprep.subr.mxu0 0.0
      %1383 = vmatpush1.xpose.msra.mxu0 0.0
      %1384 = vmatprep.subr.mxu0 0.0
      %1385 = vmatpush1.xpose.msra.mxu0 0.0
      %1386 = vmatprep.subr.mxu0 0.0
      %1387 = vmatpush1.xpose.msra.mxu0 0.0
      %1388 = vmatprep.subr.mxu0 0.0
      %1389 = vmatpush1.xpose.msra.mxu0 0.0
      %1390 = vmatprep.subr.mxu0 0.0
      %1391 = vmatpush1.xpose.msra.mxu0 0.0
      %1392 = vmatprep.subr.mxu0 0.0
      %1393 = vmatpush1.xpose.msra.mxu0 0.0
      %1394 = vmatprep.subr.mxu0 0.0
      %1395 = vmatpush1.xpose.msra.mxu0 0.0
      %1396 = vmatprep.subr.mxu0 0.0
      %1397 = vmatpush1.xpose.msra.mxu0 0.0
      %1398 = vmatprep.subr.mxu0 0.0
      %1399 = vmatpush1.xpose.msra.mxu0 0.0
      %1400 = vmatprep.subr.mxu0 0.0
      %1401 = vmatpush1.xpose.msra.mxu0 0.0
      %1402 = vmatprep.subr.mxu0 0.0
      %1403 = vmatpush1.xpose.msra.mxu0 0.0
      %1404 = vmatprep.subr.mxu0 0.0
      %1405 = vmatpush1.xpose.msra.mxu0 0.0
      %1406 = vmatprep.subr.mxu0 0.0
      %1407 = vmatpush1.xpose.msra.mxu0 0.0
      %1408 = vmatprep.subr.mxu0 0.0
      %1409 = vmatpush1.xpose.msra.mxu0 0.0
      %1410 = vmatprep.subr.mxu0 0.0
      %1411 = vmatpush1.xpose.msra.mxu0 0.0
      %1412 = vmatprep.mubr.f32.mxu0 0.0
      %1413 = vmatmul.mubr.f32.gmra.mrb[0].mxu0 %v1344
      %v1414 = vpop.f32.mrb[0].mxu0
      %v1415 = vadd.f32 0.0, %v1414
      %v1416 = vpop.f32.mrb[0].mxu0
      %1417 = vdwg.mxu0
      %1418 = vrot.lane.b32.xlu0 %v1180, 96
      %v1419 = vpop.permute.xlu0 %1418
      %v1420 = vsel %vm1191, %v1180, 0
      %v1422 = vsel %vm1191, %v1419, 0
      %1424 = vmatprep.subr.mxu0 0.0
      %1425 = vmatpush1.xpose.msra.mxu0 %v1422
      %1426 = vmatprep.subr.mxu0 0.0
      %1427 = vmatpush1.xpose.msra.mxu0 0.0
      %1428 = vmatprep.subr.mxu0 0.0
      %1429 = vmatpush1.xpose.msra.mxu0 0.0
      %1430 = vmatprep.subr.mxu0 0.0
      %1431 = vmatpush1.xpose.msra.mxu0 0.0
      %1432 = vmatprep.subr.mxu0 0.0
      %1433 = vmatpush1.xpose.msra.mxu0 0.0
      %1434 = vmatprep.subr.mxu0 0.0
      %1435 = vmatpush1.xpose.msra.mxu0 0.0
      %1436 = vmatprep.subr.mxu0 0.0
      %1437 = vmatpush1.xpose.msra.mxu0 0.0
      %1438 = vmatprep.subr.mxu0 0.0
      %1439 = vmatpush1.xpose.msra.mxu0 0.0
      %1440 = vmatprep.subr.mxu0 0.0
      %1441 = vmatpush1.xpose.msra.mxu0 0.0
      %1442 = vmatprep.subr.mxu0 0.0
      %1443 = vmatpush1.xpose.msra.mxu0 0.0
      %1444 = vmatprep.subr.mxu0 0.0
      %1445 = vmatpush1.xpose.msra.mxu0 0.0
      %1446 = vmatprep.subr.mxu0 0.0
      %1447 = vmatpush1.xpose.msra.mxu0 0.0
      %1448 = vmatprep.subr.mxu0 0.0
      %1449 = vmatpush1.xpose.msra.mxu0 0.0
      %1450 = vmatprep.subr.mxu0 0.0
      %1451 = vmatpush1.xpose.msra.mxu0 0.0
      %1452 = vmatprep.subr.mxu0 0.0
      %1453 = vmatpush1.xpose.msra.mxu0 0.0
      %1454 = vmatprep.subr.mxu0 0.0
      %1455 = vmatpush1.xpose.msra.mxu0 0.0
      %1456 = vmatprep.subr.mxu0 0.0
      %1457 = vmatpush1.xpose.msra.mxu0 0.0
      %1458 = vmatprep.subr.mxu0 0.0
      %1459 = vmatpush1.xpose.msra.mxu0 0.0
      %1460 = vmatprep.subr.mxu0 0.0
      %1461 = vmatpush1.xpose.msra.mxu0 0.0
      %1462 = vmatprep.subr.mxu0 0.0
      %1463 = vmatpush1.xpose.msra.mxu0 0.0
      %1464 = vmatprep.subr.mxu0 0.0
      %1465 = vmatpush1.xpose.msra.mxu0 0.0
      %1466 = vmatprep.subr.mxu0 0.0
      %1467 = vmatpush1.xpose.msra.mxu0 0.0
      %1468 = vmatprep.subr.mxu0 0.0
      %1469 = vmatpush1.xpose.msra.mxu0 0.0
      %1470 = vmatprep.subr.mxu0 0.0
      %1471 = vmatpush1.xpose.msra.mxu0 0.0
      %1472 = vmatprep.subr.mxu0 0.0
      %1473 = vmatpush1.xpose.msra.mxu0 0.0
      %1474 = vmatprep.subr.mxu0 0.0
      %1475 = vmatpush1.xpose.msra.mxu0 0.0
      %1476 = vmatprep.subr.mxu0 0.0
      %1477 = vmatpush1.xpose.msra.mxu0 0.0
      %1478 = vmatprep.subr.mxu0 0.0
      %1479 = vmatpush1.xpose.msra.mxu0 0.0
      %1480 = vmatprep.subr.mxu0 0.0
      %1481 = vmatpush1.xpose.msra.mxu0 0.0
      %1482 = vmatprep.subr.mxu0 0.0
      %1483 = vmatpush1.xpose.msra.mxu0 0.0
      %1484 = vmatprep.subr.mxu0 0.0
      %1485 = vmatpush1.xpose.msra.mxu0 0.0
      %1486 = vmatprep.subr.mxu0 0.0
      %1487 = vmatpush1.xpose.msra.mxu0 0.0
      %1488 = vmatprep.mubr.f32.mxu0 0.0
      %1489 = vmatmul.mubr.f32.gmra.mrb[0].mxu0 %v1420
      %v1490 = vpop.f32.mrb[0].mxu0
      %v1491 = vadd.f32 0.0, %v1490
      %v1492 = vpop.f32.mrb[0].mxu0
      %1493 = vdwg.mxu0
      %1494 = vrot.lane.b32.xlu0 %v1182, 96
      %v1495 = vpop.permute.xlu0 %1494
      %v1496 = vsel %vm1191, %v1182, 0
      %v1498 = vsel %vm1191, %v1495, 0
      %1500 = vmatprep.subr.mxu0 0.0
      %1501 = vmatpush1.xpose.msra.mxu0 %v1498
      %1502 = vmatprep.subr.mxu0 0.0
      %1503 = vmatpush1.xpose.msra.mxu0 0.0
      %1504 = vmatprep.subr.mxu0 0.0
      %1505 = vmatpush1.xpose.msra.mxu0 0.0
      %1506 = vmatprep.subr.mxu0 0.0
      %1507 = vmatpush1.xpose.msra.mxu0 0.0
      %1508 = vmatprep.subr.mxu0 0.0
      %1509 = vmatpush1.xpose.msra.mxu0 0.0
      %1510 = vmatprep.subr.mxu0 0.0
      %1511 = vmatpush1.xpose.msra.mxu0 0.0
      %1512 = vmatprep.subr.mxu0 0.0
      %1513 = vmatpush1.xpose.msra.mxu0 0.0
      %1514 = vmatprep.subr.mxu0 0.0
      %1515 = vmatpush1.xpose.msra.mxu0 0.0
      %1516 = vmatprep.subr.mxu0 0.0
      %1517 = vmatpush1.xpose.msra.mxu0 0.0
      %1518 = vmatprep.subr.mxu0 0.0
      %1519 = vmatpush1.xpose.msra.mxu0 0.0
      %1520 = vmatprep.subr.mxu0 0.0
      %1521 = vmatpush1.xpose.msra.mxu0 0.0
      %1522 = vmatprep.subr.mxu0 0.0
      %1523 = vmatpush1.xpose.msra.mxu0 0.0
      %1524 = vmatprep.subr.mxu0 0.0
      %1525 = vmatpush1.xpose.msra.mxu0 0.0
      %1526 = vmatprep.subr.mxu0 0.0
      %1527 = vmatpush1.xpose.msra.mxu0 0.0
      %1528 = vmatprep.subr.mxu0 0.0
      %1529 = vmatpush1.xpose.msra.mxu0 0.0
      %1530 = vmatprep.subr.mxu0 0.0
      %1531 = vmatpush1.xpose.msra.mxu0 0.0
      %1532 = vmatprep.subr.mxu0 0.0
      %1533 = vmatpush1.xpose.msra.mxu0 0.0
      %1534 = vmatprep.subr.mxu0 0.0
      %1535 = vmatpush1.xpose.msra.mxu0 0.0
      %1536 = vmatprep.subr.mxu0 0.0
      %1537 = vmatpush1.xpose.msra.mxu0 0.0
      %1538 = vmatprep.subr.mxu0 0.0
      %1539 = vmatpush1.xpose.msra.mxu0 0.0
      %1540 = vmatprep.subr.mxu0 0.0
      %1541 = vmatpush1.xpose.msra.mxu0 0.0
      %1542 = vmatprep.subr.mxu0 0.0
      %1543 = vmatpush1.xpose.msra.mxu0 0.0
      %1544 = vmatprep.subr.mxu0 0.0
      %1545 = vmatpush1.xpose.msra.mxu0 0.0
      %1546 = vmatprep.subr.mxu0 0.0
      %1547 = vmatpush1.xpose.msra.mxu0 0.0
      %1548 = vmatprep.subr.mxu0 0.0
      %1549 = vmatpush1.xpose.msra.mxu0 0.0
      %1550 = vmatprep.subr.mxu0 0.0
      %1551 = vmatpush1.xpose.msra.mxu0 0.0
      %1552 = vmatprep.subr.mxu0 0.0
      %1553 = vmatpush1.xpose.msra.mxu0 0.0
      %1554 = vmatprep.subr.mxu0 0.0
      %1555 = vmatpush1.xpose.msra.mxu0 0.0
      %1556 = vmatprep.subr.mxu0 0.0
      %1557 = vmatpush1.xpose.msra.mxu0 0.0
      %1558 = vmatprep.subr.mxu0 0.0
      %1559 = vmatpush1.xpose.msra.mxu0 0.0
      %1560 = vmatprep.subr.mxu0 0.0
      %1561 = vmatpush1.xpose.msra.mxu0 0.0
      %1562 = vmatprep.subr.mxu0 0.0
      %1563 = vmatpush1.xpose.msra.mxu0 0.0
      %1564 = vmatprep.mubr.f32.mxu0 0.0
      %1565 = vmatmul.mubr.f32.gmra.mrb[0].mxu0 %v1496
      %v1566 = vpop.f32.mrb[0].mxu0
      %v1567 = vadd.f32 0.0, %v1566
      %v1568 = vpop.f32.mrb[0].mxu0
      %1569 = vdwg.mxu0
      %1570 = vrot.lane.b32.xlu0 %v1184, 96
      %v1571 = vpop.permute.xlu0 %1570
      %v1572 = vsel %vm1191, %v1184, 0
      %v1574 = vsel %vm1191, %v1571, 0
      %1576 = vmatprep.subr.mxu0 0.0
      %1577 = vmatpush1.xpose.msra.mxu0 %v1574
      %1578 = vmatprep.subr.mxu0 0.0
      %1579 = vmatpush1.xpose.msra.mxu0 0.0
      %1580 = vmatprep.subr.mxu0 0.0
      %1581 = vmatpush1.xpose.msra.mxu0 0.0
      %1582 = vmatprep.subr.mxu0 0.0
      %1583 = vmatpush1.xpose.msra.mxu0 0.0
      %1584 = vmatprep.subr.mxu0 0.0
      %1585 = vmatpush1.xpose.msra.mxu0 0.0
      %1586 = vmatprep.subr.mxu0 0.0
      %1587 = vmatpush1.xpose.msra.mxu0 0.0
      %1588 = vmatprep.subr.mxu0 0.0
      %1589 = vmatpush1.xpose.msra.mxu0 0.0
      %1590 = vmatprep.subr.mxu0 0.0
      %1591 = vmatpush1.xpose.msra.mxu0 0.0
      %1592 = vmatprep.subr.mxu0 0.0
      %1593 = vmatpush1.xpose.msra.mxu0 0.0
      %1594 = vmatprep.subr.mxu0 0.0
      %1595 = vmatpush1.xpose.msra.mxu0 0.0
      %1596 = vmatprep.subr.mxu0 0.0
      %1597 = vmatpush1.xpose.msra.mxu0 0.0
      %1598 = vmatprep.subr.mxu0 0.0
      %1599 = vmatpush1.xpose.msra.mxu0 0.0
      %1600 = vmatprep.subr.mxu0 0.0
      %1601 = vmatpush1.xpose.msra.mxu0 0.0
      %1602 = vmatprep.subr.mxu0 0.0
      %1603 = vmatpush1.xpose.msra.mxu0 0.0
      %1604 = vmatprep.subr.mxu0 0.0
      %1605 = vmatpush1.xpose.msra.mxu0 0.0
      %1606 = vmatprep.subr.mxu0 0.0
      %1607 = vmatpush1.xpose.msra.mxu0 0.0
      %1608 = vmatprep.subr.mxu0 0.0
      %1609 = vmatpush1.xpose.msra.mxu0 0.0
      %1610 = vmatprep.subr.mxu0 0.0
      %1611 = vmatpush1.xpose.msra.mxu0 0.0
      %1612 = vmatprep.subr.mxu0 0.0
      %1613 = vmatpush1.xpose.msra.mxu0 0.0
      %1614 = vmatprep.subr.mxu0 0.0
      %1615 = vmatpush1.xpose.msra.mxu0 0.0
      %1616 = vmatprep.subr.mxu0 0.0
      %1617 = vmatpush1.xpose.msra.mxu0 0.0
      %1618 = vmatprep.subr.mxu0 0.0
      %1619 = vmatpush1.xpose.msra.mxu0 0.0
      %1620 = vmatprep.subr.mxu0 0.0
      %1621 = vmatpush1.xpose.msra.mxu0 0.0
      %1622 = vmatprep.subr.mxu0 0.0
      %1623 = vmatpush1.xpose.msra.mxu0 0.0
      %1624 = vmatprep.subr.mxu0 0.0
      %1625 = vmatpush1.xpose.msra.mxu0 0.0
      %1626 = vmatprep.subr.mxu0 0.0
      %1627 = vmatpush1.xpose.msra.mxu0 0.0
      %1628 = vmatprep.subr.mxu0 0.0
      %1629 = vmatpush1.xpose.msra.mxu0 0.0
      %1630 = vmatprep.subr.mxu0 0.0
      %1631 = vmatpush1.xpose.msra.mxu0 0.0
      %1632 = vmatprep.subr.mxu0 0.0
      %1633 = vmatpush1.xpose.msra.mxu0 0.0
      %1634 = vmatprep.subr.mxu0 0.0
      %1635 = vmatpush1.xpose.msra.mxu0 0.0
      %1636 = vmatprep.subr.mxu0 0.0
      %1637 = vmatpush1.xpose.msra.mxu0 0.0
      %1638 = vmatprep.subr.mxu0 0.0
      %1639 = vmatpush1.xpose.msra.mxu0 0.0
      %1640 = vmatprep.mubr.f32.mxu0 0.0
      %1641 = vmatmul.mubr.f32.gmra.mrb[0].mxu0 %v1572
      %v1642 = vpop.f32.mrb[0].mxu0
      %v1643 = vadd.f32 0.0, %v1642
      %v1644 = vpop.f32.mrb[0].mxu0
      %1645 = vdwg.mxu0
      %1646 = vrot.lane.b32.xlu0 %v1186, 96
      %v1647 = vpop.permute.xlu0 %1646
      %v1648 = vsel %vm1191, %v1186, 0
      %v1650 = vsel %vm1191, %v1647, 0
      %1652 = vmatprep.subr.mxu0 0.0
      %1653 = vmatpush1.xpose.msra.mxu0 %v1650
      %1654 = vmatprep.subr.mxu0 0.0
      %1655 = vmatpush1.xpose.msra.mxu0 0.0
      %1656 = vmatprep.subr.mxu0 0.0
      %1657 = vmatpush1.xpose.msra.mxu0 0.0
      %1658 = vmatprep.subr.mxu0 0.0
      %1659 = vmatpush1.xpose.msra.mxu0 0.0
      %1660 = vmatprep.subr.mxu0 0.0
      %1661 = vmatpush1.xpose.msra.mxu0 0.0
      %1662 = vmatprep.subr.mxu0 0.0
      %1663 = vmatpush1.xpose.msra.mxu0 0.0
      %1664 = vmatprep.subr.mxu0 0.0
      %1665 = vmatpush1.xpose.msra.mxu0 0.0
      %1666 = vmatprep.subr.mxu0 0.0
      %1667 = vmatpush1.xpose.msra.mxu0 0.0
      %1668 = vmatprep.subr.mxu0 0.0
      %1669 = vmatpush1.xpose.msra.mxu0 0.0
      %1670 = vmatprep.subr.mxu0 0.0
      %1671 = vmatpush1.xpose.msra.mxu0 0.0
      %1672 = vmatprep.subr.mxu0 0.0
      %1673 = vmatpush1.xpose.msra.mxu0 0.0
      %1674 = vmatprep.subr.mxu0 0.0
      %1675 = vmatpush1.xpose.msra.mxu0 0.0
      %1676 = vmatprep.subr.mxu0 0.0
      %1677 = vmatpush1.xpose.msra.mxu0 0.0
      %1678 = vmatprep.subr.mxu0 0.0
      %1679 = vmatpush1.xpose.msra.mxu0 0.0
      %1680 = vmatprep.subr.mxu0 0.0
      %1681 = vmatpush1.xpose.msra.mxu0 0.0
      %1682 = vmatprep.subr.mxu0 0.0
      %1683 = vmatpush1.xpose.msra.mxu0 0.0
      %1684 = vmatprep.subr.mxu0 0.0
      %1685 = vmatpush1.xpose.msra.mxu0 0.0
      %1686 = vmatprep.subr.mxu0 0.0
      %1687 = vmatpush1.xpose.msra.mxu0 0.0
      %1688 = vmatprep.subr.mxu0 0.0
      %1689 = vmatpush1.xpose.msra.mxu0 0.0
      %1690 = vmatprep.subr.mxu0 0.0
      %1691 = vmatpush1.xpose.msra.mxu0 0.0
      %1692 = vmatprep.subr.mxu0 0.0
      %1693 = vmatpush1.xpose.msra.mxu0 0.0
      %1694 = vmatprep.subr.mxu0 0.0
      %1695 = vmatpush1.xpose.msra.mxu0 0.0
      %1696 = vmatprep.subr.mxu0 0.0
      %1697 = vmatpush1.xpose.msra.mxu0 0.0
      %1698 = vmatprep.subr.mxu0 0.0
      %1699 = vmatpush1.xpose.msra.mxu0 0.0
      %1700 = vmatprep.subr.mxu0 0.0
      %1701 = vmatpush1.xpose.msra.mxu0 0.0
      %1702 = vmatprep.subr.mxu0 0.0
      %1703 = vmatpush1.xpose.msra.mxu0 0.0
      %1704 = vmatprep.subr.mxu0 0.0
      %1705 = vmatpush1.xpose.msra.mxu0 0.0
      %1706 = vmatprep.subr.mxu0 0.0
      %1707 = vmatpush1.xpose.msra.mxu0 0.0
      %1708 = vmatprep.subr.mxu0 0.0
      %1709 = vmatpush1.xpose.msra.mxu0 0.0
      %1710 = vmatprep.subr.mxu0 0.0
      %1711 = vmatpush1.xpose.msra.mxu0 0.0
      %1712 = vmatprep.subr.mxu0 0.0
      %1713 = vmatpush1.xpose.msra.mxu0 0.0
      %1714 = vmatprep.subr.mxu0 0.0
      %1715 = vmatpush1.xpose.msra.mxu0 0.0
      %1716 = vmatprep.mubr.f32.mxu0 0.0
      %1717 = vmatmul.mubr.f32.gmra.mrb[0].mxu0 %v1648
      %v1718 = vpop.f32.mrb[0].mxu0
      %v1719 = vadd.f32 0.0, %v1718
      %v1720 = vpop.f32.mrb[0].mxu0
      %1721 = vdwg.mxu0
      %1722 = vrot.lane.b32.xlu0 %v1188, 96
      %v1723 = vpop.permute.xlu0 %1722
      %v1724 = vsel %vm1191, %v1188, 0
      %v1726 = vsel %vm1191, %v1723, 0
      %1728 = vmatprep.subr.mxu0 0.0
      %1729 = vmatpush1.xpose.msra.mxu0 %v1726
      %1730 = vmatprep.subr.mxu0 0.0
      %1731 = vmatpush1.xpose.msra.mxu0 0.0
      %1732 = vmatprep.subr.mxu0 0.0
      %1733 = vmatpush1.xpose.msra.mxu0 0.0
      %1734 = vmatprep.subr.mxu0 0.0
      %1735 = vmatpush1.xpose.msra.mxu0 0.0
      %1736 = vmatprep.subr.mxu0 0.0
      %1737 = vmatpush1.xpose.msra.mxu0 0.0
      %1738 = vmatprep.subr.mxu0 0.0
      %1739 = vmatpush1.xpose.msra.mxu0 0.0
      %1740 = vmatprep.subr.mxu0 0.0
      %1741 = vmatpush1.xpose.msra.mxu0 0.0
      %1742 = vmatprep.subr.mxu0 0.0
      %1743 = vmatpush1.xpose.msra.mxu0 0.0
      %1744 = vmatprep.subr.mxu0 0.0
      %1745 = vmatpush1.xpose.msra.mxu0 0.0
      %1746 = vmatprep.subr.mxu0 0.0
      %1747 = vmatpush1.xpose.msra.mxu0 0.0
      %1748 = vmatprep.subr.mxu0 0.0
      %1749 = vmatpush1.xpose.msra.mxu0 0.0
      %1750 = vmatprep.subr.mxu0 0.0
      %1751 = vmatpush1.xpose.msra.mxu0 0.0
      %1752 = vmatprep.subr.mxu0 0.0
      %1753 = vmatpush1.xpose.msra.mxu0 0.0
      %1754 = vmatprep.subr.mxu0 0.0
      %1755 = vmatpush1.xpose.msra.mxu0 0.0
      %1756 = vmatprep.subr.mxu0 0.0
      %1757 = vmatpush1.xpose.msra.mxu0 0.0
      %1758 = vmatprep.subr.mxu0 0.0
      %1759 = vmatpush1.xpose.msra.mxu0 0.0
      %1760 = vmatprep.subr.mxu0 0.0
      %1761 = vmatpush1.xpose.msra.mxu0 0.0
      %1762 = vmatprep.subr.mxu0 0.0
      %1763 = vmatpush1.xpose.msra.mxu0 0.0
      %1764 = vmatprep.subr.mxu0 0.0
      %1765 = vmatpush1.xpose.msra.mxu0 0.0
      %1766 = vmatprep.subr.mxu0 0.0
      %1767 = vmatpush1.xpose.msra.mxu0 0.0
      %1768 = vmatprep.subr.mxu0 0.0
      %1769 = vmatpush1.xpose.msra.mxu0 0.0
      %1770 = vmatprep.subr.mxu0 0.0
      %1771 = vmatpush1.xpose.msra.mxu0 0.0
      %1772 = vmatprep.subr.mxu0 0.0
      %1773 = vmatpush1.xpose.msra.mxu0 0.0
      %1774 = vmatprep.subr.mxu0 0.0
      %1775 = vmatpush1.xpose.msra.mxu0 0.0
      %1776 = vmatprep.subr.mxu0 0.0
      %1777 = vmatpush1.xpose.msra.mxu0 0.0
      %1778 = vmatprep.subr.mxu0 0.0
      %1779 = vmatpush1.xpose.msra.mxu0 0.0
      %1780 = vmatprep.subr.mxu0 0.0
      %1781 = vmatpush1.xpose.msra.mxu0 0.0
      %1782 = vmatprep.subr.mxu0 0.0
      %1783 = vmatpush1.xpose.msra.mxu0 0.0
      %1784 = vmatprep.subr.mxu0 0.0
      %1785 = vmatpush1.xpose.msra.mxu0 0.0
      %1786 = vmatprep.subr.mxu0 0.0
      %1787 = vmatpush1.xpose.msra.mxu0 0.0
      %1788 = vmatprep.subr.mxu0 0.0
      %1789 = vmatpush1.xpose.msra.mxu0 0.0
      %1790 = vmatprep.subr.mxu0 0.0
      %1791 = vmatpush1.xpose.msra.mxu0 0.0
      %1792 = vmatprep.mubr.f32.mxu0 0.0
      %1793 = vmatmul.mubr.f32.gmra.mrb[0].mxu0 %v1724
      %v1794 = vpop.f32.mrb[0].mxu0
      %v1795 = vadd.f32 0.0, %v1794
      %v1796 = vpop.f32.mrb[0].mxu0
      %1797 = vdwg.mxu0
      %v1798 = vsel %vm1191, %v1263, -inf
      %1799 = vmax.xlane.f32.xlu0 %v1798
      %v1800 = vpop.xlane.xlu0 %1799
      %v1801 = vsel %vm1191, %v1339, -inf
      %1802 = vmax.xlane.f32.xlu0 %v1801
      %v1803 = vpop.xlane.xlu0 %1802
      %v1804 = vsel %vm1191, %v1415, -inf
      %1805 = vmax.xlane.f32.xlu0 %v1804
      %v1806 = vpop.xlane.xlu0 %1805
      %v1807 = vsel %vm1191, %v1491, -inf
      %1808 = vmax.xlane.f32.xlu0 %v1807
      %v1809 = vpop.xlane.xlu0 %1808
      %v1810 = vsel %vm1191, %v1567, -inf
      %1811 = vmax.xlane.f32.xlu0 %v1810
      %v1812 = vpop.xlane.xlu0 %1811
      %v1813 = vsel %vm1191, %v1643, -inf
      %1814 = vmax.xlane.f32.xlu0 %v1813
      %v1815 = vpop.xlane.xlu0 %1814
      %v1816 = vsel %vm1191, %v1719, -inf
      %1817 = vmax.xlane.f32.xlu0 %v1816
      %v1818 = vpop.xlane.xlu0 %1817
      %v1819 = vsel %vm1191, %v1795, -inf
      %1820 = vmax.xlane.f32.xlu0 %v1819
      %v1821 = vpop.xlane.xlu0 %1820
      %v1822 = vsub.f32 %v1263, %v1800
      %v1823 = vsub.f32 %v1339, %v1803
      %v1824 = vsub.f32 %v1415, %v1806
      %v1825 = vsub.f32 %v1491, %v1809
      %v1826 = vsub.f32 %v1567, %v1812
      %v1827 = vsub.f32 %v1643, %v1815
      %v1828 = vsub.f32 %v1719, %v1818
      %v1829 = vsub.f32 %v1795, %v1821
      %v1830 = vmul.f32 %v1822, 1.442695
      %v1831 = vpow.pop %v1830
      %v1832 = vmul.f32 %v1823, 1.442695
      %v1833 = vpow.pop %v1832
      %v1834 = vmul.f32 %v1824, 1.442695
      %v1835 = vpow.pop %v1834
      %v1836 = vmul.f32 %v1825, 1.442695
      %v1837 = vpow.pop %v1836
      %v1838 = vmul.f32 %v1826, 1.442695
      %v1839 = vpow.pop %v1838
      %v1840 = vmul.f32 %v1827, 1.442695
      %v1841 = vpow.pop %v1840
      %v1842 = vmul.f32 %v1828, 1.442695
      %v1843 = vpow.pop %v1842
      %v1844 = vmul.f32 %v1829, 1.442695
      %v1845 = vpow.pop %v1844
      %v1846 = vsel %vm1191, %v1831, 0.0
      %1847 = vadd.xlane.f32.xlu0 %v1846
      %v1848 = vpop.xlane.xlu0 %1847
      %v1849 = vsel %vm1191, %v1833, 0.0
      %1850 = vadd.xlane.f32.xlu0 %v1849
      %v1851 = vpop.xlane.xlu0 %1850
      %v1852 = vsel %vm1191, %v1835, 0.0
      %1853 = vadd.xlane.f32.xlu0 %v1852
      %v1854 = vpop.xlane.xlu0 %1853
      %v1855 = vsel %vm1191, %v1837, 0.0
      %1856 = vadd.xlane.f32.xlu0 %v1855
      %v1857 = vpop.xlane.xlu0 %1856
      %v1858 = vsel %vm1191, %v1839, 0.0
      %1859 = vadd.xlane.f32.xlu0 %v1858
      %v1860 = vpop.xlane.xlu0 %1859
      %v1861 = vsel %vm1191, %v1841, 0.0
      %1862 = vadd.xlane.f32.xlu0 %v1861
      %v1863 = vpop.xlane.xlu0 %1862
      %v1864 = vsel %vm1191, %v1843, 0.0
      %1865 = vadd.xlane.f32.xlu0 %v1864
      %v1866 = vpop.xlane.xlu0 %1865
      %v1867 = vsel %vm1191, %v1845, 0.0
      %1868 = vadd.xlane.f32.xlu0 %v1867
      %v1869 = vpop.xlane.xlu0 %1868
      %v1870 = vrcp.pop %v1848
      %v1871 = vrcp.pop %v1851
      %v1872 = vrcp.pop %v1854
      %v1873 = vrcp.pop %v1857
      %v1874 = vrcp.pop %v1860
      %v1875 = vrcp.pop %v1863
      %v1876 = vrcp.pop %v1866
      %v1877 = vrcp.pop %v1869
      %v1878 = vmul.f32 %v1831, %v1870
      %v1879 = vmul.f32 %v1833, %v1871
      %v1880 = vmul.f32 %v1835, %v1872
      %v1881 = vmul.f32 %v1837, %v1873
      %v1882 = vmul.f32 %v1839, %v1874
      %v1883 = vmul.f32 %v1841, %v1875
      %v1884 = vmul.f32 %v1843, %v1876
      %v1885 = vmul.f32 %v1845, %v1877
      %1886 = vrot.lane.b32.xlu0 %v1167, 64
      %v1887 = vpop.permute.xlu0 %1886
      %v1890 = vsel %vm1191, %v1878, 0
      %1892 = vmatprep.subr.mxu0 0.0
      %1893 = vmatpush1.msra.mxu0 %v1887
      %1894 = vmatprep.subr.mxu0 0.0
      %1895 = vmatpush1.msra.mxu0 0.0
      %1896 = vmatprep.subr.mxu0 0.0
      %1897 = vmatpush1.msra.mxu0 0.0
      %1898 = vmatprep.subr.mxu0 0.0
      %1899 = vmatpush1.msra.mxu0 0.0
      %1900 = vmatprep.subr.mxu0 0.0
      %1901 = vmatpush1.msra.mxu0 0.0
      %1902 = vmatprep.subr.mxu0 0.0
      %1903 = vmatpush1.msra.mxu0 0.0
      %1904 = vmatprep.subr.mxu0 0.0
      %1905 = vmatpush1.msra.mxu0 0.0
      %1906 = vmatprep.subr.mxu0 0.0
      %1907 = vmatpush1.msra.mxu0 0.0
      %1908 = vmatprep.subr.mxu0 0.0
      %1909 = vmatpush1.msra.mxu0 0.0
      %1910 = vmatprep.subr.mxu0 0.0
      %1911 = vmatpush1.msra.mxu0 0.0
      %1912 = vmatprep.subr.mxu0 0.0
      %1913 = vmatpush1.msra.mxu0 0.0
      %1914 = vmatprep.subr.mxu0 0.0
      %1915 = vmatpush1.msra.mxu0 0.0
      %1916 = vmatprep.subr.mxu0 0.0
      %1917 = vmatpush1.msra.mxu0 0.0
      %1918 = vmatprep.subr.mxu0 0.0
      %1919 = vmatpush1.msra.mxu0 0.0
      %1920 = vmatprep.subr.mxu0 0.0
      %1921 = vmatpush1.msra.mxu0 0.0
      %1922 = vmatprep.subr.mxu0 0.0
      %1923 = vmatpush1.msra.mxu0 0.0
      %1924 = vmatprep.subr.mxu0 0.0
      %1925 = vmatpush1.msra.mxu0 0.0
      %1926 = vmatprep.subr.mxu0 0.0
      %1927 = vmatpush1.msra.mxu0 0.0
      %1928 = vmatprep.subr.mxu0 0.0
      %1929 = vmatpush1.msra.mxu0 0.0
      %1930 = vmatprep.subr.mxu0 0.0
      %1931 = vmatpush1.msra.mxu0 0.0
      %1932 = vmatprep.subr.mxu0 0.0
      %1933 = vmatpush1.msra.mxu0 0.0
      %1934 = vmatprep.subr.mxu0 0.0
      %1935 = vmatpush1.msra.mxu0 0.0
      %1936 = vmatprep.subr.mxu0 0.0
      %1937 = vmatpush1.msra.mxu0 0.0
      %1938 = vmatprep.subr.mxu0 0.0
      %1939 = vmatpush1.msra.mxu0 0.0
      %1940 = vmatprep.subr.mxu0 0.0
      %1941 = vmatpush1.msra.mxu0 0.0
      %1942 = vmatprep.subr.mxu0 0.0
      %1943 = vmatpush1.msra.mxu0 0.0
      %1944 = vmatprep.subr.mxu0 0.0
      %1945 = vmatpush1.msra.mxu0 0.0
      %1946 = vmatprep.subr.mxu0 0.0
      %1947 = vmatpush1.msra.mxu0 0.0
      %1948 = vmatprep.subr.mxu0 0.0
      %1949 = vmatpush1.msra.mxu0 0.0
      %1950 = vmatprep.subr.mxu0 0.0
      %1951 = vmatpush1.msra.mxu0 0.0
      %1952 = vmatprep.subr.mxu0 0.0
      %1953 = vmatpush1.msra.mxu0 0.0
      %1954 = vmatprep.subr.mxu0 0.0
      %1955 = vmatpush1.msra.mxu0 0.0
      %1956 = vmatprep.mubr.f32.mxu0 0.0
      %1957 = vmatmul.mubr.f32.gmra.mrb[0].mxu0 %v1890
      %v1958 = vpop.f32.mrb[0].mxu0
      %v1959 = vadd.f32 0.0, %v1958
      %v1960 = vpop.f32.mrb[0].mxu0
      %1961 = vdwg.mxu0
      %1962 = vrot.lane.b32.xlu0 %v1172, 64
      %v1963 = vpop.permute.xlu0 %1962
      %v1966 = vsel %vm1191, %v1879, 0
      %1968 = vmatprep.subr.mxu0 0.0
      %1969 = vmatpush1.msra.mxu0 %v1963
      %1970 = vmatprep.subr.mxu0 0.0
      %1971 = vmatpush1.msra.mxu0 0.0
      %1972 = vmatprep.subr.mxu0 0.0
      %1973 = vmatpush1.msra.mxu0 0.0
      %1974 = vmatprep.subr.mxu0 0.0
      %1975 = vmatpush1.msra.mxu0 0.0
      %1976 = vmatprep.subr.mxu0 0.0
      %1977 = vmatpush1.msra.mxu0 0.0
      %1978 = vmatprep.subr.mxu0 0.0
      %1979 = vmatpush1.msra.mxu0 0.0
      %1980 = vmatprep.subr.mxu0 0.0
      %1981 = vmatpush1.msra.mxu0 0.0
      %1982 = vmatprep.subr.mxu0 0.0
      %1983 = vmatpush1.msra.mxu0 0.0
      %1984 = vmatprep.subr.mxu0 0.0
      %1985 = vmatpush1.msra.mxu0 0.0
      %1986 = vmatprep.subr.mxu0 0.0
      %1987 = vmatpush1.msra.mxu0 0.0
      %1988 = vmatprep.subr.mxu0 0.0
      %1989 = vmatpush1.msra.mxu0 0.0
      %1990 = vmatprep.subr.mxu0 0.0
      %1991 = vmatpush1.msra.mxu0 0.0
      %1992 = vmatprep.subr.mxu0 0.0
      %1993 = vmatpush1.msra.mxu0 0.0
      %1994 = vmatprep.subr.mxu0 0.0
      %1995 = vmatpush1.msra.mxu0 0.0
      %1996 = vmatprep.subr.mxu0 0.0
      %1997 = vmatpush1.msra.mxu0 0.0
      %1998 = vmatprep.subr.mxu0 0.0
      %1999 = vmatpush1.msra.mxu0 0.0
      %2000 = vmatprep.subr.mxu0 0.0
      %2001 = vmatpush1.msra.mxu0 0.0
      %2002 = vmatprep.subr.mxu0 0.0
      %2003 = vmatpush1.msra.mxu0 0.0
      %2004 = vmatprep.subr.mxu0 0.0
      %2005 = vmatpush1.msra.mxu0 0.0
      %2006 = vmatprep.subr.mxu0 0.0
      %2007 = vmatpush1.msra.mxu0 0.0
      %2008 = vmatprep.subr.mxu0 0.0
      %2009 = vmatpush1.msra.mxu0 0.0
      %2010 = vmatprep.subr.mxu0 0.0
      %2011 = vmatpush1.msra.mxu0 0.0
      %2012 = vmatprep.subr.mxu0 0.0
      %2013 = vmatpush1.msra.mxu0 0.0
      %2014 = vmatprep.subr.mxu0 0.0
      %2015 = vmatpush1.msra.mxu0 0.0
      %2016 = vmatprep.subr.mxu0 0.0
      %2017 = vmatpush1.msra.mxu0 0.0
      %2018 = vmatprep.subr.mxu0 0.0
      %2019 = vmatpush1.msra.mxu0 0.0
      %2020 = vmatprep.subr.mxu0 0.0
      %2021 = vmatpush1.msra.mxu0 0.0
      %2022 = vmatprep.subr.mxu0 0.0
      %2023 = vmatpush1.msra.mxu0 0.0
      %2024 = vmatprep.subr.mxu0 0.0
      %2025 = vmatpush1.msra.mxu0 0.0
      %2026 = vmatprep.subr.mxu0 0.0
      %2027 = vmatpush1.msra.mxu0 0.0
      %2028 = vmatprep.subr.mxu0 0.0
      %2029 = vmatpush1.msra.mxu0 0.0
      %2030 = vmatprep.subr.mxu0 0.0
      %2031 = vmatpush1.msra.mxu0 0.0
      %2032 = vmatprep.mubr.f32.mxu0 0.0
      %2033 = vmatmul.mubr.f32.gmra.mrb[0].mxu0 %v1966
      %v2034 = vpop.f32.mrb[0].mxu0
      %v2035 = vadd.f32 0.0, %v2034
      %v2036 = vpop.f32.mrb[0].mxu0
      %2037 = vdwg.mxu0
      %2038 = vrot.lane.b32.xlu0 %v1178, 64
      %v2039 = vpop.permute.xlu0 %2038
      %v2042 = vsel %vm1191, %v1880, 0
      %2044 = vmatprep.subr.mxu0 0.0
      %2045 = vmatpush1.msra.mxu0 %v2039
      %2046 = vmatprep.subr.mxu0 0.0
      %2047 = vmatpush1.msra.mxu0 0.0
      %2048 = vmatprep.subr.mxu0 0.0
      %2049 = vmatpush1.msra.mxu0 0.0
      %2050 = vmatprep.subr.mxu0 0.0
      %2051 = vmatpush1.msra.mxu0 0.0
      %2052 = vmatprep.subr.mxu0 0.0
      %2053 = vmatpush1.msra.mxu0 0.0
      %2054 = vmatprep.subr.mxu0 0.0
      %2055 = vmatpush1.msra.mxu0 0.0
      %2056 = vmatprep.subr.mxu0 0.0
      %2057 = vmatpush1.msra.mxu0 0.0
      %2058 = vmatprep.subr.mxu0 0.0
      %2059 = vmatpush1.msra.mxu0 0.0
      %2060 = vmatprep.subr.mxu0 0.0
      %2061 = vmatpush1.msra.mxu0 0.0
      %2062 = vmatprep.subr.mxu0 0.0
      %2063 = vmatpush1.msra.mxu0 0.0
      %2064 = vmatprep.subr.mxu0 0.0
      %2065 = vmatpush1.msra.mxu0 0.0
      %2066 = vmatprep.subr.mxu0 0.0
      %2067 = vmatpush1.msra.mxu0 0.0
      %2068 = vmatprep.subr.mxu0 0.0
      %2069 = vmatpush1.msra.mxu0 0.0
      %2070 = vmatprep.subr.mxu0 0.0
      %2071 = vmatpush1.msra.mxu0 0.0
      %2072 = vmatprep.subr.mxu0 0.0
      %2073 = vmatpush1.msra.mxu0 0.0
      %2074 = vmatprep.subr.mxu0 0.0
      %2075 = vmatpush1.msra.mxu0 0.0
      %2076 = vmatprep.subr.mxu0 0.0
      %2077 = vmatpush1.msra.mxu0 0.0
      %2078 = vmatprep.subr.mxu0 0.0
      %2079 = vmatpush1.msra.mxu0 0.0
      %2080 = vmatprep.subr.mxu0 0.0
      %2081 = vmatpush1.msra.mxu0 0.0
      %2082 = vmatprep.subr.mxu0 0.0
      %2083 = vmatpush1.msra.mxu0 0.0
      %2084 = vmatprep.subr.mxu0 0.0
      %2085 = vmatpush1.msra.mxu0 0.0
      %2086 = vmatprep.subr.mxu0 0.0
      %2087 = vmatpush1.msra.mxu0 0.0
      %2088 = vmatprep.subr.mxu0 0.0
      %2089 = vmatpush1.msra.mxu0 0.0
      %2090 = vmatprep.subr.mxu0 0.0
      %2091 = vmatpush1.msra.mxu0 0.0
      %2092 = vmatprep.subr.mxu0 0.0
      %2093 = vmatpush1.msra.mxu0 0.0
      %2094 = vmatprep.subr.mxu0 0.0
      %2095 = vmatpush1.msra.mxu0 0.0
      %2096 = vmatprep.subr.mxu0 0.0
      %2097 = vmatpush1.msra.mxu0 0.0
      %2098 = vmatprep.subr.mxu0 0.0
      %2099 = vmatpush1.msra.mxu0 0.0
      %2100 = vmatprep.subr.mxu0 0.0
      %2101 = vmatpush1.msra.mxu0 0.0
      %2102 = vmatprep.subr.mxu0 0.0
      %2103 = vmatpush1.msra.mxu0 0.0
      %2104 = vmatprep.subr.mxu0 0.0
      %2105 = vmatpush1.msra.mxu0 0.0
      %2106 = vmatprep.subr.mxu0 0.0
      %2107 = vmatpush1.msra.mxu0 0.0
      %2108 = vmatprep.mubr.f32.mxu0 0.0
      %2109 = vmatmul.mubr.f32.gmra.mrb[0].mxu0 %v2042
      %v2110 = vpop.f32.mrb[0].mxu0
      %v2111 = vadd.f32 0.0, %v2110
      %v2112 = vpop.f32.mrb[0].mxu0
      %2113 = vdwg.mxu0
      %2114 = vrot.lane.b32.xlu0 %v1180, 64
      %v2115 = vpop.permute.xlu0 %2114
      %v2118 = vsel %vm1191, %v1881, 0
      %2120 = vmatprep.subr.mxu0 0.0
      %2121 = vmatpush1.msra.mxu0 %v2115
      %2122 = vmatprep.subr.mxu0 0.0
      %2123 = vmatpush1.msra.mxu0 0.0
      %2124 = vmatprep.subr.mxu0 0.0
      %2125 = vmatpush1.msra.mxu0 0.0
      %2126 = vmatprep.subr.mxu0 0.0
      %2127 = vmatpush1.msra.mxu0 0.0
      %2128 = vmatprep.subr.mxu0 0.0
      %2129 = vmatpush1.msra.mxu0 0.0
      %2130 = vmatprep.subr.mxu0 0.0
      %2131 = vmatpush1.msra.mxu0 0.0
      %2132 = vmatprep.subr.mxu0 0.0
      %2133 = vmatpush1.msra.mxu0 0.0
      %2134 = vmatprep.subr.mxu0 0.0
      %2135 = vmatpush1.msra.mxu0 0.0
      %2136 = vmatprep.subr.mxu0 0.0
      %2137 = vmatpush1.msra.mxu0 0.0
      %2138 = vmatprep.subr.mxu0 0.0
      %2139 = vmatpush1.msra.mxu0 0.0
      %2140 = vmatprep.subr.mxu0 0.0
      %2141 = vmatpush1.msra.mxu0 0.0
      %2142 = vmatprep.subr.mxu0 0.0
      %2143 = vmatpush1.msra.mxu0 0.0
      %2144 = vmatprep.subr.mxu0 0.0
      %2145 = vmatpush1.msra.mxu0 0.0
      %2146 = vmatprep.subr.mxu0 0.0
      %2147 = vmatpush1.msra.mxu0 0.0
      %2148 = vmatprep.subr.mxu0 0.0
      %2149 = vmatpush1.msra.mxu0 0.0
      %2150 = vmatprep.subr.mxu0 0.0
      %2151 = vmatpush1.msra.mxu0 0.0
      %2152 = vmatprep.subr.mxu0 0.0
      %2153 = vmatpush1.msra.mxu0 0.0
      %2154 = vmatprep.subr.mxu0 0.0
      %2155 = vmatpush1.msra.mxu0 0.0
      %2156 = vmatprep.subr.mxu0 0.0
      %2157 = vmatpush1.msra.mxu0 0.0
      %2158 = vmatprep.subr.mxu0 0.0
      %2159 = vmatpush1.msra.mxu0 0.0
      %2160 = vmatprep.subr.mxu0 0.0
      %2161 = vmatpush1.msra.mxu0 0.0
      %2162 = vmatprep.subr.mxu0 0.0
      %2163 = vmatpush1.msra.mxu0 0.0
      %2164 = vmatprep.subr.mxu0 0.0
      %2165 = vmatpush1.msra.mxu0 0.0
      %2166 = vmatprep.subr.mxu0 0.0
      %2167 = vmatpush1.msra.mxu0 0.0
      %2168 = vmatprep.subr.mxu0 0.0
      %2169 = vmatpush1.msra.mxu0 0.0
      %2170 = vmatprep.subr.mxu0 0.0
      %2171 = vmatpush1.msra.mxu0 0.0
      %2172 = vmatprep.subr.mxu0 0.0
      %2173 = vmatpush1.msra.mxu0 0.0
      %2174 = vmatprep.subr.mxu0 0.0
      %2175 = vmatpush1.msra.mxu0 0.0
      %2176 = vmatprep.subr.mxu0 0.0
      %2177 = vmatpush1.msra.mxu0 0.0
      %2178 = vmatprep.subr.mxu0 0.0
      %2179 = vmatpush1.msra.mxu0 0.0
      %2180 = vmatprep.subr.mxu0 0.0
      %2181 = vmatpush1.msra.mxu0 0.0
      %2182 = vmatprep.subr.mxu0 0.0
      %2183 = vmatpush1.msra.mxu0 0.0
      %2184 = vmatprep.mubr.f32.mxu0 0.0
      %2185 = vmatmul.mubr.f32.gmra.mrb[0].mxu0 %v2118
      %v2186 = vpop.f32.mrb[0].mxu0
      %v2187 = vadd.f32 0.0, %v2186
      %v2188 = vpop.f32.mrb[0].mxu0
      %2189 = vdwg.mxu0
      %2190 = vrot.lane.b32.xlu0 %v1182, 64
      %v2191 = vpop.permute.xlu0 %2190
      %v2194 = vsel %vm1191, %v1882, 0
      %2196 = vmatprep.subr.mxu0 0.0
      %2197 = vmatpush1.msra.mxu0 %v2191
      %2198 = vmatprep.subr.mxu0 0.0
      %2199 = vmatpush1.msra.mxu0 0.0
      %2200 = vmatprep.subr.mxu0 0.0
      %2201 = vmatpush1.msra.mxu0 0.0
      %2202 = vmatprep.subr.mxu0 0.0
      %2203 = vmatpush1.msra.mxu0 0.0
      %2204 = vmatprep.subr.mxu0 0.0
      %2205 = vmatpush1.msra.mxu0 0.0
      %2206 = vmatprep.subr.mxu0 0.0
      %2207 = vmatpush1.msra.mxu0 0.0
      %2208 = vmatprep.subr.mxu0 0.0
      %2209 = vmatpush1.msra.mxu0 0.0
      %2210 = vmatprep.subr.mxu0 0.0
      %2211 = vmatpush1.msra.mxu0 0.0
      %2212 = vmatprep.subr.mxu0 0.0
      %2213 = vmatpush1.msra.mxu0 0.0
      %2214 = vmatprep.subr.mxu0 0.0
      %2215 = vmatpush1.msra.mxu0 0.0
      %2216 = vmatprep.subr.mxu0 0.0
      %2217 = vmatpush1.msra.mxu0 0.0
      %2218 = vmatprep.subr.mxu0 0.0
      %2219 = vmatpush1.msra.mxu0 0.0
      %2220 = vmatprep.subr.mxu0 0.0
      %2221 = vmatpush1.msra.mxu0 0.0
      %2222 = vmatprep.subr.mxu0 0.0
      %2223 = vmatpush1.msra.mxu0 0.0
      %2224 = vmatprep.subr.mxu0 0.0
      %2225 = vmatpush1.msra.mxu0 0.0
      %2226 = vmatprep.subr.mxu0 0.0
      %2227 = vmatpush1.msra.mxu0 0.0
      %2228 = vmatprep.subr.mxu0 0.0
      %2229 = vmatpush1.msra.mxu0 0.0
      %2230 = vmatprep.subr.mxu0 0.0
      %2231 = vmatpush1.msra.mxu0 0.0
      %2232 = vmatprep.subr.mxu0 0.0
      %2233 = vmatpush1.msra.mxu0 0.0
      %2234 = vmatprep.subr.mxu0 0.0
      %2235 = vmatpush1.msra.mxu0 0.0
      %2236 = vmatprep.subr.mxu0 0.0
      %2237 = vmatpush1.msra.mxu0 0.0
      %2238 = vmatprep.subr.mxu0 0.0
      %2239 = vmatpush1.msra.mxu0 0.0
      %2240 = vmatprep.subr.mxu0 0.0
      %2241 = vmatpush1.msra.mxu0 0.0
      %2242 = vmatprep.subr.mxu0 0.0
      %2243 = vmatpush1.msra.mxu0 0.0
      %2244 = vmatprep.subr.mxu0 0.0
      %2245 = vmatpush1.msra.mxu0 0.0
      %2246 = vmatprep.subr.mxu0 0.0
      %2247 = vmatpush1.msra.mxu0 0.0
      %2248 = vmatprep.subr.mxu0 0.0
      %2249 = vmatpush1.msra.mxu0 0.0
      %2250 = vmatprep.subr.mxu0 0.0
      %2251 = vmatpush1.msra.mxu0 0.0
      %2252 = vmatprep.subr.mxu0 0.0
      %2253 = vmatpush1.msra.mxu0 0.0
      %2254 = vmatprep.subr.mxu0 0.0
      %2255 = vmatpush1.msra.mxu0 0.0
      %2256 = vmatprep.subr.mxu0 0.0
      %2257 = vmatpush1.msra.mxu0 0.0
      %2258 = vmatprep.subr.mxu0 0.0
      %2259 = vmatpush1.msra.mxu0 0.0
      %2260 = vmatprep.mubr.f32.mxu0 0.0
      %2261 = vmatmul.mubr.f32.gmra.mrb[0].mxu0 %v2194
      %v2262 = vpop.f32.mrb[0].mxu0
      %v2263 = vadd.f32 0.0, %v2262
      %v2264 = vpop.f32.mrb[0].mxu0
      %2265 = vdwg.mxu0
      %2266 = vrot.lane.b32.xlu0 %v1184, 64
      %v2267 = vpop.permute.xlu0 %2266
      %v2270 = vsel %vm1191, %v1883, 0
      %2272 = vmatprep.subr.mxu0 0.0
      %2273 = vmatpush1.msra.mxu0 %v2267
      %2274 = vmatprep.subr.mxu0 0.0
      %2275 = vmatpush1.msra.mxu0 0.0
      %2276 = vmatprep.subr.mxu0 0.0
      %2277 = vmatpush1.msra.mxu0 0.0
      %2278 = vmatprep.subr.mxu0 0.0
      %2279 = vmatpush1.msra.mxu0 0.0
      %2280 = vmatprep.subr.mxu0 0.0
      %2281 = vmatpush1.msra.mxu0 0.0
      %2282 = vmatprep.subr.mxu0 0.0
      %2283 = vmatpush1.msra.mxu0 0.0
      %2284 = vmatprep.subr.mxu0 0.0
      %2285 = vmatpush1.msra.mxu0 0.0
      %2286 = vmatprep.subr.mxu0 0.0
      %2287 = vmatpush1.msra.mxu0 0.0
      %2288 = vmatprep.subr.mxu0 0.0
      %2289 = vmatpush1.msra.mxu0 0.0
      %2290 = vmatprep.subr.mxu0 0.0
      %2291 = vmatpush1.msra.mxu0 0.0
      %2292 = vmatprep.subr.mxu0 0.0
      %2293 = vmatpush1.msra.mxu0 0.0
      %2294 = vmatprep.subr.mxu0 0.0
      %2295 = vmatpush1.msra.mxu0 0.0
      %2296 = vmatprep.subr.mxu0 0.0
      %2297 = vmatpush1.msra.mxu0 0.0
      %2298 = vmatprep.subr.mxu0 0.0
      %2299 = vmatpush1.msra.mxu0 0.0
      %2300 = vmatprep.subr.mxu0 0.0
      %2301 = vmatpush1.msra.mxu0 0.0
      %2302 = vmatprep.subr.mxu0 0.0
      %2303 = vmatpush1.msra.mxu0 0.0
      %2304 = vmatprep.subr.mxu0 0.0
      %2305 = vmatpush1.msra.mxu0 0.0
      %2306 = vmatprep.subr.mxu0 0.0
      %2307 = vmatpush1.msra.mxu0 0.0
      %2308 = vmatprep.subr.mxu0 0.0
      %2309 = vmatpush1.msra.mxu0 0.0
      %2310 = vmatprep.subr.mxu0 0.0
      %2311 = vmatpush1.msra.mxu0 0.0
      %2312 = vmatprep.subr.mxu0 0.0
      %2313 = vmatpush1.msra.mxu0 0.0
      %2314 = vmatprep.subr.mxu0 0.0
      %2315 = vmatpush1.msra.mxu0 0.0
      %2316 = vmatprep.subr.mxu0 0.0
      %2317 = vmatpush1.msra.mxu0 0.0
      %2318 = vmatprep.subr.mxu0 0.0
      %2319 = vmatpush1.msra.mxu0 0.0
      %2320 = vmatprep.subr.mxu0 0.0
      %2321 = vmatpush1.msra.mxu0 0.0
      %2322 = vmatprep.subr.mxu0 0.0
      %2323 = vmatpush1.msra.mxu0 0.0
      %2324 = vmatprep.subr.mxu0 0.0
      %2325 = vmatpush1.msra.mxu0 0.0
      %2326 = vmatprep.subr.mxu0 0.0
      %2327 = vmatpush1.msra.mxu0 0.0
      %2328 = vmatprep.subr.mxu0 0.0
      %2329 = vmatpush1.msra.mxu0 0.0
      %2330 = vmatprep.subr.mxu0 0.0
      %2331 = vmatpush1.msra.mxu0 0.0
      %2332 = vmatprep.subr.mxu0 0.0
      %2333 = vmatpush1.msra.mxu0 0.0
      %2334 = vmatprep.subr.mxu0 0.0
      %2335 = vmatpush1.msra.mxu0 0.0
      %2336 = vmatprep.mubr.f32.mxu0 0.0
      %2337 = vmatmul.mubr.f32.gmra.mrb[0].mxu0 %v2270
      %v2338 = vpop.f32.mrb[0].mxu0
      %v2339 = vadd.f32 0.0, %v2338
      %v2340 = vpop.f32.mrb[0].mxu0
      %2341 = vdwg.mxu0
      %2342 = vrot.lane.b32.xlu0 %v1186, 64
      %v2343 = vpop.permute.xlu0 %2342
      %v2346 = vsel %vm1191, %v1884, 0
      %2348 = vmatprep.subr.mxu0 0.0
      %2349 = vmatpush1.msra.mxu0 %v2343
      %2350 = vmatprep.subr.mxu0 0.0
      %2351 = vmatpush1.msra.mxu0 0.0
      %2352 = vmatprep.subr.mxu0 0.0
      %2353 = vmatpush1.msra.mxu0 0.0
      %2354 = vmatprep.subr.mxu0 0.0
      %2355 = vmatpush1.msra.mxu0 0.0
      %2356 = vmatprep.subr.mxu0 0.0
      %2357 = vmatpush1.msra.mxu0 0.0
      %2358 = vmatprep.subr.mxu0 0.0
      %2359 = vmatpush1.msra.mxu0 0.0
      %2360 = vmatprep.subr.mxu0 0.0
      %2361 = vmatpush1.msra.mxu0 0.0
      %2362 = vmatprep.subr.mxu0 0.0
      %2363 = vmatpush1.msra.mxu0 0.0
      %2364 = vmatprep.subr.mxu0 0.0
      %2365 = vmatpush1.msra.mxu0 0.0
      %2366 = vmatprep.subr.mxu0 0.0
      %2367 = vmatpush1.msra.mxu0 0.0
      %2368 = vmatprep.subr.mxu0 0.0
      %2369 = vmatpush1.msra.mxu0 0.0
      %2370 = vmatprep.subr.mxu0 0.0
      %2371 = vmatpush1.msra.mxu0 0.0
      %2372 = vmatprep.subr.mxu0 0.0
      %2373 = vmatpush1.msra.mxu0 0.0
      %2374 = vmatprep.subr.mxu0 0.0
      %2375 = vmatpush1.msra.mxu0 0.0
      %2376 = vmatprep.subr.mxu0 0.0
      %2377 = vmatpush1.msra.mxu0 0.0
      %2378 = vmatprep.subr.mxu0 0.0
      %2379 = vmatpush1.msra.mxu0 0.0
      %2380 = vmatprep.subr.mxu0 0.0
      %2381 = vmatpush1.msra.mxu0 0.0
      %2382 = vmatprep.subr.mxu0 0.0
      %2383 = vmatpush1.msra.mxu0 0.0
      %2384 = vmatprep.subr.mxu0 0.0
      %2385 = vmatpush1.msra.mxu0 0.0
      %2386 = vmatprep.subr.mxu0 0.0
      %2387 = vmatpush1.msra.mxu0 0.0
      %2388 = vmatprep.subr.mxu0 0.0
      %2389 = vmatpush1.msra.mxu0 0.0
      %2390 = vmatprep.subr.mxu0 0.0
      %2391 = vmatpush1.msra.mxu0 0.0
      %2392 = vmatprep.subr.mxu0 0.0
      %2393 = vmatpush1.msra.mxu0 0.0
      %2394 = vmatprep.subr.mxu0 0.0
      %2395 = vmatpush1.msra.mxu0 0.0
      %2396 = vmatprep.subr.mxu0 0.0
      %2397 = vmatpush1.msra.mxu0 0.0
      %2398 = vmatprep.subr.mxu0 0.0
      %2399 = vmatpush1.msra.mxu0 0.0
      %2400 = vmatprep.subr.mxu0 0.0
      %2401 = vmatpush1.msra.mxu0 0.0
      %2402 = vmatprep.subr.mxu0 0.0
      %2403 = vmatpush1.msra.mxu0 0.0
      %2404 = vmatprep.subr.mxu0 0.0
      %2405 = vmatpush1.msra.mxu0 0.0
      %2406 = vmatprep.subr.mxu0 0.0
      %2407 = vmatpush1.msra.mxu0 0.0
      %2408 = vmatprep.subr.mxu0 0.0
      %2409 = vmatpush1.msra.mxu0 0.0
      %2410 = vmatprep.subr.mxu0 0.0
      %2411 = vmatpush1.msra.mxu0 0.0
      %2412 = vmatprep.mubr.f32.mxu0 0.0
      %2413 = vmatmul.mubr.f32.gmra.mrb[0].mxu0 %v2346
      %v2414 = vpop.f32.mrb[0].mxu0
      %v2415 = vadd.f32 0.0, %v2414
      %v2416 = vpop.f32.mrb[0].mxu0
      %2417 = vdwg.mxu0
      %2418 = vrot.lane.b32.xlu0 %v1188, 64
      %v2419 = vpop.permute.xlu0 %2418
      %v2422 = vsel %vm1191, %v1885, 0
      %2424 = vmatprep.subr.mxu0 0.0
      %2425 = vmatpush1.msra.mxu0 %v2419
      %2426 = vmatprep.subr.mxu0 0.0
      %2427 = vmatpush1.msra.mxu0 0.0
      %2428 = vmatprep.subr.mxu0 0.0
      %2429 = vmatpush1.msra.mxu0 0.0
      %2430 = vmatprep.subr.mxu0 0.0
      %2431 = vmatpush1.msra.mxu0 0.0
      %2432 = vmatprep.subr.mxu0 0.0
      %2433 = vmatpush1.msra.mxu0 0.0
      %2434 = vmatprep.subr.mxu0 0.0
      %2435 = vmatpush1.msra.mxu0 0.0
      %2436 = vmatprep.subr.mxu0 0.0
      %2437 = vmatpush1.msra.mxu0 0.0
      %2438 = vmatprep.subr.mxu0 0.0
      %2439 = vmatpush1.msra.mxu0 0.0
      %2440 = vmatprep.subr.mxu0 0.0
      %2441 = vmatpush1.msra.mxu0 0.0
      %2442 = vmatprep.subr.mxu0 0.0
      %2443 = vmatpush1.msra.mxu0 0.0
      %2444 = vmatprep.subr.mxu0 0.0
      %2445 = vmatpush1.msra.mxu0 0.0
      %2446 = vmatprep.subr.mxu0 0.0
      %2447 = vmatpush1.msra.mxu0 0.0
      %2448 = vmatprep.subr.mxu0 0.0
      %2449 = vmatpush1.msra.mxu0 0.0
      %2450 = vmatprep.subr.mxu0 0.0
      %2451 = vmatpush1.msra.mxu0 0.0
      %2452 = vmatprep.subr.mxu0 0.0
      %2453 = vmatpush1.msra.mxu0 0.0
      %2454 = vmatprep.subr.mxu0 0.0
      %2455 = vmatpush1.msra.mxu0 0.0
      %2456 = vmatprep.subr.mxu0 0.0
      %2457 = vmatpush1.msra.mxu0 0.0
      %2458 = vmatprep.subr.mxu0 0.0
      %2459 = vmatpush1.msra.mxu0 0.0
      %2460 = vmatprep.subr.mxu0 0.0
      %2461 = vmatpush1.msra.mxu0 0.0
      %2462 = vmatprep.subr.mxu0 0.0
      %2463 = vmatpush1.msra.mxu0 0.0
      %2464 = vmatprep.subr.mxu0 0.0
      %2465 = vmatpush1.msra.mxu0 0.0
      %2466 = vmatprep.subr.mxu0 0.0
      %2467 = vmatpush1.msra.mxu0 0.0
      %2468 = vmatprep.subr.mxu0 0.0
      %2469 = vmatpush1.msra.mxu0 0.0
      %2470 = vmatprep.subr.mxu0 0.0
      %2471 = vmatpush1.msra.mxu0 0.0
      %2472 = vmatprep.subr.mxu0 0.0
      %2473 = vmatpush1.msra.mxu0 0.0
      %2474 = vmatprep.subr.mxu0 0.0
      %2475 = vmatpush1.msra.mxu0 0.0
      %2476 = vmatprep.subr.mxu0 0.0
      %2477 = vmatpush1.msra.mxu0 0.0
      %2478 = vmatprep.subr.mxu0 0.0
      %2479 = vmatpush1.msra.mxu0 0.0
      %2480 = vmatprep.subr.mxu0 0.0
      %2481 = vmatpush1.msra.mxu0 0.0
      %2482 = vmatprep.subr.mxu0 0.0
      %2483 = vmatpush1.msra.mxu0 0.0
      %2484 = vmatprep.subr.mxu0 0.0
      %2485 = vmatpush1.msra.mxu0 0.0
      %2486 = vmatprep.subr.mxu0 0.0
      %2487 = vmatpush1.msra.mxu0 0.0
      %2488 = vmatprep.mubr.f32.mxu0 0.0
      %2489 = vmatmul.mubr.f32.gmra.mrb[0].mxu0 %v2422
      %v2490 = vpop.f32.mrb[0].mxu0
      %v2491 = vadd.f32 0.0, %v2490
      %v2492 = vpop.f32.mrb[0].mxu0
      %2493 = vdwg.mxu0
      %2496 = vrot.lane.b32.xlu0 %v2111, 8
      %v2497 = vpop.permute.xlu0 %2496
      %2498 = vrot.lane.b32.xlu0 %v2187, 8
      %v2499 = vpop.permute.xlu0 %2498
      %2504 = vrot.lane.b32.xlu0 %v2263, 16
      %v2505 = vpop.permute.xlu0 %2504
      %2506 = vrot.lane.b32.xlu0 %v2339, 16
      %v2507 = vpop.permute.xlu0 %2506
      %2512 = vrot.lane.b32.xlu0 %v2415, 24
      %v2513 = vpop.permute.xlu0 %2512
      %2514 = vrot.lane.b32.xlu0 %v2491, 24
      %v2515 = vpop.permute.xlu0 %2514
      %v2518 = vsel %vm1191, %v1959, %v2497
      %v2519 = vsel %vm1191, %v2035, %v2499
      %vm2520 = vcmask 130048
      %v2521 = vsel %vm2520, %v2518, %v2505
      %v2522 = vsel %vm2520, %v2519, %v2507
      %vm2523 = vcmask 195584
      %v2524 = vsel %vm2523, %v2521, %v2513
      %v2525 = vsel %vm2523, %v2522, %v2515
      %v2526 = vld [vmem:[%s976] sm:$0xff]
      %v2527 = vld [vmem:[%s976 + $0x8] sm:$0xff]
      %v2528 = vld [vmem:[%s976 + $0x10] sm:$0xff]
      %v2529 = vld [vmem:[%s976 + $0x18] sm:$0xff]
      %v2530 = vld [vmem:[%s983] sm:$0x1]
      %v2532 = vlaneseq
      %v2533 = vshrl.u32 %v2532, 7
      %v2534 = vsub.s32 0, %v2533
      %v2535 = vrot.slane %v2530, %v2534
      %v2538 = vsel %vm1093, %v2524, 0
      %v2541 = vsel %vm1093, %v2525, 0
      %2543 = vmatprep.subr.mxu0 0.0
      %2544 = vmatpush1.msra.mxu0 %v2526
      %2545 = vmatprep.subr.mxu0 0.0
      %2546 = vmatpush1.msra.mxu0 %v2527
      %2547 = vmatprep.subr.mxu0 0.0
      %2548 = vmatpush1.msra.mxu0 %v2528
      %2549 = vmatprep.subr.mxu0 0.0
      %2550 = vmatpush1.msra.mxu0 %v2529
      %2551 = vmatprep.subr.mxu0 0.0
      %2552 = vmatpush1.msra.mxu0 0.0
      %2553 = vmatprep.subr.mxu0 0.0
      %2554 = vmatpush1.msra.mxu0 0.0
      %2555 = vmatprep.subr.mxu0 0.0
      %2556 = vmatpush1.msra.mxu0 0.0
      %2557 = vmatprep.subr.mxu0 0.0
      %2558 = vmatpush1.msra.mxu0 0.0
      %2559 = vmatprep.subr.mxu0 0.0
      %2560 = vmatpush1.msra.mxu0 0.0
      %2561 = vmatprep.subr.mxu0 0.0
      %2562 = vmatpush1.msra.mxu0 0.0
      %2563 = vmatprep.subr.mxu0 0.0
      %2564 = vmatpush1.msra.mxu0 0.0
      %2565 = vmatprep.subr.mxu0 0.0
      %2566 = vmatpush1.msra.mxu0 0.0
      %2567 = vmatprep.subr.mxu0 0.0
      %2568 = vmatpush1.msra.mxu0 0.0
      %2569 = vmatprep.subr.mxu0 0.0
      %2570 = vmatpush1.msra.mxu0 0.0
      %2571 = vmatprep.subr.mxu0 0.0
      %2572 = vmatpush1.msra.mxu0 0.0
      %2573 = vmatprep.subr.mxu0 0.0
      %2574 = vmatpush1.msra.mxu0 0.0
      %2575 = vmatprep.subr.mxu0 0.0
      %2576 = vmatpush1.msra.mxu0 0.0
      %2577 = vmatprep.subr.mxu0 0.0
      %2578 = vmatpush1.msra.mxu0 0.0
      %2579 = vmatprep.subr.mxu0 0.0
      %2580 = vmatpush1.msra.mxu0 0.0
      %2581 = vmatprep.subr.mxu0 0.0
      %2582 = vmatpush1.msra.mxu0 0.0
      %2583 = vmatprep.subr.mxu0 0.0
      %2584 = vmatpush1.msra.mxu0 0.0
      %2585 = vmatprep.subr.mxu0 0.0
      %2586 = vmatpush1.msra.mxu0 0.0
      %2587 = vmatprep.subr.mxu0 0.0
      %2588 = vmatpush1.msra.mxu0 0.0
      %2589 = vmatprep.subr.mxu0 0.0
      %2590 = vmatpush1.msra.mxu0 0.0
      %2591 = vmatprep.subr.mxu0 0.0
      %2592 = vmatpush1.msra.mxu0 0.0
      %2593 = vmatprep.subr.mxu0 0.0
      %2594 = vmatpush1.msra.mxu0 0.0
      %2595 = vmatprep.subr.mxu0 0.0
      %2596 = vmatpush1.msra.mxu0 0.0
      %2597 = vmatprep.subr.mxu0 0.0
      %2598 = vmatpush1.msra.mxu0 0.0
      %2599 = vmatprep.subr.mxu0 0.0
      %2600 = vmatpush1.msra.mxu0 0.0
      %2601 = vmatprep.subr.mxu0 0.0
      %2602 = vmatpush1.msra.mxu0 0.0
      %2603 = vmatprep.subr.mxu0 0.0
      %2604 = vmatpush1.msra.mxu0 0.0
      %2605 = vmatprep.subr.mxu0 0.0
      %2606 = vmatpush1.msra.mxu0 0.0
      %2607 = vmatprep.mubr.f32.mxu0 0.0
      %2608 = vmatmul.mubr.f32.gmra.mrb[0].mxu0 %v2538
      %v2609 = vpop.f32.mrb[0].mxu0
      %v2610 = vadd.f32 %v2535, %v2609
      %v2611 = vpop.f32.mrb[0].mxu0
      %2612 = vmatprep.mubr.f32.mxu0 0.0
      %2613 = vmatmul.mubr.f32.gmra.mrb[0].mxu0 %v2541
      %v2614 = vpop.f32.mrb[0].mxu0
      %v2615 = vadd.f32 %v2535, %v2614
      %v2616 = vpop.f32.mrb[0].mxu0
      %2617 = vdwg.mxu0
      %v2618 = vadd.f32 %v1080, %v2610
      %v2619 = vadd.f32 %v1081, %v2615
      %v2620 = vld [vmem:[%s990] sm:$0x1]
      %v2621 = vld [vmem:[%s997] sm:$0x1]
      %v2622 = vsel %vm1093, %v2618, 0.0
      %2623 = vadd.xlane.f32.xlu0 %v2622
      %v2624 = vpop.xlane.xlu0 %2623
      %v2625 = vsel %vm1093, %v2619, 0.0
      %2626 = vadd.xlane.f32.xlu0 %v2625
      %v2627 = vpop.xlane.xlu0 %2626
      %v2628 = vrcp.pop 32.0
      %v2629 = vmul.f32 %v2624, %v2628
      %v2630 = vmul.f32 %v2627, %v2628
      %v2631 = vsub.f32 %v2618, %v2629
      %v2632 = vsub.f32 %v2619, %v2630
      %v2633 = vmul.f32 %v2631, %v2631
      %v2634 = vmul.f32 %v2632, %v2632
      %v2635 = vsel %vm1093, %v2633, 0.0
      %2636 = vadd.xlane.f32.xlu0 %v2635
      %v2637 = vpop.xlane.xlu0 %2636
      %v2638 = vsel %vm1093, %v2634, 0.0
      %2639 = vadd.xlane.f32.xlu0 %v2638
      %v2640 = vpop.xlane.xlu0 %2639
      %v2641 = vmul.f32 %v2637, %v2628
      %v2642 = vmul.f32 %v2640, %v2628
      %v2643 = vadd.f32 %v2641, 1e-12
      %v2644 = vadd.f32 %v2642, 1e-12
      %v2645 = vrsqrt.pop %v2643
      %v2646 = vrsqrt.pop %v2644
      %v2647 = vmul.f32 %v2631, %v2645
      %v2648 = vmul.f32 %v2632, %v2646
      %v2650 = vlaneseq
      %v2651 = vshrl.u32 %v2650, 7
      %v2652 = vsub.s32 0, %v2651
      %v2653 = vrot.slane %v2620, %v2652
      %v2655 = vmul.f32 %v2647, %v2653
      %v2656 = vmul.f32 %v2648, %v2653
      %v2658 = vlaneseq
      %v2659 = vshrl.u32 %v2658, 7
      %v2660 = vsub.s32 0, %v2659
      %v2661 = vrot.slane %v2621, %v2660
      %v2663 = vadd.f32 %v2655, %v2661
      %v2664 = vadd.f32 %v2656, %v2661
      %v2665 = vld [vmem:[%s1006] sm:$0xff]
      %v2666 = vld [vmem:[%s1006 + $0x8] sm:$0xff]
      %v2667 = vld [vmem:[%s1006 + $0x10] sm:$0xff]
      %v2668 = vld [vmem:[%s1006 + $0x18] sm:$0xff]
      %v2669 = vld [vmem:[%s1013] sm:$0x1]
      %v2671 = vlaneseq
      %v2672 = vshrl.u32 %v2671, 7
      %v2673 = vsub.s32 0, %v2672
      %v2674 = vrot.slane %v2669, %v2673
      %v2677 = vsel %vm1093, %v2663, 0
      %v2680 = vsel %vm1093, %v2664, 0
      %2682 = vmatprep.subr.mxu0 0.0
      %2683 = vmatpush1.msra.mxu0 %v2665
      %2684 = vmatprep.subr.mxu0 0.0
      %2685 = vmatpush1.msra.mxu0 %v2666
      %2686 = vmatprep.subr.mxu0 0.0
      %2687 = vmatpush1.msra.mxu0 %v2667
      %2688 = vmatprep.subr.mxu0 0.0
      %2689 = vmatpush1.msra.mxu0 %v2668
      %2690 = vmatprep.subr.mxu0 0.0
      %2691 = vmatpush1.msra.mxu0 0.0
      %2692 = vmatprep.subr.mxu0 0.0
      %2693 = vmatpush1.msra.mxu0 0.0
      %2694 = vmatprep.subr.mxu0 0.0
      %2695 = vmatpush1.msra.mxu0 0.0
      %2696 = vmatprep.subr.mxu0 0.0
      %2697 = vmatpush1.msra.mxu0 0.0
      %2698 = vmatprep.subr.mxu0 0.0
      %2699 = vmatpush1.msra.mxu0 0.0
      %2700 = vmatprep.subr.mxu0 0.0
      %2701 = vmatpush1.msra.mxu0 0.0
      %2702 = vmatprep.subr.mxu0 0.0
      %2703 = vmatpush1.msra.mxu0 0.0
      %2704 = vmatprep.subr.mxu0 0.0
      %2705 = vmatpush1.msra.mxu0 0.0
      %2706 = vmatprep.subr.mxu0 0.0
      %2707 = vmatpush1.msra.mxu0 0.0
      %2708 = vmatprep.subr.mxu0 0.0
      %2709 = vmatpush1.msra.mxu0 0.0
      %2710 = vmatprep.subr.mxu0 0.0
      %2711 = vmatpush1.msra.mxu0 0.0
      %2712 = vmatprep.subr.mxu0 0.0
      %2713 = vmatpush1.msra.mxu0 0.0
      %2714 = vmatprep.subr.mxu0 0.0
      %2715 = vmatpush1.msra.mxu0 0.0
      %2716 = vmatprep.subr.mxu0 0.0
      %2717 = vmatpush1.msra.mxu0 0.0
      %2718 = vmatprep.subr.mxu0 0.0
      %2719 = vmatpush1.msra.mxu0 0.0
      %2720 = vmatprep.subr.mxu0 0.0
      %2721 = vmatpush1.msra.mxu0 0.0
      %2722 = vmatprep.subr.mxu0 0.0
      %2723 = vmatpush1.msra.mxu0 0.0
      %2724 = vmatprep.subr.mxu0 0.0
      %2725 = vmatpush1.msra.mxu0 0.0
      %2726 = vmatprep.subr.mxu0 0.0
      %2727 = vmatpush1.msra.mxu0 0.0
      %2728 = vmatprep.subr.mxu0 0.0
      %2729 = vmatpush1.msra.mxu0 0.0
      %2730 = vmatprep.subr.mxu0 0.0
      %2731 = vmatpush1.msra.mxu0 0.0
      %2732 = vmatprep.subr.mxu0 0.0
      %2733 = vmatpush1.msra.mxu0 0.0
      %2734 = vmatprep.subr.mxu0 0.0
      %2735 = vmatpush1.msra.mxu0 0.0
      %2736 = vmatprep.subr.mxu0 0.0
      %2737 = vmatpush1.msra.mxu0 0.0
      %2738 = vmatprep.subr.mxu0 0.0
      %2739 = vmatpush1.msra.mxu0 0.0
      %2740 = vmatprep.subr.mxu0 0.0
      %2741 = vmatpush1.msra.mxu0 0.0
      %2742 = vmatprep.subr.mxu0 0.0
      %2743 = vmatpush1.msra.mxu0 0.0
      %2744 = vmatprep.subr.mxu0 0.0
      %2745 = vmatpush1.msra.mxu0 0.0
      %2746 = vmatprep.mubr.f32.mxu0 0.0
      %2747 = vmatmul.mubr.f32.gmra.mrb[0].mxu0 %v2677
      %v2748 = vpop.f32.mrb[0].mxu0
      %v2749 = vadd.f32 %v2674, %v2748
      %v2750 = vpop.f32.mrb[0].mxu0
      %2751 = vmatprep.mubr.f32.mxu0 0.0
      %2752 = vmatmul.mubr.f32.gmra.mrb[0].mxu0 %v2680
      %v2753 = vpop.f32.mrb[0].mxu0
      %v2754 = vadd.f32 %v2674, %v2753
      %v2755 = vpop.f32.mrb[0].mxu0
      %2756 = vdwg.mxu0
      %v2757 = vmul.f32 %v2749, %v2749
      %v2758 = vmul.f32 %v2754, %v2754
      %v2759 = vmul.f32 %v2749, %v2757
      %v2760 = vmul.f32 %v2754, %v2758
      %v2761 = vmul.f32 %v2759, 0.044715
      %v2762 = vmul.f32 %v2760, 0.044715
      %v2763 = vadd.f32 %v2749, %v2761
      %v2764 = vadd.f32 %v2754, %v2762
      %v2765 = vmul.f32 %v2763, 0.7978846
      %v2766 = vmul.f32 %v2764, 0.7978846
      %v2767 = vtanh.pop %v2765
      %v2768 = vtanh.pop %v2766
      %v2769 = vadd.f32 %v2767, 1.0
      %v2770 = vadd.f32 %v2768, 1.0
      %v2771 = vmul.f32 %v2769, 0.5
      %v2772 = vmul.f32 %v2770, 0.5
      %v2773 = vmul.f32 %v2749, %v2771
      %v2774 = vmul.f32 %v2754, %v2772
      %v2775 = vld [vmem:[%s1022] sm:$0xff]
      %v2776 = vld [vmem:[%s1022 + $0x8] sm:$0xff]
      %v2777 = vld [vmem:[%s1022 + $0x10] sm:$0xff]
      %v2778 = vld [vmem:[%s1022 + $0x18] sm:$0xff]
      %v2779 = vld [vmem:[%s1022 + $0x20] sm:$0xff]
      %v2780 = vld [vmem:[%s1022 + $0x28] sm:$0xff]
      %v2781 = vld [vmem:[%s1022 + $0x30] sm:$0xff]
      %v2782 = vld [vmem:[%s1022 + $0x38] sm:$0xff]
      %v2783 = vld [vmem:[%s1029] sm:$0x1]
      %v2785 = vlaneseq
      %v2786 = vshrl.u32 %v2785, 7
      %v2787 = vsub.s32 0, %v2786
      %v2788 = vrot.slane %v2783, %v2787
      %vm2790 = vcmask 523264
      %v2792 = vsel %vm2790, %v2773, 0
      %v2795 = vsel %vm2790, %v2774, 0
      %2797 = vmatprep.subr.mxu0 0.0
      %2798 = vmatpush1.msra.mxu0 %v2775
      %2799 = vmatprep.subr.mxu0 0.0
      %2800 = vmatpush1.msra.mxu0 %v2776
      %2801 = vmatprep.subr.mxu0 0.0
      %2802 = vmatpush1.msra.mxu0 %v2777
      %2803 = vmatprep.subr.mxu0 0.0
      %2804 = vmatpush1.msra.mxu0 %v2778
      %2805 = vmatprep.subr.mxu0 0.0
      %2806 = vmatpush1.msra.mxu0 %v2779
      %2807 = vmatprep.subr.mxu0 0.0
      %2808 = vmatpush1.msra.mxu0 %v2780
      %2809 = vmatprep.subr.mxu0 0.0
      %2810 = vmatpush1.msra.mxu0 %v2781
      %2811 = vmatprep.subr.mxu0 0.0
      %2812 = vmatpush1.msra.mxu0 %v2782
      %2813 = vmatprep.subr.mxu0 0.0
      %2814 = vmatpush1.msra.mxu0 0.0
      %2815 = vmatprep.subr.mxu0 0.0
      %2816 = vmatpush1.msra.mxu0 0.0
      %2817 = vmatprep.subr.mxu0 0.0
      %2818 = vmatpush1.msra.mxu0 0.0
      %2819 = vmatprep.subr.mxu0 0.0
      %2820 = vmatpush1.msra.mxu0 0.0
      %2821 = vmatprep.subr.mxu0 0.0
      %2822 = vmatpush1.msra.mxu0 0.0
      %2823 = vmatprep.subr.mxu0 0.0
      %2824 = vmatpush1.msra.mxu0 0.0
      %2825 = vmatprep.subr.mxu0 0.0
      %2826 = vmatpush1.msra.mxu0 0.0
      %2827 = vmatprep.subr.mxu0 0.0
      %2828 = vmatpush1.msra.mxu0 0.0
      %2829 = vmatprep.subr.mxu0 0.0
      %2830 = vmatpush1.msra.mxu0 0.0
      %2831 = vmatprep.subr.mxu0 0.0
      %2832 = vmatpush1.msra.mxu0 0.0
      %2833 = vmatprep.subr.mxu0 0.0
      %2834 = vmatpush1.msra.mxu0 0.0
      %2835 = vmatprep.subr.mxu0 0.0
      %2836 = vmatpush1.msra.mxu0 0.0
      %2837 = vmatprep.subr.mxu0 0.0
      %2838 = vmatpush1.msra.mxu0 0.0
      %2839 = vmatprep.subr.mxu0 0.0
      %2840 = vmatpush1.msra.mxu0 0.0
      %2841 = vmatprep.subr.mxu0 0.0
      %2842 = vmatpush1.msra.mxu0 0.0
      %2843 = vmatprep.subr.mxu0 0.0
      %2844 = vmatpush1.msra.mxu0 0.0
      %2845 = vmatprep.subr.mxu0 0.0
      %2846 = vmatpush1.msra.mxu0 0.0
      %2847 = vmatprep.subr.mxu0 0.0
      %2848 = vmatpush1.msra.mxu0 0.0
      %2849 = vmatprep.subr.mxu0 0.0
      %2850 = vmatpush1.msra.mxu0 0.0
      %2851 = vmatprep.subr.mxu0 0.0
      %2852 = vmatpush1.msra.mxu0 0.0
      %2853 = vmatprep.subr.mxu0 0.0
      %2854 = vmatpush1.msra.mxu0 0.0
      %2855 = vmatprep.subr.mxu0 0.0
      %2856 = vmatpush1.msra.mxu0 0.0
      %2857 = vmatprep.subr.mxu0 0.0
      %2858 = vmatpush1.msra.mxu0 0.0
      %2859 = vmatprep.subr.mxu0 0.0
      %2860 = vmatpush1.msra.mxu0 0.0
      %2861 = vmatprep.mubr.f32.mxu0 0.0
      %2862 = vmatmul.mubr.f32.gmra.mrb[0].mxu0 %v2792
      %v2863 = vpop.f32.mrb[0].mxu0
      %v2864 = vadd.f32 %v2788, %v2863
      %v2865 = vpop.f32.mrb[0].mxu0
      %2866 = vmatprep.mubr.f32.mxu0 0.0
      %2867 = vmatmul.mubr.f32.gmra.mrb[0].mxu0 %v2795
      %v2868 = vpop.f32.mrb[0].mxu0
      %v2869 = vadd.f32 %v2788, %v2868
      %v2870 = vpop.f32.mrb[0].mxu0
      %2871 = vdwg.mxu0
      %v2872 = vadd.f32 %v2663, %v2864
      %v2873 = vadd.f32 %v2664, %v2869
      %v2874 = vld [vmem:[%s1036] sm:$0x1]
      %v2875 = vld [vmem:[%s1043] sm:$0x1]
      %v2876 = vsel %vm1093, %v2872, 0.0
      %2877 = vadd.xlane.f32.xlu0 %v2876
      %v2878 = vpop.xlane.xlu0 %2877
      %v2879 = vsel %vm1093, %v2873, 0.0
      %2880 = vadd.xlane.f32.xlu0 %v2879
      %v2881 = vpop.xlane.xlu0 %2880
      %v2882 = vmul.f32 %v2878, %v2628
      %v2883 = vmul.f32 %v2881, %v2628
      %v2884 = vsub.f32 %v2872, %v2882
      %v2885 = vsub.f32 %v2873, %v2883
      %v2886 = vmul.f32 %v2884, %v2884
      %v2887 = vmul.f32 %v2885, %v2885
      %v2888 = vsel %vm1093, %v2886, 0.0
      %2889 = vadd.xlane.f32.xlu0 %v2888
      %v2890 = vpop.xlane.xlu0 %2889
      %v2891 = vsel %vm1093, %v2887, 0.0
      %2892 = vadd.xlane.f32.xlu0 %v2891
      %v2893 = vpop.xlane.xlu0 %2892
      %v2894 = vmul.f32 %v2890, %v2628
      %v2895 = vmul.f32 %v2893, %v2628
      %v2896 = vadd.f32 %v2894, 1e-12
      %v2897 = vadd.f32 %v2895, 1e-12
      %v2898 = vrsqrt.pop %v2896
      %v2899 = vrsqrt.pop %v2897
      %v2900 = vmul.f32 %v2884, %v2898
      %v2901 = vmul.f32 %v2885, %v2899
      %v2903 = vlaneseq
      %v2904 = vshrl.u32 %v2903, 7
      %v2905 = vsub.s32 0, %v2904
      %v2906 = vrot.slane %v2874, %v2905
      %v2908 = vmul.f32 %v2900, %v2906
      %v2909 = vmul.f32 %v2901, %v2906
      %v2911 = vlaneseq
      %v2912 = vshrl.u32 %v2911, 7
      %v2913 = vsub.s32 0, %v2912
      %v2914 = vrot.slane %v2875, %v2913
      %v2916 = vadd.f32 %v2908, %v2914
      %v2917 = vadd.f32 %v2909, %v2914
      %2918 = vst.msk [vmem:[#allocation2] sm:$0xff] %vm1093, %v2916
      %2919 = vst.msk [vmem:[#allocation2 + $0x8] sm:$0xff] %vm1093, %v2917
      %p2920 = scmp.eq.s32.totalorder %s35, 1
      // Predicated region
      $region101: #{electra_forward.1} parent=95 // pred_check
        %p2921 = pneg %p2920
      $region102: #{electra_forward.1} parent=95 // pred_check_branch
        %2923 = sbr.rel (%p2921) target = $region104
      $region103: #{electra_forward.1} parent=95 // pred_region
        %v2924 = vld [vmem:[%s1048] sm:$0xff]
        %v2925 = vld [vmem:[%s1048 + $0x8] sm:$0xff]
        %v2926 = vld [vmem:[%s1048 + $0x10] sm:$0xff]
        %v2927 = vld [vmem:[%s1048 + $0x18] sm:$0xff]
        %v2928 = vld [vmem:[%s1051] sm:$0x1]
        %v2930 = vlaneseq
        %v2931 = vshrl.u32 %v2930, 7
        %v2932 = vsub.s32 0, %v2931
        %v2933 = vrot.slane %v2928, %v2932
        %v2936 = vsel %vm1093, %v2916, 0
        %v2939 = vsel %vm1093, %v2917, 0
        %2941 = vmatprep.subr.mxu0 0.0
        %2942 = vmatpush1.msra.mxu0 %v2924
        %2943 = vmatprep.subr.mxu0 0.0
        %2944 = vmatpush1.msra.mxu0 %v2925
        %2945 = vmatprep.subr.mxu0 0.0
        %2946 = vmatpush1.msra.mxu0 %v2926
        %2947 = vmatprep.subr.mxu0 0.0
        %2948 = vmatpush1.msra.mxu0 %v2927
        %2949 = vmatprep.subr.mxu0 0.0
        %2950 = vmatpush1.msra.mxu0 0.0
        %2951 = vmatprep.subr.mxu0 0.0
        %2952 = vmatpush1.msra.mxu0 0.0
        %2953 = vmatprep.subr.mxu0 0.0
        %2954 = vmatpush1.msra.mxu0 0.0
        %2955 = vmatprep.subr.mxu0 0.0
        %2956 = vmatpush1.msra.mxu0 0.0
        %2957 = vmatprep.subr.mxu0 0.0
        %2958 = vmatpush1.msra.mxu0 0.0
        %2959 = vmatprep.subr.mxu0 0.0
        %2960 = vmatpush1.msra.mxu0 0.0
        %2961 = vmatprep.subr.mxu0 0.0
        %2962 = vmatpush1.msra.mxu0 0.0
        %2963 = vmatprep.subr.mxu0 0.0
        %2964 = vmatpush1.msra.mxu0 0.0
        %2965 = vmatprep.subr.mxu0 0.0
        %2966 = vmatpush1.msra.mxu0 0.0
        %2967 = vmatprep.subr.mxu0 0.0
        %2968 = vmatpush1.msra.mxu0 0.0
        %2969 = vmatprep.subr.mxu0 0.0
        %2970 = vmatpush1.msra.mxu0 0.0
        %2971 = vmatprep.subr.mxu0 0.0
        %2972 = vmatpush1.msra.mxu0 0.0
        %2973 = vmatprep.subr.mxu0 0.0
        %2974 = vmatpush1.msra.mxu0 0.0
        %2975 = vmatprep.subr.mxu0 0.0
        %2976 = vmatpush1.msra.mxu0 0.0
        %2977 = vmatprep.subr.mxu0 0.0
        %2978 = vmatpush1.msra.mxu0 0.0
        %2979 = vmatprep.subr.mxu0 0.0
        %2980 = vmatpush1.msra.mxu0 0.0
        %2981 = vmatprep.subr.mxu0 0.0
        %2982 = vmatpush1.msra.mxu0 0.0
        %2983 = vmatprep.subr.mxu0 0.0
        %2984 = vmatpush1.msra.mxu0 0.0
        %2985 = vmatprep.subr.mxu0 0.0
        %2986 = vmatpush1.msra.mxu0 0.0
        %2987 = vmatprep.subr.mxu0 0.0
        %2988 = vmatpush1.msra.mxu0 0.0
        %2989 = vmatprep.subr.mxu0 0.0
        %2990 = vmatpush1.msra.mxu0 0.0
        %2991 = vmatprep.subr.mxu0 0.0
        %2992 = vmatpush1.msra.mxu0 0.0
        %2993 = vmatprep.subr.mxu0 0.0
        %2994 = vmatpush1.msra.mxu0 0.0
        %2995 = vmatprep.subr.mxu0 0.0
        %2996 = vmatpush1.msra.mxu0 0.0
        %2997 = vmatprep.subr.mxu0 0.0
        %2998 = vmatpush1.msra.mxu0 0.0
        %2999 = vmatprep.subr.mxu0 0.0
        %3000 = vmatpush1.msra.mxu0 0.0
        %3001 = vmatprep.subr.mxu0 0.0
        %3002 = vmatpush1.msra.mxu0 0.0
        %3003 = vmatprep.subr.mxu0 0.0
        %3004 = vmatpush1.msra.mxu0 0.0
        %3005 = vmatprep.mubr.f32.mxu0 0.0
        %3006 = vmatmul.mubr.f32.gmra.mrb[0].mxu0 %v2936
        %v3007 = vpop.f32.mrb[0].mxu0
        %v3008 = vadd.f32 %v2933, %v3007
        %v3009 = vpop.f32.mrb[0].mxu0
        %3010 = vmatprep.mubr.f32.mxu0 0.0
        %3011 = vmatmul.mubr.f32.gmra.mrb[0].mxu0 %v2939
        %v3012 = vpop.f32.mrb[0].mxu0
        %v3013 = vadd.f32 %v2933, %v3012
        %v3014 = vpop.f32.mrb[0].mxu0
        %3015 = vdwg.mxu0
        %v3016 = vmul.f32 %v3008, %v3008
        %v3017 = vmul.f32 %v3013, %v3013
        %v3018 = vmul.f32 %v3008, %v3016
        %v3019 = vmul.f32 %v3013, %v3017
        %v3020 = vmul.f32 %v3018, 0.044715
        %v3021 = vmul.f32 %v3019, 0.044715
        %v3022 = vadd.f32 %v3008, %v3020
        %v3023 = vadd.f32 %v3013, %v3021
        %v3024 = vmul.f32 %v3022, 0.7978846
        %v3025 = vmul.f32 %v3023, 0.7978846
        %v3026 = vtanh.pop %v3024
        %v3027 = vtanh.pop %v3025
        %v3028 = vadd.f32 %v3026, 1.0
        %v3029 = vadd.f32 %v3027, 1.0
        %v3030 = vmul.f32 %v3028, 0.5
        %v3031 = vmul.f32 %v3029, 0.5
        %v3032 = vmul.f32 %v3008, %v3030
        %v3033 = vmul.f32 %v3013, %v3031
        %v3034 = vld [vmem:[%s1054] sm:$0x1]
        %v3035 = vld [vmem:[%s1057] sm:$0x1]
        %v3036 = vsel %vm1093, %v3032, 0.0
        %3037 = vadd.xlane.f32.xlu0 %v3036
        %v3038 = vpop.xlane.xlu0 %3037
        %v3039 = vsel %vm1093, %v3033, 0.0
        %3040 = vadd.xlane.f32.xlu0 %v3039
        %v3041 = vpop.xlane.xlu0 %3040
        %v3042 = vmul.f32 %v3038, %v2628
        %v3043 = vmul.f32 %v3041, %v2628
        %v3044 = vsub.f32 %v3032, %v3042
        %v3045 = vsub.f32 %v3033, %v3043
        %v3046 = vmul.f32 %v3044, %v3044
        %v3047 = vmul.f32 %v3045, %v3045
        %v3048 = vsel %vm1093, %v3046, 0.0
        %3049 = vadd.xlane.f32.xlu0 %v3048
        %v3050 = vpop.xlane.xlu0 %3049
        %v3051 = vsel %vm1093, %v3047, 0.0
        %3052 = vadd.xlane.f32.xlu0 %v3051
        %v3053 = vpop.xlane.xlu0 %3052
        %v3054 = vmul.f32 %v3050, %v2628
        %v3055 = vmul.f32 %v3053, %v2628
        %v3056 = vadd.f32 %v3054, 1e-12
        %v3057 = vadd.f32 %v3055, 1e-12
        %v3058 = vrsqrt.pop %v3056
        %v3059 = vrsqrt.pop %v3057
        %v3060 = vmul.f32 %v3044, %v3058
        %v3061 = vmul.f32 %v3045, %v3059
        %v3063 = vlaneseq
        %v3064 = vshrl.u32 %v3063, 7
        %v3065 = vsub.s32 0, %v3064
        %v3066 = vrot.slane %v3034, %v3065
        %v3068 = vmul.f32 %v3060, %v3066
        %v3069 = vmul.f32 %v3061, %v3066
        %v3071 = vlaneseq
        %v3072 = vshrl.u32 %v3071, 7
        %v3073 = vsub.s32 0, %v3072
        %v3074 = vrot.slane %v3035, %v3073
        %v3076 = vadd.f32 %v3068, %v3074
        %v3077 = vadd.f32 %v3069, %v3074
        %p3078 = scmp.eq.s32.totalorder %s34, 0
        %s3079 = scalar_select %p3078, 1, 0
        %s3080 = scvt.s32.f32 %s3079
        %v3081 = vstv %s3080
        %v3082 = vmul.f32 %v3081, %v3076
        %v3083 = vmul.f32 %v3081, %v3077
        %s3084 = ssub.f32 1.0, %s3080
        %v3085 = vstv %s3084
        %v3086 = vmul.f32 %v3085, %v3032
        %v3087 = vmul.f32 %v3085, %v3033
        %v3088 = vadd.f32 %v3082, %v3086
        %v3089 = vadd.f32 %v3083, %v3087
        %v3090 = vld [vmem:[%s1062] sm:$0xff]
        %v3091 = vld [vmem:[%s1062 + $0x8] sm:$0xff]
        %v3092 = vld [vmem:[%s1062 + $0x10] sm:$0xff]
        %v3093 = vld [vmem:[%s1062 + $0x18] sm:$0xff]
        %v3094 = vld [vmem:[%s1065] sm:$0x1]
        %v3096 = vlaneseq
        %v3097 = vshrl.u32 %v3096, 7
        %v3098 = vsub.s32 0, %v3097
        %v3099 = vrot.slane %v3094, %v3098
        %v3102 = vsel %vm1093, %v3088, 0
        %v3105 = vsel %vm1093, %v3089, 0
        %3107 = vmatprep.subr.mxu0 0.0
        %3108 = vmatpush1.msra.mxu0 %v3090
        %3109 = vmatprep.subr.mxu0 0.0
        %3110 = vmatpush1.msra.mxu0 %v3091
        %3111 = vmatprep.subr.mxu0 0.0
        %3112 = vmatpush1.msra.mxu0 %v3092
        %3113 = vmatprep.subr.mxu0 0.0
        %3114 = vmatpush1.msra.mxu0 %v3093
        %3115 = vmatprep.subr.mxu0 0.0
        %3116 = vmatpush1.msra.mxu0 0.0
        %3117 = vmatprep.subr.mxu0 0.0
        %3118 = vmatpush1.msra.mxu0 0.0
        %3119 = vmatprep.subr.mxu0 0.0
        %3120 = vmatpush1.msra.mxu0 0.0
        %3121 = vmatprep.subr.mxu0 0.0
        %3122 = vmatpush1.msra.mxu0 0.0
        %3123 = vmatprep.subr.mxu0 0.0
        %3124 = vmatpush1.msra.mxu0 0.0
        %3125 = vmatprep.subr.mxu0 0.0
        %3126 = vmatpush1.msra.mxu0 0.0
        %3127 = vmatprep.subr.mxu0 0.0
        %3128 = vmatpush1.msra.mxu0 0.0
        %3129 = vmatprep.subr.mxu0 0.0
        %3130 = vmatpush1.msra.mxu0 0.0
        %3131 = vmatprep.subr.mxu0 0.0
        %3132 = vmatpush1.msra.mxu0 0.0
        %3133 = vmatprep.subr.mxu0 0.0
        %3134 = vmatpush1.msra.mxu0 0.0
        %3135 = vmatprep.subr.mxu0 0.0
        %3136 = vmatpush1.msra.mxu0 0.0
        %3137 = vmatprep.subr.mxu0 0.0
        %3138 = vmatpush1.msra.mxu0 0.0
        %3139 = vmatprep.subr.mxu0 0.0
        %3140 = vmatpush1.msra.mxu0 0.0
        %3141 = vmatprep.subr.mxu0 0.0
        %3142 = vmatpush1.msra.mxu0 0.0
        %3143 = vmatprep.subr.mxu0 0.0
        %3144 = vmatpush1.msra.mxu0 0.0
        %3145 = vmatprep.subr.mxu0 0.0
        %3146 = vmatpush1.msra.mxu0 0.0
        %3147 = vmatprep.subr.mxu0 0.0
        %3148 = vmatpush1.msra.mxu0 0.0
        %3149 = vmatprep.subr.mxu0 0.0
        %3150 = vmatpush1.msra.mxu0 0.0
        %3151 = vmatprep.subr.mxu0 0.0
        %3152 = vmatpush1.msra.mxu0 0.0
        %3153 = vmatprep.subr.mxu0 0.0
        %3154 = vmatpush1.msra.mxu0 0.0
        %3155 = vmatprep.subr.mxu0 0.0
        %3156 = vmatpush1.msra.mxu0 0.0
        %3157 = vmatprep.subr.mxu0 0.0
        %3158 = vmatpush1.msra.mxu0 0.0
        %3159 = vmatprep.subr.mxu0 0.0
        %3160 = vmatpush1.msra.mxu0 0.0
        %3161 = vmatprep.subr.mxu0 0.0
        %3162 = vmatpush1.msra.mxu0 0.0
        %3163 = vmatprep.subr.mxu0 0.0
        %3164 = vmatpush1.msra.mxu0 0.0
        %3165 = vmatprep.subr.mxu0 0.0
        %3166 = vmatpush1.msra.mxu0 0.0
        %3167 = vmatprep.subr.mxu0 0.0
        %3168 = vmatpush1.msra.mxu0 0.0
        %3169 = vmatprep.subr.mxu0 0.0
        %3170 = vmatpush1.msra.mxu0 0.0
        %3171 = vmatprep.mubr.f32.mxu0 0.0
        %3172 = vmatmul.mubr.f32.gmra.mrb[0].mxu0 %v3102
        %v3173 = vpop.f32.mrb[0].mxu0
        %v3174 = vadd.f32 %v3099, %v3173
        %v3175 = vpop.f32.mrb[0].mxu0
        %3176 = vmatprep.mubr.f32.mxu0 0.0
        %3177 = vmatmul.mubr.f32.gmra.mrb[0].mxu0 %v3105
        %v3178 = vpop.f32.mrb[0].mxu0
        %v3179 = vadd.f32 %v3099, %v3178
        %v3180 = vpop.f32.mrb[0].mxu0
        %3181 = vdwg.mxu0
        %3182 = vst [vmem:[%s1070] sm:$0xff] %v3174
        %3183 = vst [vmem:[%s1070 + $0x8] sm:$0xff] %v3179
      $region104: #{electra_forward.1} parent=95 // pred_fallthru
        _
      %p3184 = scmp.lt.s32.totalorder %s34, 1
      %s3185 = scalar_select %p3184, %s34, 1
      %s3186 = smul.addr %s3185, 2
      %s3187 = smul.addr %s3186, 8
      %s3188 = scalar_lea.vmem %s19, %s3187
      // Predicated region
      $region105: #{electra_forward.1} parent=95 // pred_check
        %p3189 = pneg %p578
      $region106: #{electra_forward.1} parent=95 // pred_check_branch
        %3191 = sbr.rel (%p3189) target = $region108
      $region107: #{electra_forward.1} parent=95 // pred_region
        _
      $region108: #{electra_forward.1} parent=95 // pred_fallthru
        _
    $region96: #{electra_forward.1} parent=5 // pred_fallthru
      _
    %p3192 = scmp.le.s32.totalorder 2, %s25
    // Predicated region
    $region109: #{electra_forward.1} parent=5 // pred_check
      %p3193 = pneg %p3192
    $region110: #{electra_forward.1} parent=5 // pred_check_branch
      %3195 = sbr.rel (%p3193) target = $region112
    $region111: #{electra_forward.1} parent=5 // pred_region
      %s3196 = ssub.s32 %s25, 2
      // Predicated region
      $region113: #{electra_forward.1} parent=111 // pred_check
        %p3197 = pneg %p584
      $region114: #{electra_forward.1} parent=111 // pred_check_branch
        %3199 = sbr.rel (%p3197) target = $region116
      $region115: #{electra_forward.1} parent=111 // pred_region
        %p3200 = scmp.lt.s32.totalorder %s36, 1
        %s3201 = scalar_select %p3200, %s36, 1
        %s3202 = smul.addr %s3201, 2
        %s3203 = smul.addr %s3202, 8
        %s3204 = scalar_lea.vmem %s19, %s3203
      $region116: #{electra_forward.1} parent=111 // pred_fallthru
        _
    $region112: #{electra_forward.1} parent=5 // pred_fallthru
      _
  $region6: #{electra_forward.1} parent=0 // loop_footer
    %s29 = sadd.s32 1, %s25
  $region7: #{electra_forward.1} parent=0 // loop_footer_branch
    %24 = sbr.rel target = $region3
  $region8: #{electra_forward.1} parent=0 // loop_exit
    _

</llo_original>
